<compile_context>
chip_gen: v7x
topology: tpu7x:2x2x1
jax: 0.10.0
libtpu: 0.0.40
codegen_flags: <defaults>
</compile_context>

<pallas_src>
import jax
import jax.numpy as jnp
from jax.experimental import pallas as pl
from jax.experimental.pallas import tpu as pltpu

IN_DIM = 4096
HID_DIM = 512
OUT_DIM = 80


def two_layer_kernel(x_ref, w1_ref, b1_ref, w2_ref, b2_ref, o_ref, acc_ref):
    k = pl.program_id(0)

    @pl.when(k == 0)
    def _():
        acc_ref[...] = jnp.zeros_like(acc_ref)

    # Partial contraction of layer-1: (B, tk) @ (tk, HID), f32 accumulate.
    # Cast the (tiny) x tile to the weight streaming dtype so the MXU takes
    # bf16 operands natively when weights are bf16 (no-op for f32 weights).
    x_blk = x_ref[...].astype(w1_ref.dtype)
    acc_ref[...] += jnp.dot(x_blk, w1_ref[...], preferred_element_type=jnp.float32)

    @pl.when(k == pl.num_programs(0) - 1)
    def _():
        h = acc_ref[...] + b1_ref[...]          # (B, HID) + (1, HID), f32
        h = jax.nn.sigmoid(h)                   # Sigmoid (EUP), f32
        h = h.astype(w2_ref.dtype)              # feed MXU in weight dtype
        out = jnp.dot(h, w2_ref[...], preferred_element_type=jnp.float32)
        out = out + b2_ref[...]                 # (B, OUT) + (1, OUT), f32
        o_ref[...] = out.astype(o_ref.dtype)


def two_layer_vgg2(x, w1, b1, w2, b2, *, tk=2048):
    """Fused forward pass.

    x : (B, 4096) f32
    w1: (4096, 512)  f32 or bf16 (bf16 recommended: halves the dominant HBM read)
    b1: (1, 512) f32
    w2: (512, 80)    f32 or bf16
    b2: (1, 80) f32
    """
    B, K = x.shape
    assert K == IN_DIM and K % tk == 0
    grid = (K // tk,)  # tk=2048 -> 2 steps: keeps the W1 DMA pipelined

    return pl.pallas_call(
        two_layer_kernel,
        out_shape=jax.ShapeDtypeStruct((B, OUT_DIM), x.dtype),
        grid_spec=pltpu.PrefetchScalarGridSpec(
            num_scalar_prefetch=0,
            grid=grid,
            in_specs=[
                pl.BlockSpec((B, tk), lambda k: (0, k)),            # x tile
                pl.BlockSpec((tk, HID_DIM), lambda k: (k, 0)),      # W1 tile (streamed)
                pl.BlockSpec((1, HID_DIM), lambda k: (0, 0)),       # b1 (resident)
                pl.BlockSpec((HID_DIM, OUT_DIM), lambda k: (0, 0)), # W2 (resident)
                pl.BlockSpec((1, OUT_DIM), lambda k: (0, 0)),       # b2 (resident)
            ],
            out_specs=pl.BlockSpec((B, OUT_DIM), lambda k: (0, 0)),
            scratch_shapes=[pltpu.VMEM((B, HID_DIM), jnp.float32)],
        ),
        compiler_params=pltpu.CompilerParams(
            dimension_semantics=("arbitrary",),  # K is a reduction axis
        ),
    )(x, w1, b1, w2, b2)


def reference(x, w1, b1, w2, b2):
    h = jax.nn.sigmoid(x @ w1 + b1)
    return h @ w2 + b2


if __name__ == "__main__":
    key = jax.random.PRNGKey(0)
    kx, kw1, kb1, kw2, kb2 = jax.random.split(key, 5)

    B = 8  # small batch; feature dims fixed by the module (4096 -> 512 -> 80)
    x = jax.random.normal(kx, (B, IN_DIM), dtype=jnp.float32)

    # Deterministic parameter init (mimics PyTorch Linear's uniform fan-in bound).
    bound1 = 1.0 / (IN_DIM ** 0.5)
    w1 = jax.random.uniform(kw1, (IN_DIM, HID_DIM), jnp.float32, -bound1, bound1)
    b1 = jax.random.uniform(kb1, (1, HID_DIM), jnp.float32, -bound1, bound1)
    bound2 = 1.0 / (HID_DIM ** 0.5)
    w2 = jax.random.uniform(kw2, (HID_DIM, OUT_DIM), jnp.float32, -bound2, bound2)
    b2 = jax.random.uniform(kb2, (1, OUT_DIM), jnp.float32, -bound2, bound2)

    # Parameter preparation: stream weights in bf16 (halves the W1 HBM read that
    # dominates wall time).  Biases and activations remain f32.
    w1_s = w1.astype(jnp.bfloat16)
    w2_s = w2.astype(jnp.bfloat16)

    out = jax.block_until_ready(two_layer_vgg2(x, w1_s, b1, w2_s, b2))

    # Reference uses the same bf16-rounded weights in f32 math; the remaining
    # difference is bf16 MXU operand rounding -> tolerance loosened vs f32.
    w1_q = w1_s.astype(jnp.float32)
    w2_q = w2_s.astype(jnp.float32)
    ref = reference(x, w1_q, b1, w2_q, b2)

    assert out.shape == (B, OUT_DIM)
    assert jnp.allclose(out, ref, atol=2e-2, rtol=2e-2), "mismatch vs reference"

    print("KERNEL_OK")
</pallas_src>

<mosaic_0001>
module attributes {stable_mosaic.version = 11 : i64} {
  func.func @two_layer_kernel(%arg0: i32, %arg1: memref<8x2048xf32, #tpu.memory_space<vmem>>, %arg2: memref<2048x512xbf16, #tpu.memory_space<vmem>>, %arg3: memref<1x512xf32, #tpu.memory_space<vmem>>, %arg4: memref<512x80xbf16, #tpu.memory_space<vmem>>, %arg5: memref<1x80xf32, #tpu.memory_space<vmem>>, %arg6: memref<8x80xf32, #tpu.memory_space<vmem>>, %arg7: memref<8x512xf32, #tpu.memory_space<vmem>>) attributes {dimension_semantics = [#tpu.dimension_semantics<arbitrary>], iteration_bounds = array<i64: 2>, scalar_prefetch = 0 : i64, scratch_operands = 1 : i64, tpu.core_type = #tpu.core_type<tc>, window_params = [{transform_indices = @transform_0, window_bounds = array<i64: 8, 2048>}, {transform_indices = @transform_1, window_bounds = array<i64: 2048, 512>}, {pipeline_mode = #tpu.pipeline_mode<synchronous>, transform_indices = @transform_2, window_bounds = array<i64: 1, 512>}, {pipeline_mode = #tpu.pipeline_mode<synchronous>, transform_indices = @transform_3, window_bounds = array<i64: 512, 80>}, {pipeline_mode = #tpu.pipeline_mode<synchronous>, transform_indices = @transform_4, window_bounds = array<i64: 1, 80>}, {pipeline_mode = #tpu.pipeline_mode<synchronous>, transform_indices = @transform_5, window_bounds = array<i64: 8, 80>}]} {
    %c0_i32 = arith.constant 0 : i32
    %0 = arith.cmpi eq, %arg0, %c0_i32 : i32
    %1 = arith.extui %0 : i1 to i32
    %c0_i32_0 = arith.constant 0 : i32
    %2 = arith.cmpi ne, %1, %c0_i32_0 : i32
    scf.if %2 {
      %cst_9 = arith.constant 0.000000e+00 : f32
      %13 = vector.broadcast %cst_9 : f32 to vector<8x512xf32>
      %c0_10 = arith.constant 0 : index
      %c0_11 = arith.constant 0 : index
      %14 = vector.load %arg7[%c0_10, %c0_11] : memref<8x512xf32, #tpu.memory_space<vmem>>, vector<8x512xf32>
      tpu.vector_store %arg7[%c0_10, %c0_11], %13 {strides = array<i32>} : memref<8x512xf32, #tpu.memory_space<vmem>>, vector<8x512xf32>,
    } else {
    }
    %c0 = arith.constant 0 : index
    %c0_1 = arith.constant 0 : index
    %3 = vector.load %arg1[%c0, %c0_1] : memref<8x2048xf32, #tpu.memory_space<vmem>>, vector<8x2048xf32>
    %4 = arith.truncf %3 : vector<8x2048xf32> to vector<8x2048xbf16>
    %c0_2 = arith.constant 0 : index
    %c0_3 = arith.constant 0 : index
    %5 = vector.load %arg7[%c0_2, %c0_3] : memref<8x512xf32, #tpu.memory_space<vmem>>, vector<8x512xf32>
    %c0_4 = arith.constant 0 : index
    %c0_5 = arith.constant 0 : index
    %6 = vector.load %arg2[%c0_4, %c0_5] : memref<2048x512xbf16, #tpu.memory_space<vmem>>, vector<2048x512xbf16>
    %cst = arith.constant dense<0.000000e+00> : vector<8x512xf32>
    %7 = tpu.matmul %4, %6, %cst {dimension_numbers = #tpu.dot_dimension_numbers<[1], [0], [0], [1], [0, 0, 1, 1], [], []>} : vector<8x2048xbf16>, vector<2048x512xbf16>, vector<8x512xf32> -> vector<8x512xf32>
    %8 = arith.addf %5, %7 : vector<8x512xf32>
    %c0_6 = arith.constant 0 : index
    %c0_7 = arith.constant 0 : index
    %9 = vector.load %arg7[%c0_6, %c0_7] : memref<8x512xf32, #tpu.memory_space<vmem>>, vector<8x512xf32>
    tpu.vector_store %arg7[%c0_6, %c0_7], %8 {strides = array<i32>} : memref<8x512xf32, #tpu.memory_space<vmem>>, vector<8x512xf32>,
    %c1_i32 = arith.constant 1 : i32
    %10 = arith.cmpi eq, %arg0, %c1_i32 : i32
    %11 = arith.extui %10 : i1 to i32
    %c0_i32_8 = arith.constant 0 : i32
    %12 = arith.cmpi ne, %11, %c0_i32_8 : i32
    scf.if %12 {
      %c0_9 = arith.constant 0 : index
      %c0_10 = arith.constant 0 : index
      %13 = vector.load %arg7[%c0_9, %c0_10] : memref<8x512xf32, #tpu.memory_space<vmem>>, vector<8x512xf32>
      %c0_11 = arith.constant 0 : index
      %c0_12 = arith.constant 0 : index
      %14 = vector.load %arg3[%c0_11, %c0_12] : memref<1x512xf32, #tpu.memory_space<vmem>>, vector<1x512xf32>
      %15 = vector.broadcast %14 : vector<1x512xf32> to vector<8x512xf32>
      %16 = arith.addf %13, %15 : vector<8x512xf32>
      %17 = arith.negf %16 : vector<8x512xf32>
      %18 = math.exp %17 : vector<8x512xf32>
      %cst_13 = arith.constant 1.000000e+00 : f32
      %19 = vector.broadcast %cst_13 : f32 to vector<8x512xf32>
      %20 = arith.addf %19, %18 : vector<8x512xf32>
      %21 = arith.divf %19, %20 : vector<8x512xf32>
      %22 = arith.truncf %21 : vector<8x512xf32> to vector<8x512xbf16>
      %c0_14 = arith.constant 0 : index
      %c0_15 = arith.constant 0 : index
      %23 = vector.load %arg4[%c0_14, %c0_15] : memref<512x80xbf16, #tpu.memory_space<vmem>>, vector<512x80xbf16>
      %cst_16 = arith.constant dense<0.000000e+00> : vector<8x80xf32>
      %24 = tpu.matmul %22, %23, %cst_16 {dimension_numbers = #tpu.dot_dimension_numbers<[1], [0], [0], [1], [0, 0, 1, 1], [], []>} : vector<8x512xbf16>, vector<512x80xbf16>, vector<8x80xf32> -> vector<8x80xf32>
      %c0_17 = arith.constant 0 : index
      %c0_18 = arith.constant 0 : index
      %25 = vector.load %arg5[%c0_17, %c0_18] : memref<1x80xf32, #tpu.memory_space<vmem>>, vector<1x80xf32>
      %26 = vector.broadcast %25 : vector<1x80xf32> to vector<8x80xf32>
      %27 = arith.addf %24, %26 : vector<8x80xf32>
      %c0_19 = arith.constant 0 : index
      %c0_20 = arith.constant 0 : index
      %28 = vector.load %arg6[%c0_19, %c0_20] : memref<8x80xf32, #tpu.memory_space<vmem>>, vector<8x80xf32>
      tpu.vector_store %arg6[%c0_19, %c0_20], %27 {strides = array<i32>} : memref<8x80xf32, #tpu.memory_space<vmem>>, vector<8x80xf32>,
    } else {
    }
    return
  }
  func.func @transform_0(%arg0: i32) -> (i32, i32) {
    %c0_i32 = arith.constant 0 : i32
    %c0_i32_0 = arith.constant 0 : i32
    return %c0_i32, %arg0 : i32, i32
  }
  func.func @transform_1(%arg0: i32) -> (i32, i32) {
    %c0_i32 = arith.constant 0 : i32
    %c0_i32_0 = arith.constant 0 : i32
    return %arg0, %c0_i32 : i32, i32
  }
  func.func @transform_2(%arg0: i32) -> (i32, i32) {
    %c0_i32 = arith.constant 0 : i32
    %c0_i32_0 = arith.constant 0 : i32
    %c0_i32_1 = arith.constant 0 : i32
    return %c0_i32, %c0_i32_0 : i32, i32
  }
  func.func @transform_3(%arg0: i32) -> (i32, i32) {
    %c0_i32 = arith.constant 0 : i32
    %c0_i32_0 = arith.constant 0 : i32
    %c0_i32_1 = arith.constant 0 : i32
    return %c0_i32, %c0_i32_0 : i32, i32
  }
  func.func @transform_4(%arg0: i32) -> (i32, i32) {
    %c0_i32 = arith.constant 0 : i32
    %c0_i32_0 = arith.constant 0 : i32
    %c0_i32_1 = arith.constant 0 : i32
    return %c0_i32, %c0_i32_0 : i32, i32
  }
  func.func @transform_5(%arg0: i32) -> (i32, i32) {
    %c0_i32 = arith.constant 0 : i32
    %c0_i32_0 = arith.constant 0 : i32
    %c0_i32_1 = arith.constant 0 : i32
    return %c0_i32, %c0_i32_0 : i32, i32
  }
}

</mosaic_0001>

<llo_original>
// kernel: tpu_custom_call.1
$region0: #{tpu_custom_call.1}
  #allocation0 [shape = 'u32[]', space=smem, size = 0x4, offset = 0x4, fixed_abs, tag = 'smem constant byte address 0x4 - core index']
  #allocation1 [shape = 'u32[144,128]{1,0:T(1,128)}', space=vmem, size = 0x12000, scoped, tag = 'internal scratch']
  #allocation2 [shape = 'f32[8,512]{1,0:T(8,128)}', space=vmem, size = 0x4000, scoped, tag = 'scratch operand']
  %s0 = inlined_call_operand.hbm [shape: f32[8,4096], index: 0, kind: input, shape index: {}]
  %s1 = inlined_call_operand.hbm [shape: bf16[4096,512], index: 1, kind: input, shape index: {}]
  %s2 = inlined_call_operand.hbm [shape: f32[1,512], index: 2, kind: input, shape index: {}]
  %s3 = inlined_call_operand.vmem [shape: bf16[512,80], index: 3, kind: input, shape index: {}]
  %s4 = inlined_call_operand.hbm [shape: f32[1,80], index: 4, kind: input, shape index: {}]
  %s5 = inlined_call_operand.hbm [shape: f32[8,80], index: 5, kind: output, shape index: {}]
  %s6 = sld [smem:[#allocation0]]
  $region77: #{tpu_custom_call.1} parent=0
    _
  %s8 = ssub.s32 1, %s6
  %s9 = scalar_select 0, %s8, %s6
  $region1: #{tpu_custom_call.1} parent=0
    #allocation3 [shape = 'u8[131072]{0}', space=vmem, size = 0x20000, scoped, tag = 'input window, operand 0']
    #allocation4 [shape = 's32[2]{0}', space=sflag, size = 0x8, scoped, tag = 'scoped memory for tpu_custom_call.1']
    #allocation5 [shape = 's32[2]{0}', space=sflag, size = 0x8, scoped, tag = 'scoped memory for tpu_custom_call.1']
    #allocation6 [shape = 'u8[4194304]{0}', space=vmem, size = 0x400000, scoped, tag = 'input window, operand 1']
    #allocation7 [shape = 's32[2]{0}', space=sflag, size = 0x8, scoped, tag = 'scoped memory for tpu_custom_call.1']
    #allocation8 [shape = 'u8[2048]{0}', space=vmem, size = 0x800, scoped, tag = 'input window, operand 2, single buffered']
    #allocation9 [shape = 'u8[512]{0}', space=vmem, size = 0x400, scoped, tag = 'input window, operand 4, single buffered']
    #allocation10 [shape = 's32[1]{0}', space=sflag, size = 0x4, scoped, tag = 'scoped memory for tpu_custom_call.1']
    #allocation11 [shape = 'u8[4096]{0}', space=vmem, size = 0x1000, scoped, tag = 'output window, operand 0, single buffered']
    %10 = vsyncpa [#allocation4], 0
    %s11 = scalar_lea.sflag [#allocation4], 1
    %12 = vsyncpa %s11, 0
    %13 = vsyncpa [#allocation7], 0
    %s14 = scalar_lea.sflag [#allocation7], 1
    %15 = vsyncpa %s14, 0
    %16 = vsyncpa [#allocation10], 0
    %17 = vsyncpa [#allocation5], 0
    loop: start=0, step=1, limit=4
    $region2: #{tpu_custom_call.1} parent=1 // loop_pre_header
      _
    $region3: #{tpu_custom_call.1} parent=1 // loop_header
      %s19 = sphi 0, %s23
      %p20 = scmp.ge.s32.totalorder %s19, 4
      %s29 = sphi 0, %s31
      %s32 = sphi 0, %s29
      %s33 = sphi 0, %s32
      %s49 = sphi 0, %s33
      %s55 = sphi 0, %s57
      %s58 = sphi 0, %s55
      %s59 = sphi 0, %s58
      %s75 = sphi 0, %s59
      %s79 = sphi 0, %s79
      %s81 = sphi 0, %s79
      %s82 = sphi 0, %s81
      %s96 = sphi 0, %s82
      %s100 = sphi 0, %s100
      %s102 = sphi 0, %s100
      %s103 = sphi 0, %s102
      %s117 = sphi 0, %s103
      %s121 = sphi 0, %s121
      %s123 = sphi 0, %s121
      %s124 = sphi 0, %s123
      %s138 = sphi 0, %s124
      %s142 = sphi 0, %s142
      %s144 = sphi 0, %s142
      %s145 = sphi 0, %s144
      %s159 = sphi 0, %s145
    $region4: #{tpu_custom_call.1} parent=1 // loop_header_branch
      %22 = sbr.rel (%p20) target = $region8
    $region5: #{tpu_custom_call.1} parent=1 // loop_body
      %s24 = ssub.s32 %s19, 1
      %s25 = ssub.s32 %s19, 2
      %s26 = sadd.s32 %s19, 1
      %s27 = ssub.s32 %s19, %s26
      %p28 = scmp.eq.s32.totalorder %s27, 0
      %s30 = sadd.s32 %s29, 1
      %s31 = scalar_select %p28, %s29, %s30
      %p34 = pneg %p28
      %p35 = scmp.eq.s32.totalorder %s19, 1
      %p36 = por %p34, %p35
      %p37 = scmp.ne.s32.totalorder %s29, %s32
      %p38 = scmp.eq.s32.totalorder %s19, 0
      %p39 = por %p37, %p38
      %p40 = scmp.ne.s32.totalorder %s29, %s32
      %p41 = scmp.eq.s32.totalorder %s24, 1
      %p42 = por %p40, %p41
      %p43 = scmp.ne.s32.totalorder %s32, %s33
      %p44 = scmp.eq.s32.totalorder %s24, 0
      %p45 = por %p43, %p44
      %p46 = scmp.ne.s32.totalorder %s32, %s33
      %p47 = scmp.eq.s32.totalorder %s25, 1
      %p48 = por %p46, %p47
      %p50 = scmp.ne.s32.totalorder %s33, %s49
      %p51 = scmp.eq.s32.totalorder %s25, 0
      %p52 = por %p50, %p51
      %s53 = ssub.s32 %s19, %s26
      %p54 = scmp.eq.s32.totalorder %s53, 0
      %s56 = sadd.s32 %s55, 1
      %s57 = scalar_select %p54, %s55, %s56
      %p60 = pneg %p54
      %p61 = scmp.eq.s32.totalorder %s19, 1
      %p62 = por %p60, %p61
      %p63 = scmp.ne.s32.totalorder %s55, %s58
      %p64 = scmp.eq.s32.totalorder %s19, 0
      %p65 = por %p63, %p64
      %p66 = scmp.ne.s32.totalorder %s55, %s58
      %p67 = scmp.eq.s32.totalorder %s24, 1
      %p68 = por %p66, %p67
      %p69 = scmp.ne.s32.totalorder %s58, %s59
      %p70 = scmp.eq.s32.totalorder %s24, 0
      %p71 = por %p69, %p70
      %p72 = scmp.ne.s32.totalorder %s58, %s59
      %p73 = scmp.eq.s32.totalorder %s25, 1
      %p74 = por %p72, %p73
      %p76 = scmp.ne.s32.totalorder %s59, %s75
      %p77 = scmp.eq.s32.totalorder %s25, 0
      %p78 = por %p76, %p77
      %s80 = sadd.s32 %s79, 1
      %p83 = scmp.eq.s32.totalorder %s19, 1
      %p84 = scmp.ne.s32.totalorder %s79, %s81
      %p85 = scmp.eq.s32.totalorder %s19, 0
      %p86 = por %p84, %p85
      %p87 = scmp.ne.s32.totalorder %s79, %s81
      %p88 = scmp.eq.s32.totalorder %s24, 1
      %p89 = por %p87, %p88
      %p90 = scmp.ne.s32.totalorder %s81, %s82
      %p91 = scmp.eq.s32.totalorder %s24, 0
      %p92 = por %p90, %p91
      %p93 = scmp.ne.s32.totalorder %s81, %s82
      %p94 = scmp.eq.s32.totalorder %s25, 1
      %p95 = por %p93, %p94
      %p97 = scmp.ne.s32.totalorder %s82, %s96
      %p98 = scmp.eq.s32.totalorder %s25, 0
      %p99 = por %p97, %p98
      %s101 = sadd.s32 %s100, 1
      %p104 = scmp.eq.s32.totalorder %s19, 1
      %p105 = scmp.ne.s32.totalorder %s100, %s102
      %p106 = scmp.eq.s32.totalorder %s19, 0
      %p107 = por %p105, %p106
      %p108 = scmp.ne.s32.totalorder %s100, %s102
      %p109 = scmp.eq.s32.totalorder %s24, 1
      %p110 = por %p108, %p109
      %p111 = scmp.ne.s32.totalorder %s102, %s103
      %p112 = scmp.eq.s32.totalorder %s24, 0
      %p113 = por %p111, %p112
      %p114 = scmp.ne.s32.totalorder %s102, %s103
      %p115 = scmp.eq.s32.totalorder %s25, 1
      %p116 = por %p114, %p115
      %p118 = scmp.ne.s32.totalorder %s103, %s117
      %p119 = scmp.eq.s32.totalorder %s25, 0
      %p120 = por %p118, %p119
      %s122 = sadd.s32 %s121, 1
      %p125 = scmp.eq.s32.totalorder %s19, 1
      %p126 = scmp.ne.s32.totalorder %s121, %s123
      %p127 = scmp.eq.s32.totalorder %s19, 0
      %p128 = por %p126, %p127
      %p129 = scmp.ne.s32.totalorder %s121, %s123
      %p130 = scmp.eq.s32.totalorder %s24, 1
      %p131 = por %p129, %p130
      %p132 = scmp.ne.s32.totalorder %s123, %s124
      %p133 = scmp.eq.s32.totalorder %s24, 0
      %p134 = por %p132, %p133
      %p135 = scmp.ne.s32.totalorder %s123, %s124
      %p136 = scmp.eq.s32.totalorder %s25, 1
      %p137 = por %p135, %p136
      %p139 = scmp.ne.s32.totalorder %s124, %s138
      %p140 = scmp.eq.s32.totalorder %s25, 0
      %p141 = por %p139, %p140
      %s143 = sadd.s32 %s142, 1
      %p146 = scmp.eq.s32.totalorder %s19, 1
      %p147 = scmp.ne.s32.totalorder %s142, %s144
      %p148 = scmp.eq.s32.totalorder %s19, 0
      %p149 = por %p147, %p148
      %p150 = scmp.ne.s32.totalorder %s142, %s144
      %p151 = scmp.eq.s32.totalorder %s24, 1
      %p152 = por %p150, %p151
      %p153 = scmp.ne.s32.totalorder %s144, %s145
      %p154 = scmp.eq.s32.totalorder %s24, 0
      %p155 = por %p153, %p154
      %p156 = scmp.ne.s32.totalorder %s144, %s145
      %p157 = scmp.eq.s32.totalorder %s25, 1
      %p158 = por %p156, %p157
      %p160 = scmp.ne.s32.totalorder %s145, %s159
      %p161 = scmp.eq.s32.totalorder %s25, 0
      %p162 = por %p160, %p161
      %p163 = scmp.le.s32.totalorder 1, %s19
      %p164 = scmp.lt.s32.totalorder %s19, 3
      %p165 = pnand %p163, %p164
      %p166 = pneg %p165
      // Predicated region
      $region9: #{tpu_custom_call.1} parent=5 // pred_check
        _
      $region10: #{tpu_custom_call.1} parent=5 // pred_check_branch
        %168 = sbr.rel (%p165) target = $region12
      $region11: #{tpu_custom_call.1} parent=5 // pred_region
        %s169 = ssub.s32 %s19, 1
        // Predicated region
        $region13: #{tpu_custom_call.1} parent=11 // pred_check
          %p170 = pneg %p92
        $region14: #{tpu_custom_call.1} parent=11 // pred_check_branch
          %172 = sbr.rel (%p170) target = $region16
        $region15: #{tpu_custom_call.1} parent=11 // pred_region
          %s174 = ssub.s32 64, 64
          %175 = vsyncadd [#allocation7], %s174
          %s177 = sshll.u32 [#allocation8], 4
          %s178 = int_to_ptr.vmem [resolvable:$true] %s177
          %180 = dma.hbm_to_vmem [thread:$0]  %s2, 64, %s178, [#allocation7]
        $region16: #{tpu_custom_call.1} parent=11 // pred_fallthru
          _
        // Predicated region
        $region17: #{tpu_custom_call.1} parent=11 // pred_check
          %p181 = pneg %p113
        $region18: #{tpu_custom_call.1} parent=11 // pred_check_branch
          %183 = sbr.rel (%p181) target = $region20
        $region19: #{tpu_custom_call.1} parent=11 // pred_region
          _
        $region20: #{tpu_custom_call.1} parent=11 // pred_fallthru
          _
        // Predicated region
        $region21: #{tpu_custom_call.1} parent=11 // pred_check
          %p184 = pneg %p134
        $region22: #{tpu_custom_call.1} parent=11 // pred_check_branch
          %186 = sbr.rel (%p184) target = $region24
        $region23: #{tpu_custom_call.1} parent=11 // pred_region
          %s188 = ssub.s32 16, 16
          %189 = vsyncadd [#allocation10], %s188
          %s191 = sshll.u32 [#allocation9], 4
          %s192 = int_to_ptr.vmem [resolvable:$true] %s191
          %194 = dma.hbm_to_vmem [thread:$0]  %s4, 16, %s192, [#allocation10]
        $region24: #{tpu_custom_call.1} parent=11 // pred_fallthru
          _
      $region12: #{tpu_custom_call.1} parent=5 // pred_fallthru
        _
      %p195 = scmp.lt.s32.totalorder %s19, 2
      // Predicated region
      $region25: #{tpu_custom_call.1} parent=5 // pred_check
        %p196 = pneg %p195
      $region26: #{tpu_custom_call.1} parent=5 // pred_check_branch
        %198 = sbr.rel (%p196) target = $region28
      $region27: #{tpu_custom_call.1} parent=5 // pred_region
        // Predicated region
        $region29: #{tpu_custom_call.1} parent=27 // pred_check
          %p199 = pneg %p39
        $region30: #{tpu_custom_call.1} parent=27 // pred_check_branch
          %201 = sbr.rel (%p199) target = $region32
        $region31: #{tpu_custom_call.1} parent=27 // pred_region
          %s202 = sand.u32 %s29, 1
          %s203 = scalar_lea.sflag [#allocation4], %s202
          %s204 = sand.u32 %s29, 1
          %s205 = smul.addr %s204, 128
          %s206 = scalar_lea.vmem [#allocation3], %s205
          %s207 = smul.u32 16, %s19
          %s209 = ssub.s32 2048, 2048
          %210 = vsyncadd %s203, %s209
          %s211 = smul.addr %s207, 128
          %s212 = scalar_lea.hbm %s0, %s211
          %s214 = sshll.u32 %s206, 4
          %s215 = int_to_ptr.vmem [resolvable:$true] %s214
          %217 = dma.hbm_to_vmem [thread:$0]  %s212, 2048, %s215, %s203
        $region32: #{tpu_custom_call.1} parent=27 // pred_fallthru
          _
        // Predicated region
        $region33: #{tpu_custom_call.1} parent=27 // pred_check
          %p218 = pneg %p65
        $region34: #{tpu_custom_call.1} parent=27 // pred_check_branch
          %220 = sbr.rel (%p218) target = $region36
        $region35: #{tpu_custom_call.1} parent=27 // pred_region
          %s221 = sand.u32 %s19, 1
          %s222 = scalar_lea.sflag [#allocation7], %s221
          %s223 = sand.u32 %s55, 1
          %s224 = smul.addr %s223, 4096
          %s225 = scalar_lea.vmem [#allocation6], %s224
          %s226 = smul.u32 256, %s19
          %s228 = ssub.s32 65536, 65536
          %229 = vsyncadd %s222, %s228
          %s230 = smul.addr %s226, 4
          %s231 = smul.addr %s230, 64
          %s232 = scalar_lea.hbm %s1, %s231
          %s233 = sshll.u32 %s225, 4
          %s234 = int_to_ptr.vmem [resolvable:$true] %s233
          %239 = dma.hbm_to_vmem [thread:$0]  %s232, 65536, %s234, %s222, 256, 256, 16
        $region36: #{tpu_custom_call.1} parent=27 // pred_fallthru
          _
      $region28: #{tpu_custom_call.1} parent=5 // pred_fallthru
        _
      %p240 = scmp.le.s32.totalorder 1, %s19
      %p241 = scmp.lt.s32.totalorder %s19, 3
      %p242 = pnand %p240, %p241
      %p243 = pneg %p242
      // Predicated region
      $region37: #{tpu_custom_call.1} parent=5 // pred_check
        _
      $region38: #{tpu_custom_call.1} parent=5 // pred_check_branch
        %245 = sbr.rel (%p242) target = $region40
      $region39: #{tpu_custom_call.1} parent=5 // pred_region
        %s246 = ssub.s32 %s19, 1
        %s247 = sand.u32 %s32, 1
        %s248 = scalar_lea.sflag [#allocation4], %s247
        %s249 = sand.u32 %s32, 1
        %s250 = smul.addr %s249, 128
        %s251 = scalar_lea.vmem [#allocation3], %s250
        // Predicated region
        $region41: #{tpu_custom_call.1} parent=39 // pred_check
          %p252 = pneg %p45
        $region42: #{tpu_custom_call.1} parent=39 // pred_check_branch
          %254 = sbr.rel (%p252) target = $region44
        $region43: #{tpu_custom_call.1} parent=39 // pred_region
          %255 = dma.done %s248, 2048
        $region44: #{tpu_custom_call.1} parent=39 // pred_fallthru
          _
        %s256 = sand.u32 %s24, 1
        %s257 = scalar_lea.sflag [#allocation7], %s256
        %s258 = sand.u32 %s58, 1
        %s259 = smul.addr %s258, 4096
        %s260 = scalar_lea.vmem [#allocation6], %s259
        // Predicated region
        $region45: #{tpu_custom_call.1} parent=39 // pred_check
          %p261 = pneg %p71
        $region46: #{tpu_custom_call.1} parent=39 // pred_check_branch
          %263 = sbr.rel (%p261) target = $region48
        $region47: #{tpu_custom_call.1} parent=39 // pred_region
          %264 = dma.done %s257, 65536
        $region48: #{tpu_custom_call.1} parent=39 // pred_fallthru
          _
        // Predicated region
        $region49: #{tpu_custom_call.1} parent=39 // pred_check
          %p265 = pneg %p92
        $region50: #{tpu_custom_call.1} parent=39 // pred_check_branch
          %267 = sbr.rel (%p265) target = $region52
        $region51: #{tpu_custom_call.1} parent=39 // pred_region
          %268 = dma.done [#allocation7], 64
        $region52: #{tpu_custom_call.1} parent=39 // pred_fallthru
          _
        // Predicated region
        $region53: #{tpu_custom_call.1} parent=39 // pred_check
          %p269 = pneg %p134
        $region54: #{tpu_custom_call.1} parent=39 // pred_check_branch
          %271 = sbr.rel (%p269) target = $region56
        $region55: #{tpu_custom_call.1} parent=39 // pred_region
          %272 = dma.done [#allocation10], 16
        $region56: #{tpu_custom_call.1} parent=39 // pred_fallthru
          _
        %s273 = sand.u32 %s32, 1
        %s274 = scalar_lea.sflag [#allocation4], %s273
        %s275 = sand.u32 %s32, 1
        %s276 = smul.addr %s275, 128
        %s277 = scalar_lea.vmem [#allocation3], %s276
        %p278 = pneg %p45
        %p279 = pneg %p42
        %s280 = sand.u32 %s24, 1
        %s281 = scalar_lea.sflag [#allocation7], %s280
        %s282 = sand.u32 %s58, 1
        %s283 = smul.addr %s282, 4096
        %s284 = scalar_lea.vmem [#allocation6], %s283
        %p285 = pneg %p71
        %p286 = pneg %p68
        %p287 = pneg %p92
        %p288 = pneg %p89
        %p289 = pneg %p113
        %p290 = pneg %p110
        %p291 = pneg %p134
        %p292 = pneg %p131
        %p293 = pneg %p155
        %p294 = pneg %p152
        %s295 = smul.u32 16, %s24
        %s296 = smul.u32 256, %s24
        %p298 = scmp.eq.s32.totalorder %s24, 0
        // Predicated region
        $region57: #{tpu_custom_call.1} parent=39 // pred_check
          %p299 = pneg %p298
        $region58: #{tpu_custom_call.1} parent=39 // pred_check_branch
          %301 = sbr.rel (%p299) target = $region60
        $region59: #{tpu_custom_call.1} parent=39 // pred_region
          %302 = vst [vmem:[#allocation2] sm:$0xff] 0.0
          %303 = vst [vmem:[#allocation2 + $0x8] sm:$0xff] 0.0
          %304 = vst [vmem:[#allocation2 + $0x10] sm:$0xff] 0.0
          %305 = vst [vmem:[#allocation2 + $0x18] sm:$0xff] 0.0
        $region60: #{tpu_custom_call.1} parent=39 // pred_fallthru
          _
        %v306 = vld [vmem:[%s251] sm:$0xff]
        %v307 = vld [vmem:[%s251 + $0x8] sm:$0xff]
        %v308 = vld [vmem:[%s251 + $0x10] sm:$0xff]
        %v309 = vld [vmem:[%s251 + $0x18] sm:$0xff]
        %v310 = vld [vmem:[%s251 + $0x20] sm:$0xff]
        %v311 = vld [vmem:[%s251 + $0x28] sm:$0xff]
        %v312 = vld [vmem:[%s251 + $0x30] sm:$0xff]
        %v313 = vld [vmem:[%s251 + $0x38] sm:$0xff]
        %v314 = vld [vmem:[%s251 + $0x40] sm:$0xff]
        %v315 = vld [vmem:[%s251 + $0x48] sm:$0xff]
        %v316 = vld [vmem:[%s251 + $0x50] sm:$0xff]
        %v317 = vld [vmem:[%s251 + $0x58] sm:$0xff]
        %v318 = vld [vmem:[%s251 + $0x60] sm:$0xff]
        %v319 = vld [vmem:[%s251 + $0x68] sm:$0xff]
        %v320 = vld [vmem:[%s251 + $0x70] sm:$0xff]
        %v321 = vld [vmem:[%s251 + $0x78] sm:$0xff]
        %v322 = vpack.c.bf16 %v306, %v306
        %v323 = vpack.c.bf16 %v307, %v307
        %v324 = vpack.c.bf16 %v308, %v308
        %v325 = vpack.c.bf16 %v309, %v309
        %v326 = vpack.c.bf16 %v310, %v310
        %v327 = vpack.c.bf16 %v311, %v311
        %v328 = vpack.c.bf16 %v312, %v312
        %v329 = vpack.c.bf16 %v313, %v313
        %v330 = vpack.c.bf16 %v314, %v314
        %v331 = vpack.c.bf16 %v315, %v315
        %v332 = vpack.c.bf16 %v316, %v316
        %v333 = vpack.c.bf16 %v317, %v317
        %v334 = vpack.c.bf16 %v318, %v318
        %v335 = vpack.c.bf16 %v319, %v319
        %v336 = vpack.c.bf16 %v320, %v320
        %v337 = vpack.c.bf16 %v321, %v321
        %v338 = vld [vmem:[#allocation2] sm:$0xff]
        %v339 = vld [vmem:[#allocation2 + $0x8] sm:$0xff]
        %v340 = vld [vmem:[#allocation2 + $0x10] sm:$0xff]
        %v341 = vld [vmem:[#allocation2 + $0x18] sm:$0xff]
        %v342 = vld [vmem:[%s260] sm:$0xff]
        %v343 = vld [vmem:[%s260 + $0x8] sm:$0xff]
        %v344 = vld [vmem:[%s260 + $0x10] sm:$0xff]
        %v345 = vld [vmem:[%s260 + $0x18] sm:$0xff]
        %v346 = vld [vmem:[%s260 + $0x20] sm:$0xff]
        %v347 = vld [vmem:[%s260 + $0x28] sm:$0xff]
        %v348 = vld [vmem:[%s260 + $0x30] sm:$0xff]
        %v349 = vld [vmem:[%s260 + $0x38] sm:$0xff]
        %v350 = vld [vmem:[%s260 + $0x40] sm:$0xff]
        %v351 = vld [vmem:[%s260 + $0x48] sm:$0xff]
        %v352 = vld [vmem:[%s260 + $0x50] sm:$0xff]
        %v353 = vld [vmem:[%s260 + $0x58] sm:$0xff]
        %v354 = vld [vmem:[%s260 + $0x60] sm:$0xff]
        %v355 = vld [vmem:[%s260 + $0x68] sm:$0xff]
        %v356 = vld [vmem:[%s260 + $0x70] sm:$0xff]
        %v357 = vld [vmem:[%s260 + $0x78] sm:$0xff]
        %v358 = vld [vmem:[%s260 + $0x80] sm:$0xff]
        %v359 = vld [vmem:[%s260 + $0x88] sm:$0xff]
        %v360 = vld [vmem:[%s260 + $0x90] sm:$0xff]
        %v361 = vld [vmem:[%s260 + $0x98] sm:$0xff]
        %v362 = vld [vmem:[%s260 + $0xa0] sm:$0xff]
        %v363 = vld [vmem:[%s260 + $0xa8] sm:$0xff]
        %v364 = vld [vmem:[%s260 + $0xb0] sm:$0xff]
        %v365 = vld [vmem:[%s260 + $0xb8] sm:$0xff]
        %v366 = vld [vmem:[%s260 + $0xc0] sm:$0xff]
        %v367 = vld [vmem:[%s260 + $0xc8] sm:$0xff]
        %v368 = vld [vmem:[%s260 + $0xd0] sm:$0xff]
        %v369 = vld [vmem:[%s260 + $0xd8] sm:$0xff]
        %v370 = vld [vmem:[%s260 + $0xe0] sm:$0xff]
        %v371 = vld [vmem:[%s260 + $0xe8] sm:$0xff]
        %v372 = vld [vmem:[%s260 + $0xf0] sm:$0xff]
        %v373 = vld [vmem:[%s260 + $0xf8] sm:$0xff]
        %v374 = vld [vmem:[%s260 + $0x100] sm:$0xff]
        %v375 = vld [vmem:[%s260 + $0x108] sm:$0xff]
        %v376 = vld [vmem:[%s260 + $0x110] sm:$0xff]
        %v377 = vld [vmem:[%s260 + $0x118] sm:$0xff]
        %v378 = vld [vmem:[%s260 + $0x120] sm:$0xff]
        %v379 = vld [vmem:[%s260 + $0x128] sm:$0xff]
        %v380 = vld [vmem:[%s260 + $0x130] sm:$0xff]
        %v381 = vld [vmem:[%s260 + $0x138] sm:$0xff]
        %v382 = vld [vmem:[%s260 + $0x140] sm:$0xff]
        %v383 = vld [vmem:[%s260 + $0x148] sm:$0xff]
        %v384 = vld [vmem:[%s260 + $0x150] sm:$0xff]
        %v385 = vld [vmem:[%s260 + $0x158] sm:$0xff]
        %v386 = vld [vmem:[%s260 + $0x160] sm:$0xff]
        %v387 = vld [vmem:[%s260 + $0x168] sm:$0xff]
        %v388 = vld [vmem:[%s260 + $0x170] sm:$0xff]
        %v389 = vld [vmem:[%s260 + $0x178] sm:$0xff]
        %v390 = vld [vmem:[%s260 + $0x180] sm:$0xff]
        %v391 = vld [vmem:[%s260 + $0x188] sm:$0xff]
        %v392 = vld [vmem:[%s260 + $0x190] sm:$0xff]
        %v393 = vld [vmem:[%s260 + $0x198] sm:$0xff]
        %v394 = vld [vmem:[%s260 + $0x1a0] sm:$0xff]
        %v395 = vld [vmem:[%s260 + $0x1a8] sm:$0xff]
        %v396 = vld [vmem:[%s260 + $0x1b0] sm:$0xff]
        %v397 = vld [vmem:[%s260 + $0x1b8] sm:$0xff]
        %v398 = vld [vmem:[%s260 + $0x1c0] sm:$0xff]
        %v399 = vld [vmem:[%s260 + $0x1c8] sm:$0xff]
        %v400 = vld [vmem:[%s260 + $0x1d0] sm:$0xff]
        %v401 = vld [vmem:[%s260 + $0x1d8] sm:$0xff]
        %v402 = vld [vmem:[%s260 + $0x1e0] sm:$0xff]
        %v403 = vld [vmem:[%s260 + $0x1e8] sm:$0xff]
        %v404 = vld [vmem:[%s260 + $0x1f0] sm:$0xff]
        %v405 = vld [vmem:[%s260 + $0x1f8] sm:$0xff]
        %v406 = vld [vmem:[%s260 + $0x200] sm:$0xff]
        %v407 = vld [vmem:[%s260 + $0x208] sm:$0xff]
        %v408 = vld [vmem:[%s260 + $0x210] sm:$0xff]
        %v409 = vld [vmem:[%s260 + $0x218] sm:$0xff]
        %v410 = vld [vmem:[%s260 + $0x220] sm:$0xff]
        %v411 = vld [vmem:[%s260 + $0x228] sm:$0xff]
        %v412 = vld [vmem:[%s260 + $0x230] sm:$0xff]
        %v413 = vld [vmem:[%s260 + $0x238] sm:$0xff]
        %v414 = vld [vmem:[%s260 + $0x240] sm:$0xff]
        %v415 = vld [vmem:[%s260 + $0x248] sm:$0xff]
        %v416 = vld [vmem:[%s260 + $0x250] sm:$0xff]
        %v417 = vld [vmem:[%s260 + $0x258] sm:$0xff]
        %v418 = vld [vmem:[%s260 + $0x260] sm:$0xff]
        %v419 = vld [vmem:[%s260 + $0x268] sm:$0xff]
        %v420 = vld [vmem:[%s260 + $0x270] sm:$0xff]
        %v421 = vld [vmem:[%s260 + $0x278] sm:$0xff]
        %v422 = vld [vmem:[%s260 + $0x280] sm:$0xff]
        %v423 = vld [vmem:[%s260 + $0x288] sm:$0xff]
        %v424 = vld [vmem:[%s260 + $0x290] sm:$0xff]
        %v425 = vld [vmem:[%s260 + $0x298] sm:$0xff]
        %v426 = vld [vmem:[%s260 + $0x2a0] sm:$0xff]
        %v427 = vld [vmem:[%s260 + $0x2a8] sm:$0xff]
        %v428 = vld [vmem:[%s260 + $0x2b0] sm:$0xff]
        %v429 = vld [vmem:[%s260 + $0x2b8] sm:$0xff]
        %v430 = vld [vmem:[%s260 + $0x2c0] sm:$0xff]
        %v431 = vld [vmem:[%s260 + $0x2c8] sm:$0xff]
        %v432 = vld [vmem:[%s260 + $0x2d0] sm:$0xff]
        %v433 = vld [vmem:[%s260 + $0x2d8] sm:$0xff]
        %v434 = vld [vmem:[%s260 + $0x2e0] sm:$0xff]
        %v435 = vld [vmem:[%s260 + $0x2e8] sm:$0xff]
        %v436 = vld [vmem:[%s260 + $0x2f0] sm:$0xff]
        %v437 = vld [vmem:[%s260 + $0x2f8] sm:$0xff]
        %v438 = vld [vmem:[%s260 + $0x300] sm:$0xff]
        %v439 = vld [vmem:[%s260 + $0x308] sm:$0xff]
        %v440 = vld [vmem:[%s260 + $0x310] sm:$0xff]
        %v441 = vld [vmem:[%s260 + $0x318] sm:$0xff]
        %v442 = vld [vmem:[%s260 + $0x320] sm:$0xff]
        %v443 = vld [vmem:[%s260 + $0x328] sm:$0xff]
        %v444 = vld [vmem:[%s260 + $0x330] sm:$0xff]
        %v445 = vld [vmem:[%s260 + $0x338] sm:$0xff]
        %v446 = vld [vmem:[%s260 + $0x340] sm:$0xff]
        %v447 = vld [vmem:[%s260 + $0x348] sm:$0xff]
        %v448 = vld [vmem:[%s260 + $0x350] sm:$0xff]
        %v449 = vld [vmem:[%s260 + $0x358] sm:$0xff]
        %v450 = vld [vmem:[%s260 + $0x360] sm:$0xff]
        %v451 = vld [vmem:[%s260 + $0x368] sm:$0xff]
        %v452 = vld [vmem:[%s260 + $0x370] sm:$0xff]
        %v453 = vld [vmem:[%s260 + $0x378] sm:$0xff]
        %v454 = vld [vmem:[%s260 + $0x380] sm:$0xff]
        %v455 = vld [vmem:[%s260 + $0x388] sm:$0xff]
        %v456 = vld [vmem:[%s260 + $0x390] sm:$0xff]
        %v457 = vld [vmem:[%s260 + $0x398] sm:$0xff]
        %v458 = vld [vmem:[%s260 + $0x3a0] sm:$0xff]
        %v459 = vld [vmem:[%s260 + $0x3a8] sm:$0xff]
        %v460 = vld [vmem:[%s260 + $0x3b0] sm:$0xff]
        %v461 = vld [vmem:[%s260 + $0x3b8] sm:$0xff]
        %v462 = vld [vmem:[%s260 + $0x3c0] sm:$0xff]
        %v463 = vld [vmem:[%s260 + $0x3c8] sm:$0xff]
        %v464 = vld [vmem:[%s260 + $0x3d0] sm:$0xff]
        %v465 = vld [vmem:[%s260 + $0x3d8] sm:$0xff]
        %v466 = vld [vmem:[%s260 + $0x3e0] sm:$0xff]
        %v467 = vld [vmem:[%s260 + $0x3e8] sm:$0xff]
        %v468 = vld [vmem:[%s260 + $0x3f0] sm:$0xff]
        %v469 = vld [vmem:[%s260 + $0x3f8] sm:$0xff]
        %v470 = vld [vmem:[%s260 + $0x400] sm:$0xff]
        %v471 = vld [vmem:[%s260 + $0x408] sm:$0xff]
        %v472 = vld [vmem:[%s260 + $0x410] sm:$0xff]
        %v473 = vld [vmem:[%s260 + $0x418] sm:$0xff]
        %v474 = vld [vmem:[%s260 + $0x420] sm:$0xff]
        %v475 = vld [vmem:[%s260 + $0x428] sm:$0xff]
        %v476 = vld [vmem:[%s260 + $0x430] sm:$0xff]
        %v477 = vld [vmem:[%s260 + $0x438] sm:$0xff]
        %v478 = vld [vmem:[%s260 + $0x440] sm:$0xff]
        %v479 = vld [vmem:[%s260 + $0x448] sm:$0xff]
        %v480 = vld [vmem:[%s260 + $0x450] sm:$0xff]
        %v481 = vld [vmem:[%s260 + $0x458] sm:$0xff]
        %v482 = vld [vmem:[%s260 + $0x460] sm:$0xff]
        %v483 = vld [vmem:[%s260 + $0x468] sm:$0xff]
        %v484 = vld [vmem:[%s260 + $0x470] sm:$0xff]
        %v485 = vld [vmem:[%s260 + $0x478] sm:$0xff]
        %v486 = vld [vmem:[%s260 + $0x480] sm:$0xff]
        %v487 = vld [vmem:[%s260 + $0x488] sm:$0xff]
        %v488 = vld [vmem:[%s260 + $0x490] sm:$0xff]
        %v489 = vld [vmem:[%s260 + $0x498] sm:$0xff]
        %v490 = vld [vmem:[%s260 + $0x4a0] sm:$0xff]
        %v491 = vld [vmem:[%s260 + $0x4a8] sm:$0xff]
        %v492 = vld [vmem:[%s260 + $0x4b0] sm:$0xff]
        %v493 = vld [vmem:[%s260 + $0x4b8] sm:$0xff]
        %v494 = vld [vmem:[%s260 + $0x4c0] sm:$0xff]
        %v495 = vld [vmem:[%s260 + $0x4c8] sm:$0xff]
        %v496 = vld [vmem:[%s260 + $0x4d0] sm:$0xff]
        %v497 = vld [vmem:[%s260 + $0x4d8] sm:$0xff]
        %v498 = vld [vmem:[%s260 + $0x4e0] sm:$0xff]
        %v499 = vld [vmem:[%s260 + $0x4e8] sm:$0xff]
        %v500 = vld [vmem:[%s260 + $0x4f0] sm:$0xff]
        %v501 = vld [vmem:[%s260 + $0x4f8] sm:$0xff]
        %v502 = vld [vmem:[%s260 + $0x500] sm:$0xff]
        %v503 = vld [vmem:[%s260 + $0x508] sm:$0xff]
        %v504 = vld [vmem:[%s260 + $0x510] sm:$0xff]
        %v505 = vld [vmem:[%s260 + $0x518] sm:$0xff]
        %v506 = vld [vmem:[%s260 + $0x520] sm:$0xff]
        %v507 = vld [vmem:[%s260 + $0x528] sm:$0xff]
        %v508 = vld [vmem:[%s260 + $0x530] sm:$0xff]
        %v509 = vld [vmem:[%s260 + $0x538] sm:$0xff]
        %v510 = vld [vmem:[%s260 + $0x540] sm:$0xff]
        %v511 = vld [vmem:[%s260 + $0x548] sm:$0xff]
        %v512 = vld [vmem:[%s260 + $0x550] sm:$0xff]
        %v513 = vld [vmem:[%s260 + $0x558] sm:$0xff]
        %v514 = vld [vmem:[%s260 + $0x560] sm:$0xff]
        %v515 = vld [vmem:[%s260 + $0x568] sm:$0xff]
        %v516 = vld [vmem:[%s260 + $0x570] sm:$0xff]
        %v517 = vld [vmem:[%s260 + $0x578] sm:$0xff]
        %v518 = vld [vmem:[%s260 + $0x580] sm:$0xff]
        %v519 = vld [vmem:[%s260 + $0x588] sm:$0xff]
        %v520 = vld [vmem:[%s260 + $0x590] sm:$0xff]
        %v521 = vld [vmem:[%s260 + $0x598] sm:$0xff]
        %v522 = vld [vmem:[%s260 + $0x5a0] sm:$0xff]
        %v523 = vld [vmem:[%s260 + $0x5a8] sm:$0xff]
        %v524 = vld [vmem:[%s260 + $0x5b0] sm:$0xff]
        %v525 = vld [vmem:[%s260 + $0x5b8] sm:$0xff]
        %v526 = vld [vmem:[%s260 + $0x5c0] sm:$0xff]
        %v527 = vld [vmem:[%s260 + $0x5c8] sm:$0xff]
        %v528 = vld [vmem:[%s260 + $0x5d0] sm:$0xff]
        %v529 = vld [vmem:[%s260 + $0x5d8] sm:$0xff]
        %v530 = vld [vmem:[%s260 + $0x5e0] sm:$0xff]
        %v531 = vld [vmem:[%s260 + $0x5e8] sm:$0xff]
        %v532 = vld [vmem:[%s260 + $0x5f0] sm:$0xff]
        %v533 = vld [vmem:[%s260 + $0x5f8] sm:$0xff]
        %v534 = vld [vmem:[%s260 + $0x600] sm:$0xff]
        %v535 = vld [vmem:[%s260 + $0x608] sm:$0xff]
        %v536 = vld [vmem:[%s260 + $0x610] sm:$0xff]
        %v537 = vld [vmem:[%s260 + $0x618] sm:$0xff]
        %v538 = vld [vmem:[%s260 + $0x620] sm:$0xff]
        %v539 = vld [vmem:[%s260 + $0x628] sm:$0xff]
        %v540 = vld [vmem:[%s260 + $0x630] sm:$0xff]
        %v541 = vld [vmem:[%s260 + $0x638] sm:$0xff]
        %v542 = vld [vmem:[%s260 + $0x640] sm:$0xff]
        %v543 = vld [vmem:[%s260 + $0x648] sm:$0xff]
        %v544 = vld [vmem:[%s260 + $0x650] sm:$0xff]
        %v545 = vld [vmem:[%s260 + $0x658] sm:$0xff]
        %v546 = vld [vmem:[%s260 + $0x660] sm:$0xff]
        %v547 = vld [vmem:[%s260 + $0x668] sm:$0xff]
        %v548 = vld [vmem:[%s260 + $0x670] sm:$0xff]
        %v549 = vld [vmem:[%s260 + $0x678] sm:$0xff]
        %v550 = vld [vmem:[%s260 + $0x680] sm:$0xff]
        %v551 = vld [vmem:[%s260 + $0x688] sm:$0xff]
        %v552 = vld [vmem:[%s260 + $0x690] sm:$0xff]
        %v553 = vld [vmem:[%s260 + $0x698] sm:$0xff]
        %v554 = vld [vmem:[%s260 + $0x6a0] sm:$0xff]
        %v555 = vld [vmem:[%s260 + $0x6a8] sm:$0xff]
        %v556 = vld [vmem:[%s260 + $0x6b0] sm:$0xff]
        %v557 = vld [vmem:[%s260 + $0x6b8] sm:$0xff]
        %v558 = vld [vmem:[%s260 + $0x6c0] sm:$0xff]
        %v559 = vld [vmem:[%s260 + $0x6c8] sm:$0xff]
        %v560 = vld [vmem:[%s260 + $0x6d0] sm:$0xff]
        %v561 = vld [vmem:[%s260 + $0x6d8] sm:$0xff]
        %v562 = vld [vmem:[%s260 + $0x6e0] sm:$0xff]
        %v563 = vld [vmem:[%s260 + $0x6e8] sm:$0xff]
        %v564 = vld [vmem:[%s260 + $0x6f0] sm:$0xff]
        %v565 = vld [vmem:[%s260 + $0x6f8] sm:$0xff]
        %v566 = vld [vmem:[%s260 + $0x700] sm:$0xff]
        %v567 = vld [vmem:[%s260 + $0x708] sm:$0xff]
        %v568 = vld [vmem:[%s260 + $0x710] sm:$0xff]
        %v569 = vld [vmem:[%s260 + $0x718] sm:$0xff]
        %v570 = vld [vmem:[%s260 + $0x720] sm:$0xff]
        %v571 = vld [vmem:[%s260 + $0x728] sm:$0xff]
        %v572 = vld [vmem:[%s260 + $0x730] sm:$0xff]
        %v573 = vld [vmem:[%s260 + $0x738] sm:$0xff]
        %v574 = vld [vmem:[%s260 + $0x740] sm:$0xff]
        %v575 = vld [vmem:[%s260 + $0x748] sm:$0xff]
        %v576 = vld [vmem:[%s260 + $0x750] sm:$0xff]
        %v577 = vld [vmem:[%s260 + $0x758] sm:$0xff]
        %v578 = vld [vmem:[%s260 + $0x760] sm:$0xff]
        %v579 = vld [vmem:[%s260 + $0x768] sm:$0xff]
        %v580 = vld [vmem:[%s260 + $0x770] sm:$0xff]
        %v581 = vld [vmem:[%s260 + $0x778] sm:$0xff]
        %v582 = vld [vmem:[%s260 + $0x780] sm:$0xff]
        %v583 = vld [vmem:[%s260 + $0x788] sm:$0xff]
        %v584 = vld [vmem:[%s260 + $0x790] sm:$0xff]
        %v585 = vld [vmem:[%s260 + $0x798] sm:$0xff]
        %v586 = vld [vmem:[%s260 + $0x7a0] sm:$0xff]
        %v587 = vld [vmem:[%s260 + $0x7a8] sm:$0xff]
        %v588 = vld [vmem:[%s260 + $0x7b0] sm:$0xff]
        %v589 = vld [vmem:[%s260 + $0x7b8] sm:$0xff]
        %v590 = vld [vmem:[%s260 + $0x7c0] sm:$0xff]
        %v591 = vld [vmem:[%s260 + $0x7c8] sm:$0xff]
        %v592 = vld [vmem:[%s260 + $0x7d0] sm:$0xff]
        %v593 = vld [vmem:[%s260 + $0x7d8] sm:$0xff]
        %v594 = vld [vmem:[%s260 + $0x7e0] sm:$0xff]
        %v595 = vld [vmem:[%s260 + $0x7e8] sm:$0xff]
        %v596 = vld [vmem:[%s260 + $0x7f0] sm:$0xff]
        %v597 = vld [vmem:[%s260 + $0x7f8] sm:$0xff]
        %v598 = vld [vmem:[%s260 + $0x800] sm:$0xff]
        %v599 = vld [vmem:[%s260 + $0x808] sm:$0xff]
        %v600 = vld [vmem:[%s260 + $0x810] sm:$0xff]
        %v601 = vld [vmem:[%s260 + $0x818] sm:$0xff]
        %v602 = vld [vmem:[%s260 + $0x820] sm:$0xff]
        %v603 = vld [vmem:[%s260 + $0x828] sm:$0xff]
        %v604 = vld [vmem:[%s260 + $0x830] sm:$0xff]
        %v605 = vld [vmem:[%s260 + $0x838] sm:$0xff]
        %v606 = vld [vmem:[%s260 + $0x840] sm:$0xff]
        %v607 = vld [vmem:[%s260 + $0x848] sm:$0xff]
        %v608 = vld [vmem:[%s260 + $0x850] sm:$0xff]
        %v609 = vld [vmem:[%s260 + $0x858] sm:$0xff]
        %v610 = vld [vmem:[%s260 + $0x860] sm:$0xff]
        %v611 = vld [vmem:[%s260 + $0x868] sm:$0xff]
        %v612 = vld [vmem:[%s260 + $0x870] sm:$0xff]
        %v613 = vld [vmem:[%s260 + $0x878] sm:$0xff]
        %v614 = vld [vmem:[%s260 + $0x880] sm:$0xff]
        %v615 = vld [vmem:[%s260 + $0x888] sm:$0xff]
        %v616 = vld [vmem:[%s260 + $0x890] sm:$0xff]
        %v617 = vld [vmem:[%s260 + $0x898] sm:$0xff]
        %v618 = vld [vmem:[%s260 + $0x8a0] sm:$0xff]
        %v619 = vld [vmem:[%s260 + $0x8a8] sm:$0xff]
        %v620 = vld [vmem:[%s260 + $0x8b0] sm:$0xff]
        %v621 = vld [vmem:[%s260 + $0x8b8] sm:$0xff]
        %v622 = vld [vmem:[%s260 + $0x8c0] sm:$0xff]
        %v623 = vld [vmem:[%s260 + $0x8c8] sm:$0xff]
        %v624 = vld [vmem:[%s260 + $0x8d0] sm:$0xff]
        %v625 = vld [vmem:[%s260 + $0x8d8] sm:$0xff]
        %v626 = vld [vmem:[%s260 + $0x8e0] sm:$0xff]
        %v627 = vld [vmem:[%s260 + $0x8e8] sm:$0xff]
        %v628 = vld [vmem:[%s260 + $0x8f0] sm:$0xff]
        %v629 = vld [vmem:[%s260 + $0x8f8] sm:$0xff]
        %v630 = vld [vmem:[%s260 + $0x900] sm:$0xff]
        %v631 = vld [vmem:[%s260 + $0x908] sm:$0xff]
        %v632 = vld [vmem:[%s260 + $0x910] sm:$0xff]
        %v633 = vld [vmem:[%s260 + $0x918] sm:$0xff]
        %v634 = vld [vmem:[%s260 + $0x920] sm:$0xff]
        %v635 = vld [vmem:[%s260 + $0x928] sm:$0xff]
        %v636 = vld [vmem:[%s260 + $0x930] sm:$0xff]
        %v637 = vld [vmem:[%s260 + $0x938] sm:$0xff]
        %v638 = vld [vmem:[%s260 + $0x940] sm:$0xff]
        %v639 = vld [vmem:[%s260 + $0x948] sm:$0xff]
        %v640 = vld [vmem:[%s260 + $0x950] sm:$0xff]
        %v641 = vld [vmem:[%s260 + $0x958] sm:$0xff]
        %v642 = vld [vmem:[%s260 + $0x960] sm:$0xff]
        %v643 = vld [vmem:[%s260 + $0x968] sm:$0xff]
        %v644 = vld [vmem:[%s260 + $0x970] sm:$0xff]
        %v645 = vld [vmem:[%s260 + $0x978] sm:$0xff]
        %v646 = vld [vmem:[%s260 + $0x980] sm:$0xff]
        %v647 = vld [vmem:[%s260 + $0x988] sm:$0xff]
        %v648 = vld [vmem:[%s260 + $0x990] sm:$0xff]
        %v649 = vld [vmem:[%s260 + $0x998] sm:$0xff]
        %v650 = vld [vmem:[%s260 + $0x9a0] sm:$0xff]
        %v651 = vld [vmem:[%s260 + $0x9a8] sm:$0xff]
        %v652 = vld [vmem:[%s260 + $0x9b0] sm:$0xff]
        %v653 = vld [vmem:[%s260 + $0x9b8] sm:$0xff]
        %v654 = vld [vmem:[%s260 + $0x9c0] sm:$0xff]
        %v655 = vld [vmem:[%s260 + $0x9c8] sm:$0xff]
        %v656 = vld [vmem:[%s260 + $0x9d0] sm:$0xff]
        %v657 = vld [vmem:[%s260 + $0x9d8] sm:$0xff]
        %v658 = vld [vmem:[%s260 + $0x9e0] sm:$0xff]
        %v659 = vld [vmem:[%s260 + $0x9e8] sm:$0xff]
        %v660 = vld [vmem:[%s260 + $0x9f0] sm:$0xff]
        %v661 = vld [vmem:[%s260 + $0x9f8] sm:$0xff]
        %v662 = vld [vmem:[%s260 + $0xa00] sm:$0xff]
        %v663 = vld [vmem:[%s260 + $0xa08] sm:$0xff]
        %v664 = vld [vmem:[%s260 + $0xa10] sm:$0xff]
        %v665 = vld [vmem:[%s260 + $0xa18] sm:$0xff]
        %v666 = vld [vmem:[%s260 + $0xa20] sm:$0xff]
        %v667 = vld [vmem:[%s260 + $0xa28] sm:$0xff]
        %v668 = vld [vmem:[%s260 + $0xa30] sm:$0xff]
        %v669 = vld [vmem:[%s260 + $0xa38] sm:$0xff]
        %v670 = vld [vmem:[%s260 + $0xa40] sm:$0xff]
        %v671 = vld [vmem:[%s260 + $0xa48] sm:$0xff]
        %v672 = vld [vmem:[%s260 + $0xa50] sm:$0xff]
        %v673 = vld [vmem:[%s260 + $0xa58] sm:$0xff]
        %v674 = vld [vmem:[%s260 + $0xa60] sm:$0xff]
        %v675 = vld [vmem:[%s260 + $0xa68] sm:$0xff]
        %v676 = vld [vmem:[%s260 + $0xa70] sm:$0xff]
        %v677 = vld [vmem:[%s260 + $0xa78] sm:$0xff]
        %v678 = vld [vmem:[%s260 + $0xa80] sm:$0xff]
        %v679 = vld [vmem:[%s260 + $0xa88] sm:$0xff]
        %v680 = vld [vmem:[%s260 + $0xa90] sm:$0xff]
        %v681 = vld [vmem:[%s260 + $0xa98] sm:$0xff]
        %v682 = vld [vmem:[%s260 + $0xaa0] sm:$0xff]
        %v683 = vld [vmem:[%s260 + $0xaa8] sm:$0xff]
        %v684 = vld [vmem:[%s260 + $0xab0] sm:$0xff]
        %v685 = vld [vmem:[%s260 + $0xab8] sm:$0xff]
        %v686 = vld [vmem:[%s260 + $0xac0] sm:$0xff]
        %v687 = vld [vmem:[%s260 + $0xac8] sm:$0xff]
        %v688 = vld [vmem:[%s260 + $0xad0] sm:$0xff]
        %v689 = vld [vmem:[%s260 + $0xad8] sm:$0xff]
        %v690 = vld [vmem:[%s260 + $0xae0] sm:$0xff]
        %v691 = vld [vmem:[%s260 + $0xae8] sm:$0xff]
        %v692 = vld [vmem:[%s260 + $0xaf0] sm:$0xff]
        %v693 = vld [vmem:[%s260 + $0xaf8] sm:$0xff]
        %v694 = vld [vmem:[%s260 + $0xb00] sm:$0xff]
        %v695 = vld [vmem:[%s260 + $0xb08] sm:$0xff]
        %v696 = vld [vmem:[%s260 + $0xb10] sm:$0xff]
        %v697 = vld [vmem:[%s260 + $0xb18] sm:$0xff]
        %v698 = vld [vmem:[%s260 + $0xb20] sm:$0xff]
        %v699 = vld [vmem:[%s260 + $0xb28] sm:$0xff]
        %v700 = vld [vmem:[%s260 + $0xb30] sm:$0xff]
        %v701 = vld [vmem:[%s260 + $0xb38] sm:$0xff]
        %v702 = vld [vmem:[%s260 + $0xb40] sm:$0xff]
        %v703 = vld [vmem:[%s260 + $0xb48] sm:$0xff]
        %v704 = vld [vmem:[%s260 + $0xb50] sm:$0xff]
        %v705 = vld [vmem:[%s260 + $0xb58] sm:$0xff]
        %v706 = vld [vmem:[%s260 + $0xb60] sm:$0xff]
        %v707 = vld [vmem:[%s260 + $0xb68] sm:$0xff]
        %v708 = vld [vmem:[%s260 + $0xb70] sm:$0xff]
        %v709 = vld [vmem:[%s260 + $0xb78] sm:$0xff]
        %v710 = vld [vmem:[%s260 + $0xb80] sm:$0xff]
        %v711 = vld [vmem:[%s260 + $0xb88] sm:$0xff]
        %v712 = vld [vmem:[%s260 + $0xb90] sm:$0xff]
        %v713 = vld [vmem:[%s260 + $0xb98] sm:$0xff]
        %v714 = vld [vmem:[%s260 + $0xba0] sm:$0xff]
        %v715 = vld [vmem:[%s260 + $0xba8] sm:$0xff]
        %v716 = vld [vmem:[%s260 + $0xbb0] sm:$0xff]
        %v717 = vld [vmem:[%s260 + $0xbb8] sm:$0xff]
        %v718 = vld [vmem:[%s260 + $0xbc0] sm:$0xff]
        %v719 = vld [vmem:[%s260 + $0xbc8] sm:$0xff]
        %v720 = vld [vmem:[%s260 + $0xbd0] sm:$0xff]
        %v721 = vld [vmem:[%s260 + $0xbd8] sm:$0xff]
        %v722 = vld [vmem:[%s260 + $0xbe0] sm:$0xff]
        %v723 = vld [vmem:[%s260 + $0xbe8] sm:$0xff]
        %v724 = vld [vmem:[%s260 + $0xbf0] sm:$0xff]
        %v725 = vld [vmem:[%s260 + $0xbf8] sm:$0xff]
        %v726 = vld [vmem:[%s260 + $0xc00] sm:$0xff]
        %v727 = vld [vmem:[%s260 + $0xc08] sm:$0xff]
        %v728 = vld [vmem:[%s260 + $0xc10] sm:$0xff]
        %v729 = vld [vmem:[%s260 + $0xc18] sm:$0xff]
        %v730 = vld [vmem:[%s260 + $0xc20] sm:$0xff]
        %v731 = vld [vmem:[%s260 + $0xc28] sm:$0xff]
        %v732 = vld [vmem:[%s260 + $0xc30] sm:$0xff]
        %v733 = vld [vmem:[%s260 + $0xc38] sm:$0xff]
        %v734 = vld [vmem:[%s260 + $0xc40] sm:$0xff]
        %v735 = vld [vmem:[%s260 + $0xc48] sm:$0xff]
        %v736 = vld [vmem:[%s260 + $0xc50] sm:$0xff]
        %v737 = vld [vmem:[%s260 + $0xc58] sm:$0xff]
        %v738 = vld [vmem:[%s260 + $0xc60] sm:$0xff]
        %v739 = vld [vmem:[%s260 + $0xc68] sm:$0xff]
        %v740 = vld [vmem:[%s260 + $0xc70] sm:$0xff]
        %v741 = vld [vmem:[%s260 + $0xc78] sm:$0xff]
        %v742 = vld [vmem:[%s260 + $0xc80] sm:$0xff]
        %v743 = vld [vmem:[%s260 + $0xc88] sm:$0xff]
        %v744 = vld [vmem:[%s260 + $0xc90] sm:$0xff]
        %v745 = vld [vmem:[%s260 + $0xc98] sm:$0xff]
        %v746 = vld [vmem:[%s260 + $0xca0] sm:$0xff]
        %v747 = vld [vmem:[%s260 + $0xca8] sm:$0xff]
        %v748 = vld [vmem:[%s260 + $0xcb0] sm:$0xff]
        %v749 = vld [vmem:[%s260 + $0xcb8] sm:$0xff]
        %v750 = vld [vmem:[%s260 + $0xcc0] sm:$0xff]
        %v751 = vld [vmem:[%s260 + $0xcc8] sm:$0xff]
        %v752 = vld [vmem:[%s260 + $0xcd0] sm:$0xff]
        %v753 = vld [vmem:[%s260 + $0xcd8] sm:$0xff]
        %v754 = vld [vmem:[%s260 + $0xce0] sm:$0xff]
        %v755 = vld [vmem:[%s260 + $0xce8] sm:$0xff]
        %v756 = vld [vmem:[%s260 + $0xcf0] sm:$0xff]
        %v757 = vld [vmem:[%s260 + $0xcf8] sm:$0xff]
        %v758 = vld [vmem:[%s260 + $0xd00] sm:$0xff]
        %v759 = vld [vmem:[%s260 + $0xd08] sm:$0xff]
        %v760 = vld [vmem:[%s260 + $0xd10] sm:$0xff]
        %v761 = vld [vmem:[%s260 + $0xd18] sm:$0xff]
        %v762 = vld [vmem:[%s260 + $0xd20] sm:$0xff]
        %v763 = vld [vmem:[%s260 + $0xd28] sm:$0xff]
        %v764 = vld [vmem:[%s260 + $0xd30] sm:$0xff]
        %v765 = vld [vmem:[%s260 + $0xd38] sm:$0xff]
        %v766 = vld [vmem:[%s260 + $0xd40] sm:$0xff]
        %v767 = vld [vmem:[%s260 + $0xd48] sm:$0xff]
        %v768 = vld [vmem:[%s260 + $0xd50] sm:$0xff]
        %v769 = vld [vmem:[%s260 + $0xd58] sm:$0xff]
        %v770 = vld [vmem:[%s260 + $0xd60] sm:$0xff]
        %v771 = vld [vmem:[%s260 + $0xd68] sm:$0xff]
        %v772 = vld [vmem:[%s260 + $0xd70] sm:$0xff]
        %v773 = vld [vmem:[%s260 + $0xd78] sm:$0xff]
        %v774 = vld [vmem:[%s260 + $0xd80] sm:$0xff]
        %v775 = vld [vmem:[%s260 + $0xd88] sm:$0xff]
        %v776 = vld [vmem:[%s260 + $0xd90] sm:$0xff]
        %v777 = vld [vmem:[%s260 + $0xd98] sm:$0xff]
        %v778 = vld [vmem:[%s260 + $0xda0] sm:$0xff]
        %v779 = vld [vmem:[%s260 + $0xda8] sm:$0xff]
        %v780 = vld [vmem:[%s260 + $0xdb0] sm:$0xff]
        %v781 = vld [vmem:[%s260 + $0xdb8] sm:$0xff]
        %v782 = vld [vmem:[%s260 + $0xdc0] sm:$0xff]
        %v783 = vld [vmem:[%s260 + $0xdc8] sm:$0xff]
        %v784 = vld [vmem:[%s260 + $0xdd0] sm:$0xff]
        %v785 = vld [vmem:[%s260 + $0xdd8] sm:$0xff]
        %v786 = vld [vmem:[%s260 + $0xde0] sm:$0xff]
        %v787 = vld [vmem:[%s260 + $0xde8] sm:$0xff]
        %v788 = vld [vmem:[%s260 + $0xdf0] sm:$0xff]
        %v789 = vld [vmem:[%s260 + $0xdf8] sm:$0xff]
        %v790 = vld [vmem:[%s260 + $0xe00] sm:$0xff]
        %v791 = vld [vmem:[%s260 + $0xe08] sm:$0xff]
        %v792 = vld [vmem:[%s260 + $0xe10] sm:$0xff]
        %v793 = vld [vmem:[%s260 + $0xe18] sm:$0xff]
        %v794 = vld [vmem:[%s260 + $0xe20] sm:$0xff]
        %v795 = vld [vmem:[%s260 + $0xe28] sm:$0xff]
        %v796 = vld [vmem:[%s260 + $0xe30] sm:$0xff]
        %v797 = vld [vmem:[%s260 + $0xe38] sm:$0xff]
        %v798 = vld [vmem:[%s260 + $0xe40] sm:$0xff]
        %v799 = vld [vmem:[%s260 + $0xe48] sm:$0xff]
        %v800 = vld [vmem:[%s260 + $0xe50] sm:$0xff]
        %v801 = vld [vmem:[%s260 + $0xe58] sm:$0xff]
        %v802 = vld [vmem:[%s260 + $0xe60] sm:$0xff]
        %v803 = vld [vmem:[%s260 + $0xe68] sm:$0xff]
        %v804 = vld [vmem:[%s260 + $0xe70] sm:$0xff]
        %v805 = vld [vmem:[%s260 + $0xe78] sm:$0xff]
        %v806 = vld [vmem:[%s260 + $0xe80] sm:$0xff]
        %v807 = vld [vmem:[%s260 + $0xe88] sm:$0xff]
        %v808 = vld [vmem:[%s260 + $0xe90] sm:$0xff]
        %v809 = vld [vmem:[%s260 + $0xe98] sm:$0xff]
        %v810 = vld [vmem:[%s260 + $0xea0] sm:$0xff]
        %v811 = vld [vmem:[%s260 + $0xea8] sm:$0xff]
        %v812 = vld [vmem:[%s260 + $0xeb0] sm:$0xff]
        %v813 = vld [vmem:[%s260 + $0xeb8] sm:$0xff]
        %v814 = vld [vmem:[%s260 + $0xec0] sm:$0xff]
        %v815 = vld [vmem:[%s260 + $0xec8] sm:$0xff]
        %v816 = vld [vmem:[%s260 + $0xed0] sm:$0xff]
        %v817 = vld [vmem:[%s260 + $0xed8] sm:$0xff]
        %v818 = vld [vmem:[%s260 + $0xee0] sm:$0xff]
        %v819 = vld [vmem:[%s260 + $0xee8] sm:$0xff]
        %v820 = vld [vmem:[%s260 + $0xef0] sm:$0xff]
        %v821 = vld [vmem:[%s260 + $0xef8] sm:$0xff]
        %v822 = vld [vmem:[%s260 + $0xf00] sm:$0xff]
        %v823 = vld [vmem:[%s260 + $0xf08] sm:$0xff]
        %v824 = vld [vmem:[%s260 + $0xf10] sm:$0xff]
        %v825 = vld [vmem:[%s260 + $0xf18] sm:$0xff]
        %v826 = vld [vmem:[%s260 + $0xf20] sm:$0xff]
        %v827 = vld [vmem:[%s260 + $0xf28] sm:$0xff]
        %v828 = vld [vmem:[%s260 + $0xf30] sm:$0xff]
        %v829 = vld [vmem:[%s260 + $0xf38] sm:$0xff]
        %v830 = vld [vmem:[%s260 + $0xf40] sm:$0xff]
        %v831 = vld [vmem:[%s260 + $0xf48] sm:$0xff]
        %v832 = vld [vmem:[%s260 + $0xf50] sm:$0xff]
        %v833 = vld [vmem:[%s260 + $0xf58] sm:$0xff]
        %v834 = vld [vmem:[%s260 + $0xf60] sm:$0xff]
        %v835 = vld [vmem:[%s260 + $0xf68] sm:$0xff]
        %v836 = vld [vmem:[%s260 + $0xf70] sm:$0xff]
        %v837 = vld [vmem:[%s260 + $0xf78] sm:$0xff]
        %v838 = vld [vmem:[%s260 + $0xf80] sm:$0xff]
        %v839 = vld [vmem:[%s260 + $0xf88] sm:$0xff]
        %v840 = vld [vmem:[%s260 + $0xf90] sm:$0xff]
        %v841 = vld [vmem:[%s260 + $0xf98] sm:$0xff]
        %v842 = vld [vmem:[%s260 + $0xfa0] sm:$0xff]
        %v843 = vld [vmem:[%s260 + $0xfa8] sm:$0xff]
        %v844 = vld [vmem:[%s260 + $0xfb0] sm:$0xff]
        %v845 = vld [vmem:[%s260 + $0xfb8] sm:$0xff]
        %v846 = vld [vmem:[%s260 + $0xfc0] sm:$0xff]
        %v847 = vld [vmem:[%s260 + $0xfc8] sm:$0xff]
        %v848 = vld [vmem:[%s260 + $0xfd0] sm:$0xff]
        %v849 = vld [vmem:[%s260 + $0xfd8] sm:$0xff]
        %v850 = vld [vmem:[%s260 + $0xfe0] sm:$0xff]
        %v851 = vld [vmem:[%s260 + $0xfe8] sm:$0xff]
        %v852 = vld [vmem:[%s260 + $0xff0] sm:$0xff]
        %v853 = vld [vmem:[%s260 + $0xff8] sm:$0xff]
        %v1366 = vunpack.c.l.b16 %v342
        %v1367 = vunpack.c.h.b16 %v342
        %v1368 = vunpack.c.l.b16 %v343
        %v1369 = vunpack.c.h.b16 %v343
        %v1370 = vunpack.c.l.b16 %v344
        %v1371 = vunpack.c.h.b16 %v344
        %v1372 = vunpack.c.l.b16 %v345
        %v1373 = vunpack.c.h.b16 %v345
        %v1374 = vunpack.c.l.b16 %v346
        %v1375 = vunpack.c.h.b16 %v346
        %v1376 = vunpack.c.l.b16 %v347
        %v1377 = vunpack.c.h.b16 %v347
        %v1378 = vunpack.c.l.b16 %v348
        %v1379 = vunpack.c.h.b16 %v348
        %v1380 = vunpack.c.l.b16 %v349
        %v1381 = vunpack.c.h.b16 %v349
        %v1382 = vunpack.c.l.b16 %v350
        %v1383 = vunpack.c.h.b16 %v350
        %v1384 = vunpack.c.l.b16 %v351
        %v1385 = vunpack.c.h.b16 %v351
        %v1386 = vunpack.c.l.b16 %v352
        %v1387 = vunpack.c.h.b16 %v352
        %v1388 = vunpack.c.l.b16 %v353
        %v1389 = vunpack.c.h.b16 %v353
        %v1390 = vunpack.c.l.b16 %v354
        %v1391 = vunpack.c.h.b16 %v354
        %v1392 = vunpack.c.l.b16 %v355
        %v1393 = vunpack.c.h.b16 %v355
        %v1394 = vunpack.c.l.b16 %v356
        %v1395 = vunpack.c.h.b16 %v356
        %v1396 = vunpack.c.l.b16 %v357
        %v1397 = vunpack.c.h.b16 %v357
        %v1398 = vunpack.c.l.b16 %v358
        %v1399 = vunpack.c.h.b16 %v358
        %v1400 = vunpack.c.l.b16 %v359
        %v1401 = vunpack.c.h.b16 %v359
        %v1402 = vunpack.c.l.b16 %v360
        %v1403 = vunpack.c.h.b16 %v360
        %v1404 = vunpack.c.l.b16 %v361
        %v1405 = vunpack.c.h.b16 %v361
        %v1406 = vunpack.c.l.b16 %v362
        %v1407 = vunpack.c.h.b16 %v362
        %v1408 = vunpack.c.l.b16 %v363
        %v1409 = vunpack.c.h.b16 %v363
        %v1410 = vunpack.c.l.b16 %v364
        %v1411 = vunpack.c.h.b16 %v364
        %v1412 = vunpack.c.l.b16 %v365
        %v1413 = vunpack.c.h.b16 %v365
        %v1414 = vunpack.c.l.b16 %v366
        %v1415 = vunpack.c.h.b16 %v366
        %v1416 = vunpack.c.l.b16 %v367
        %v1417 = vunpack.c.h.b16 %v367
        %v1418 = vunpack.c.l.b16 %v368
        %v1419 = vunpack.c.h.b16 %v368
        %v1420 = vunpack.c.l.b16 %v369
        %v1421 = vunpack.c.h.b16 %v369
        %v1422 = vunpack.c.l.b16 %v370
        %v1423 = vunpack.c.h.b16 %v370
        %v1424 = vunpack.c.l.b16 %v371
        %v1425 = vunpack.c.h.b16 %v371
        %v1426 = vunpack.c.l.b16 %v372
        %v1427 = vunpack.c.h.b16 %v372
        %v1428 = vunpack.c.l.b16 %v373
        %v1429 = vunpack.c.h.b16 %v373
        %v1430 = vunpack.c.l.b16 %v374
        %v1431 = vunpack.c.h.b16 %v374
        %v1432 = vunpack.c.l.b16 %v375
        %v1433 = vunpack.c.h.b16 %v375
        %v1434 = vunpack.c.l.b16 %v376
        %v1435 = vunpack.c.h.b16 %v376
        %v1436 = vunpack.c.l.b16 %v377
        %v1437 = vunpack.c.h.b16 %v377
        %v1438 = vunpack.c.l.b16 %v378
        %v1439 = vunpack.c.h.b16 %v378
        %v1440 = vunpack.c.l.b16 %v379
        %v1441 = vunpack.c.h.b16 %v379
        %v1442 = vunpack.c.l.b16 %v380
        %v1443 = vunpack.c.h.b16 %v380
        %v1444 = vunpack.c.l.b16 %v381
        %v1445 = vunpack.c.h.b16 %v381
        %v1446 = vunpack.c.l.b16 %v382
        %v1447 = vunpack.c.h.b16 %v382
        %v1448 = vunpack.c.l.b16 %v383
        %v1449 = vunpack.c.h.b16 %v383
        %v1450 = vunpack.c.l.b16 %v384
        %v1451 = vunpack.c.h.b16 %v384
        %v1452 = vunpack.c.l.b16 %v385
        %v1453 = vunpack.c.h.b16 %v385
        %v1454 = vunpack.c.l.b16 %v386
        %v1455 = vunpack.c.h.b16 %v386
        %v1456 = vunpack.c.l.b16 %v387
        %v1457 = vunpack.c.h.b16 %v387
        %v1458 = vunpack.c.l.b16 %v388
        %v1459 = vunpack.c.h.b16 %v388
        %v1460 = vunpack.c.l.b16 %v389
        %v1461 = vunpack.c.h.b16 %v389
        %v1462 = vunpack.c.l.b16 %v390
        %v1463 = vunpack.c.h.b16 %v390
        %v1464 = vunpack.c.l.b16 %v391
        %v1465 = vunpack.c.h.b16 %v391
        %v1466 = vunpack.c.l.b16 %v392
        %v1467 = vunpack.c.h.b16 %v392
        %v1468 = vunpack.c.l.b16 %v393
        %v1469 = vunpack.c.h.b16 %v393
        %v1470 = vunpack.c.l.b16 %v394
        %v1471 = vunpack.c.h.b16 %v394
        %v1472 = vunpack.c.l.b16 %v395
        %v1473 = vunpack.c.h.b16 %v395
        %v1474 = vunpack.c.l.b16 %v396
        %v1475 = vunpack.c.h.b16 %v396
        %v1476 = vunpack.c.l.b16 %v397
        %v1477 = vunpack.c.h.b16 %v397
        %v1478 = vunpack.c.l.b16 %v398
        %v1479 = vunpack.c.h.b16 %v398
        %v1480 = vunpack.c.l.b16 %v399
        %v1481 = vunpack.c.h.b16 %v399
        %v1482 = vunpack.c.l.b16 %v400
        %v1483 = vunpack.c.h.b16 %v400
        %v1484 = vunpack.c.l.b16 %v401
        %v1485 = vunpack.c.h.b16 %v401
        %v1486 = vunpack.c.l.b16 %v402
        %v1487 = vunpack.c.h.b16 %v402
        %v1488 = vunpack.c.l.b16 %v403
        %v1489 = vunpack.c.h.b16 %v403
        %v1490 = vunpack.c.l.b16 %v404
        %v1491 = vunpack.c.h.b16 %v404
        %v1492 = vunpack.c.l.b16 %v405
        %v1493 = vunpack.c.h.b16 %v405
        %v1494 = vunpack.c.l.b16 %v406
        %v1495 = vunpack.c.h.b16 %v406
        %v1496 = vunpack.c.l.b16 %v407
        %v1497 = vunpack.c.h.b16 %v407
        %v1498 = vunpack.c.l.b16 %v408
        %v1499 = vunpack.c.h.b16 %v408
        %v1500 = vunpack.c.l.b16 %v409
        %v1501 = vunpack.c.h.b16 %v409
        %v1502 = vunpack.c.l.b16 %v410
        %v1503 = vunpack.c.h.b16 %v410
        %v1504 = vunpack.c.l.b16 %v411
        %v1505 = vunpack.c.h.b16 %v411
        %v1506 = vunpack.c.l.b16 %v412
        %v1507 = vunpack.c.h.b16 %v412
        %v1508 = vunpack.c.l.b16 %v413
        %v1509 = vunpack.c.h.b16 %v413
        %v1510 = vunpack.c.l.b16 %v414
        %v1511 = vunpack.c.h.b16 %v414
        %v1512 = vunpack.c.l.b16 %v415
        %v1513 = vunpack.c.h.b16 %v415
        %v1514 = vunpack.c.l.b16 %v416
        %v1515 = vunpack.c.h.b16 %v416
        %v1516 = vunpack.c.l.b16 %v417
        %v1517 = vunpack.c.h.b16 %v417
        %v1518 = vunpack.c.l.b16 %v418
        %v1519 = vunpack.c.h.b16 %v418
        %v1520 = vunpack.c.l.b16 %v419
        %v1521 = vunpack.c.h.b16 %v419
        %v1522 = vunpack.c.l.b16 %v420
        %v1523 = vunpack.c.h.b16 %v420
        %v1524 = vunpack.c.l.b16 %v421
        %v1525 = vunpack.c.h.b16 %v421
        %v1526 = vunpack.c.l.b16 %v422
        %v1527 = vunpack.c.h.b16 %v422
        %v1528 = vunpack.c.l.b16 %v423
        %v1529 = vunpack.c.h.b16 %v423
        %v1530 = vunpack.c.l.b16 %v424
        %v1531 = vunpack.c.h.b16 %v424
        %v1532 = vunpack.c.l.b16 %v425
        %v1533 = vunpack.c.h.b16 %v425
        %v1534 = vunpack.c.l.b16 %v426
        %v1535 = vunpack.c.h.b16 %v426
        %v1536 = vunpack.c.l.b16 %v427
        %v1537 = vunpack.c.h.b16 %v427
        %v1538 = vunpack.c.l.b16 %v428
        %v1539 = vunpack.c.h.b16 %v428
        %v1540 = vunpack.c.l.b16 %v429
        %v1541 = vunpack.c.h.b16 %v429
        %v1542 = vunpack.c.l.b16 %v430
        %v1543 = vunpack.c.h.b16 %v430
        %v1544 = vunpack.c.l.b16 %v431
        %v1545 = vunpack.c.h.b16 %v431
        %v1546 = vunpack.c.l.b16 %v432
        %v1547 = vunpack.c.h.b16 %v432
        %v1548 = vunpack.c.l.b16 %v433
        %v1549 = vunpack.c.h.b16 %v433
        %v1550 = vunpack.c.l.b16 %v434
        %v1551 = vunpack.c.h.b16 %v434
        %v1552 = vunpack.c.l.b16 %v435
        %v1553 = vunpack.c.h.b16 %v435
        %v1554 = vunpack.c.l.b16 %v436
        %v1555 = vunpack.c.h.b16 %v436
        %v1556 = vunpack.c.l.b16 %v437
        %v1557 = vunpack.c.h.b16 %v437
        %v1558 = vunpack.c.l.b16 %v438
        %v1559 = vunpack.c.h.b16 %v438
        %v1560 = vunpack.c.l.b16 %v439
        %v1561 = vunpack.c.h.b16 %v439
        %v1562 = vunpack.c.l.b16 %v440
        %v1563 = vunpack.c.h.b16 %v440
        %v1564 = vunpack.c.l.b16 %v441
        %v1565 = vunpack.c.h.b16 %v441
        %v1566 = vunpack.c.l.b16 %v442
        %v1567 = vunpack.c.h.b16 %v442
        %v1568 = vunpack.c.l.b16 %v443
        %v1569 = vunpack.c.h.b16 %v443
        %v1570 = vunpack.c.l.b16 %v444
        %v1571 = vunpack.c.h.b16 %v444
        %v1572 = vunpack.c.l.b16 %v445
        %v1573 = vunpack.c.h.b16 %v445
        %v1574 = vunpack.c.l.b16 %v446
        %v1575 = vunpack.c.h.b16 %v446
        %v1576 = vunpack.c.l.b16 %v447
        %v1577 = vunpack.c.h.b16 %v447
        %v1578 = vunpack.c.l.b16 %v448
        %v1579 = vunpack.c.h.b16 %v448
        %v1580 = vunpack.c.l.b16 %v449
        %v1581 = vunpack.c.h.b16 %v449
        %v1582 = vunpack.c.l.b16 %v450
        %v1583 = vunpack.c.h.b16 %v450
        %v1584 = vunpack.c.l.b16 %v451
        %v1585 = vunpack.c.h.b16 %v451
        %v1586 = vunpack.c.l.b16 %v452
        %v1587 = vunpack.c.h.b16 %v452
        %v1588 = vunpack.c.l.b16 %v453
        %v1589 = vunpack.c.h.b16 %v453
        %v1590 = vunpack.c.l.b16 %v454
        %v1591 = vunpack.c.h.b16 %v454
        %v1592 = vunpack.c.l.b16 %v455
        %v1593 = vunpack.c.h.b16 %v455
        %v1594 = vunpack.c.l.b16 %v456
        %v1595 = vunpack.c.h.b16 %v456
        %v1596 = vunpack.c.l.b16 %v457
        %v1597 = vunpack.c.h.b16 %v457
        %v1598 = vunpack.c.l.b16 %v458
        %v1599 = vunpack.c.h.b16 %v458
        %v1600 = vunpack.c.l.b16 %v459
        %v1601 = vunpack.c.h.b16 %v459
        %v1602 = vunpack.c.l.b16 %v460
        %v1603 = vunpack.c.h.b16 %v460
        %v1604 = vunpack.c.l.b16 %v461
        %v1605 = vunpack.c.h.b16 %v461
        %v1606 = vunpack.c.l.b16 %v462
        %v1607 = vunpack.c.h.b16 %v462
        %v1608 = vunpack.c.l.b16 %v463
        %v1609 = vunpack.c.h.b16 %v463
        %v1610 = vunpack.c.l.b16 %v464
        %v1611 = vunpack.c.h.b16 %v464
        %v1612 = vunpack.c.l.b16 %v465
        %v1613 = vunpack.c.h.b16 %v465
        %v1614 = vunpack.c.l.b16 %v466
        %v1615 = vunpack.c.h.b16 %v466
        %v1616 = vunpack.c.l.b16 %v467
        %v1617 = vunpack.c.h.b16 %v467
        %v1618 = vunpack.c.l.b16 %v468
        %v1619 = vunpack.c.h.b16 %v468
        %v1620 = vunpack.c.l.b16 %v469
        %v1621 = vunpack.c.h.b16 %v469
        %v1622 = vunpack.c.l.b16 %v470
        %v1623 = vunpack.c.h.b16 %v470
        %v1624 = vunpack.c.l.b16 %v471
        %v1625 = vunpack.c.h.b16 %v471
        %v1626 = vunpack.c.l.b16 %v472
        %v1627 = vunpack.c.h.b16 %v472
        %v1628 = vunpack.c.l.b16 %v473
        %v1629 = vunpack.c.h.b16 %v473
        %v1630 = vunpack.c.l.b16 %v474
        %v1631 = vunpack.c.h.b16 %v474
        %v1632 = vunpack.c.l.b16 %v475
        %v1633 = vunpack.c.h.b16 %v475
        %v1634 = vunpack.c.l.b16 %v476
        %v1635 = vunpack.c.h.b16 %v476
        %v1636 = vunpack.c.l.b16 %v477
        %v1637 = vunpack.c.h.b16 %v477
        %v1638 = vunpack.c.l.b16 %v478
        %v1639 = vunpack.c.h.b16 %v478
        %v1640 = vunpack.c.l.b16 %v479
        %v1641 = vunpack.c.h.b16 %v479
        %v1642 = vunpack.c.l.b16 %v480
        %v1643 = vunpack.c.h.b16 %v480
        %v1644 = vunpack.c.l.b16 %v481
        %v1645 = vunpack.c.h.b16 %v481
        %v1646 = vunpack.c.l.b16 %v482
        %v1647 = vunpack.c.h.b16 %v482
        %v1648 = vunpack.c.l.b16 %v483
        %v1649 = vunpack.c.h.b16 %v483
        %v1650 = vunpack.c.l.b16 %v484
        %v1651 = vunpack.c.h.b16 %v484
        %v1652 = vunpack.c.l.b16 %v485
        %v1653 = vunpack.c.h.b16 %v485
        %v1654 = vunpack.c.l.b16 %v486
        %v1655 = vunpack.c.h.b16 %v486
        %v1656 = vunpack.c.l.b16 %v487
        %v1657 = vunpack.c.h.b16 %v487
        %v1658 = vunpack.c.l.b16 %v488
        %v1659 = vunpack.c.h.b16 %v488
        %v1660 = vunpack.c.l.b16 %v489
        %v1661 = vunpack.c.h.b16 %v489
        %v1662 = vunpack.c.l.b16 %v490
        %v1663 = vunpack.c.h.b16 %v490
        %v1664 = vunpack.c.l.b16 %v491
        %v1665 = vunpack.c.h.b16 %v491
        %v1666 = vunpack.c.l.b16 %v492
        %v1667 = vunpack.c.h.b16 %v492
        %v1668 = vunpack.c.l.b16 %v493
        %v1669 = vunpack.c.h.b16 %v493
        %v1670 = vunpack.c.l.b16 %v494
        %v1671 = vunpack.c.h.b16 %v494
        %v1672 = vunpack.c.l.b16 %v495
        %v1673 = vunpack.c.h.b16 %v495
        %v1674 = vunpack.c.l.b16 %v496
        %v1675 = vunpack.c.h.b16 %v496
        %v1676 = vunpack.c.l.b16 %v497
        %v1677 = vunpack.c.h.b16 %v497
        %v1678 = vunpack.c.l.b16 %v498
        %v1679 = vunpack.c.h.b16 %v498
        %v1680 = vunpack.c.l.b16 %v499
        %v1681 = vunpack.c.h.b16 %v499
        %v1682 = vunpack.c.l.b16 %v500
        %v1683 = vunpack.c.h.b16 %v500
        %v1684 = vunpack.c.l.b16 %v501
        %v1685 = vunpack.c.h.b16 %v501
        %v1686 = vunpack.c.l.b16 %v502
        %v1687 = vunpack.c.h.b16 %v502
        %v1688 = vunpack.c.l.b16 %v503
        %v1689 = vunpack.c.h.b16 %v503
        %v1690 = vunpack.c.l.b16 %v504
        %v1691 = vunpack.c.h.b16 %v504
        %v1692 = vunpack.c.l.b16 %v505
        %v1693 = vunpack.c.h.b16 %v505
        %v1694 = vunpack.c.l.b16 %v506
        %v1695 = vunpack.c.h.b16 %v506
        %v1696 = vunpack.c.l.b16 %v507
        %v1697 = vunpack.c.h.b16 %v507
        %v1698 = vunpack.c.l.b16 %v508
        %v1699 = vunpack.c.h.b16 %v508
        %v1700 = vunpack.c.l.b16 %v509
        %v1701 = vunpack.c.h.b16 %v509
        %v1702 = vunpack.c.l.b16 %v510
        %v1703 = vunpack.c.h.b16 %v510
        %v1704 = vunpack.c.l.b16 %v511
        %v1705 = vunpack.c.h.b16 %v511
        %v1706 = vunpack.c.l.b16 %v512
        %v1707 = vunpack.c.h.b16 %v512
        %v1708 = vunpack.c.l.b16 %v513
        %v1709 = vunpack.c.h.b16 %v513
        %v1710 = vunpack.c.l.b16 %v514
        %v1711 = vunpack.c.h.b16 %v514
        %v1712 = vunpack.c.l.b16 %v515
        %v1713 = vunpack.c.h.b16 %v515
        %v1714 = vunpack.c.l.b16 %v516
        %v1715 = vunpack.c.h.b16 %v516
        %v1716 = vunpack.c.l.b16 %v517
        %v1717 = vunpack.c.h.b16 %v517
        %v1718 = vunpack.c.l.b16 %v518
        %v1719 = vunpack.c.h.b16 %v518
        %v1720 = vunpack.c.l.b16 %v519
        %v1721 = vunpack.c.h.b16 %v519
        %v1722 = vunpack.c.l.b16 %v520
        %v1723 = vunpack.c.h.b16 %v520
        %v1724 = vunpack.c.l.b16 %v521
        %v1725 = vunpack.c.h.b16 %v521
        %v1726 = vunpack.c.l.b16 %v522
        %v1727 = vunpack.c.h.b16 %v522
        %v1728 = vunpack.c.l.b16 %v523
        %v1729 = vunpack.c.h.b16 %v523
        %v1730 = vunpack.c.l.b16 %v524
        %v1731 = vunpack.c.h.b16 %v524
        %v1732 = vunpack.c.l.b16 %v525
        %v1733 = vunpack.c.h.b16 %v525
        %v1734 = vunpack.c.l.b16 %v526
        %v1735 = vunpack.c.h.b16 %v526
        %v1736 = vunpack.c.l.b16 %v527
        %v1737 = vunpack.c.h.b16 %v527
        %v1738 = vunpack.c.l.b16 %v528
        %v1739 = vunpack.c.h.b16 %v528
        %v1740 = vunpack.c.l.b16 %v529
        %v1741 = vunpack.c.h.b16 %v529
        %v1742 = vunpack.c.l.b16 %v530
        %v1743 = vunpack.c.h.b16 %v530
        %v1744 = vunpack.c.l.b16 %v531
        %v1745 = vunpack.c.h.b16 %v531
        %v1746 = vunpack.c.l.b16 %v532
        %v1747 = vunpack.c.h.b16 %v532
        %v1748 = vunpack.c.l.b16 %v533
        %v1749 = vunpack.c.h.b16 %v533
        %v1750 = vunpack.c.l.b16 %v534
        %v1751 = vunpack.c.h.b16 %v534
        %v1752 = vunpack.c.l.b16 %v535
        %v1753 = vunpack.c.h.b16 %v535
        %v1754 = vunpack.c.l.b16 %v536
        %v1755 = vunpack.c.h.b16 %v536
        %v1756 = vunpack.c.l.b16 %v537
        %v1757 = vunpack.c.h.b16 %v537
        %v1758 = vunpack.c.l.b16 %v538
        %v1759 = vunpack.c.h.b16 %v538
        %v1760 = vunpack.c.l.b16 %v539
        %v1761 = vunpack.c.h.b16 %v539
        %v1762 = vunpack.c.l.b16 %v540
        %v1763 = vunpack.c.h.b16 %v540
        %v1764 = vunpack.c.l.b16 %v541
        %v1765 = vunpack.c.h.b16 %v541
        %v1766 = vunpack.c.l.b16 %v542
        %v1767 = vunpack.c.h.b16 %v542
        %v1768 = vunpack.c.l.b16 %v543
        %v1769 = vunpack.c.h.b16 %v543
        %v1770 = vunpack.c.l.b16 %v544
        %v1771 = vunpack.c.h.b16 %v544
        %v1772 = vunpack.c.l.b16 %v545
        %v1773 = vunpack.c.h.b16 %v545
        %v1774 = vunpack.c.l.b16 %v546
        %v1775 = vunpack.c.h.b16 %v546
        %v1776 = vunpack.c.l.b16 %v547
        %v1777 = vunpack.c.h.b16 %v547
        %v1778 = vunpack.c.l.b16 %v548
        %v1779 = vunpack.c.h.b16 %v548
        %v1780 = vunpack.c.l.b16 %v549
        %v1781 = vunpack.c.h.b16 %v549
        %v1782 = vunpack.c.l.b16 %v550
        %v1783 = vunpack.c.h.b16 %v550
        %v1784 = vunpack.c.l.b16 %v551
        %v1785 = vunpack.c.h.b16 %v551
        %v1786 = vunpack.c.l.b16 %v552
        %v1787 = vunpack.c.h.b16 %v552
        %v1788 = vunpack.c.l.b16 %v553
        %v1789 = vunpack.c.h.b16 %v553
        %v1790 = vunpack.c.l.b16 %v554
        %v1791 = vunpack.c.h.b16 %v554
        %v1792 = vunpack.c.l.b16 %v555
        %v1793 = vunpack.c.h.b16 %v555
        %v1794 = vunpack.c.l.b16 %v556
        %v1795 = vunpack.c.h.b16 %v556
        %v1796 = vunpack.c.l.b16 %v557
        %v1797 = vunpack.c.h.b16 %v557
        %v1798 = vunpack.c.l.b16 %v558
        %v1799 = vunpack.c.h.b16 %v558
        %v1800 = vunpack.c.l.b16 %v559
        %v1801 = vunpack.c.h.b16 %v559
        %v1802 = vunpack.c.l.b16 %v560
        %v1803 = vunpack.c.h.b16 %v560
        %v1804 = vunpack.c.l.b16 %v561
        %v1805 = vunpack.c.h.b16 %v561
        %v1806 = vunpack.c.l.b16 %v562
        %v1807 = vunpack.c.h.b16 %v562
        %v1808 = vunpack.c.l.b16 %v563
        %v1809 = vunpack.c.h.b16 %v563
        %v1810 = vunpack.c.l.b16 %v564
        %v1811 = vunpack.c.h.b16 %v564
        %v1812 = vunpack.c.l.b16 %v565
        %v1813 = vunpack.c.h.b16 %v565
        %v1814 = vunpack.c.l.b16 %v566
        %v1815 = vunpack.c.h.b16 %v566
        %v1816 = vunpack.c.l.b16 %v567
        %v1817 = vunpack.c.h.b16 %v567
        %v1818 = vunpack.c.l.b16 %v568
        %v1819 = vunpack.c.h.b16 %v568
        %v1820 = vunpack.c.l.b16 %v569
        %v1821 = vunpack.c.h.b16 %v569
        %v1822 = vunpack.c.l.b16 %v570
        %v1823 = vunpack.c.h.b16 %v570
        %v1824 = vunpack.c.l.b16 %v571
        %v1825 = vunpack.c.h.b16 %v571
        %v1826 = vunpack.c.l.b16 %v572
        %v1827 = vunpack.c.h.b16 %v572
        %v1828 = vunpack.c.l.b16 %v573
        %v1829 = vunpack.c.h.b16 %v573
        %v1830 = vunpack.c.l.b16 %v574
        %v1831 = vunpack.c.h.b16 %v574
        %v1832 = vunpack.c.l.b16 %v575
        %v1833 = vunpack.c.h.b16 %v575
        %v1834 = vunpack.c.l.b16 %v576
        %v1835 = vunpack.c.h.b16 %v576
        %v1836 = vunpack.c.l.b16 %v577
        %v1837 = vunpack.c.h.b16 %v577
        %v1838 = vunpack.c.l.b16 %v578
        %v1839 = vunpack.c.h.b16 %v578
        %v1840 = vunpack.c.l.b16 %v579
        %v1841 = vunpack.c.h.b16 %v579
        %v1842 = vunpack.c.l.b16 %v580
        %v1843 = vunpack.c.h.b16 %v580
        %v1844 = vunpack.c.l.b16 %v581
        %v1845 = vunpack.c.h.b16 %v581
        %v1846 = vunpack.c.l.b16 %v582
        %v1847 = vunpack.c.h.b16 %v582
        %v1848 = vunpack.c.l.b16 %v583
        %v1849 = vunpack.c.h.b16 %v583
        %v1850 = vunpack.c.l.b16 %v584
        %v1851 = vunpack.c.h.b16 %v584
        %v1852 = vunpack.c.l.b16 %v585
        %v1853 = vunpack.c.h.b16 %v585
        %v1854 = vunpack.c.l.b16 %v586
        %v1855 = vunpack.c.h.b16 %v586
        %v1856 = vunpack.c.l.b16 %v587
        %v1857 = vunpack.c.h.b16 %v587
        %v1858 = vunpack.c.l.b16 %v588
        %v1859 = vunpack.c.h.b16 %v588
        %v1860 = vunpack.c.l.b16 %v589
        %v1861 = vunpack.c.h.b16 %v589
        %v1862 = vunpack.c.l.b16 %v590
        %v1863 = vunpack.c.h.b16 %v590
        %v1864 = vunpack.c.l.b16 %v591
        %v1865 = vunpack.c.h.b16 %v591
        %v1866 = vunpack.c.l.b16 %v592
        %v1867 = vunpack.c.h.b16 %v592
        %v1868 = vunpack.c.l.b16 %v593
        %v1869 = vunpack.c.h.b16 %v593
        %v1870 = vunpack.c.l.b16 %v594
        %v1871 = vunpack.c.h.b16 %v594
        %v1872 = vunpack.c.l.b16 %v595
        %v1873 = vunpack.c.h.b16 %v595
        %v1874 = vunpack.c.l.b16 %v596
        %v1875 = vunpack.c.h.b16 %v596
        %v1876 = vunpack.c.l.b16 %v597
        %v1877 = vunpack.c.h.b16 %v597
        %v1878 = vunpack.c.l.b16 %v598
        %v1879 = vunpack.c.h.b16 %v598
        %v1880 = vunpack.c.l.b16 %v599
        %v1881 = vunpack.c.h.b16 %v599
        %v1882 = vunpack.c.l.b16 %v600
        %v1883 = vunpack.c.h.b16 %v600
        %v1884 = vunpack.c.l.b16 %v601
        %v1885 = vunpack.c.h.b16 %v601
        %v1886 = vunpack.c.l.b16 %v602
        %v1887 = vunpack.c.h.b16 %v602
        %v1888 = vunpack.c.l.b16 %v603
        %v1889 = vunpack.c.h.b16 %v603
        %v1890 = vunpack.c.l.b16 %v604
        %v1891 = vunpack.c.h.b16 %v604
        %v1892 = vunpack.c.l.b16 %v605
        %v1893 = vunpack.c.h.b16 %v605
        %v1894 = vunpack.c.l.b16 %v606
        %v1895 = vunpack.c.h.b16 %v606
        %v1896 = vunpack.c.l.b16 %v607
        %v1897 = vunpack.c.h.b16 %v607
        %v1898 = vunpack.c.l.b16 %v608
        %v1899 = vunpack.c.h.b16 %v608
        %v1900 = vunpack.c.l.b16 %v609
        %v1901 = vunpack.c.h.b16 %v609
        %v1902 = vunpack.c.l.b16 %v610
        %v1903 = vunpack.c.h.b16 %v610
        %v1904 = vunpack.c.l.b16 %v611
        %v1905 = vunpack.c.h.b16 %v611
        %v1906 = vunpack.c.l.b16 %v612
        %v1907 = vunpack.c.h.b16 %v612
        %v1908 = vunpack.c.l.b16 %v613
        %v1909 = vunpack.c.h.b16 %v613
        %v1910 = vunpack.c.l.b16 %v614
        %v1911 = vunpack.c.h.b16 %v614
        %v1912 = vunpack.c.l.b16 %v615
        %v1913 = vunpack.c.h.b16 %v615
        %v1914 = vunpack.c.l.b16 %v616
        %v1915 = vunpack.c.h.b16 %v616
        %v1916 = vunpack.c.l.b16 %v617
        %v1917 = vunpack.c.h.b16 %v617
        %v1918 = vunpack.c.l.b16 %v618
        %v1919 = vunpack.c.h.b16 %v618
        %v1920 = vunpack.c.l.b16 %v619
        %v1921 = vunpack.c.h.b16 %v619
        %v1922 = vunpack.c.l.b16 %v620
        %v1923 = vunpack.c.h.b16 %v620
        %v1924 = vunpack.c.l.b16 %v621
        %v1925 = vunpack.c.h.b16 %v621
        %v1926 = vunpack.c.l.b16 %v622
        %v1927 = vunpack.c.h.b16 %v622
        %v1928 = vunpack.c.l.b16 %v623
        %v1929 = vunpack.c.h.b16 %v623
        %v1930 = vunpack.c.l.b16 %v624
        %v1931 = vunpack.c.h.b16 %v624
        %v1932 = vunpack.c.l.b16 %v625
        %v1933 = vunpack.c.h.b16 %v625
        %v1934 = vunpack.c.l.b16 %v626
        %v1935 = vunpack.c.h.b16 %v626
        %v1936 = vunpack.c.l.b16 %v627
        %v1937 = vunpack.c.h.b16 %v627
        %v1938 = vunpack.c.l.b16 %v628
        %v1939 = vunpack.c.h.b16 %v628
        %v1940 = vunpack.c.l.b16 %v629
        %v1941 = vunpack.c.h.b16 %v629
        %v1942 = vunpack.c.l.b16 %v630
        %v1943 = vunpack.c.h.b16 %v630
        %v1944 = vunpack.c.l.b16 %v631
        %v1945 = vunpack.c.h.b16 %v631
        %v1946 = vunpack.c.l.b16 %v632
        %v1947 = vunpack.c.h.b16 %v632
        %v1948 = vunpack.c.l.b16 %v633
        %v1949 = vunpack.c.h.b16 %v633
        %v1950 = vunpack.c.l.b16 %v634
        %v1951 = vunpack.c.h.b16 %v634
        %v1952 = vunpack.c.l.b16 %v635
        %v1953 = vunpack.c.h.b16 %v635
        %v1954 = vunpack.c.l.b16 %v636
        %v1955 = vunpack.c.h.b16 %v636
        %v1956 = vunpack.c.l.b16 %v637
        %v1957 = vunpack.c.h.b16 %v637
        %v1958 = vunpack.c.l.b16 %v638
        %v1959 = vunpack.c.h.b16 %v638
        %v1960 = vunpack.c.l.b16 %v639
        %v1961 = vunpack.c.h.b16 %v639
        %v1962 = vunpack.c.l.b16 %v640
        %v1963 = vunpack.c.h.b16 %v640
        %v1964 = vunpack.c.l.b16 %v641
        %v1965 = vunpack.c.h.b16 %v641
        %v1966 = vunpack.c.l.b16 %v642
        %v1967 = vunpack.c.h.b16 %v642
        %v1968 = vunpack.c.l.b16 %v643
        %v1969 = vunpack.c.h.b16 %v643
        %v1970 = vunpack.c.l.b16 %v644
        %v1971 = vunpack.c.h.b16 %v644
        %v1972 = vunpack.c.l.b16 %v645
        %v1973 = vunpack.c.h.b16 %v645
        %v1974 = vunpack.c.l.b16 %v646
        %v1975 = vunpack.c.h.b16 %v646
        %v1976 = vunpack.c.l.b16 %v647
        %v1977 = vunpack.c.h.b16 %v647
        %v1978 = vunpack.c.l.b16 %v648
        %v1979 = vunpack.c.h.b16 %v648
        %v1980 = vunpack.c.l.b16 %v649
        %v1981 = vunpack.c.h.b16 %v649
        %v1982 = vunpack.c.l.b16 %v650
        %v1983 = vunpack.c.h.b16 %v650
        %v1984 = vunpack.c.l.b16 %v651
        %v1985 = vunpack.c.h.b16 %v651
        %v1986 = vunpack.c.l.b16 %v652
        %v1987 = vunpack.c.h.b16 %v652
        %v1988 = vunpack.c.l.b16 %v653
        %v1989 = vunpack.c.h.b16 %v653
        %v1990 = vunpack.c.l.b16 %v654
        %v1991 = vunpack.c.h.b16 %v654
        %v1992 = vunpack.c.l.b16 %v655
        %v1993 = vunpack.c.h.b16 %v655
        %v1994 = vunpack.c.l.b16 %v656
        %v1995 = vunpack.c.h.b16 %v656
        %v1996 = vunpack.c.l.b16 %v657
        %v1997 = vunpack.c.h.b16 %v657
        %v1998 = vunpack.c.l.b16 %v658
        %v1999 = vunpack.c.h.b16 %v658
        %v2000 = vunpack.c.l.b16 %v659
        %v2001 = vunpack.c.h.b16 %v659
        %v2002 = vunpack.c.l.b16 %v660
        %v2003 = vunpack.c.h.b16 %v660
        %v2004 = vunpack.c.l.b16 %v661
        %v2005 = vunpack.c.h.b16 %v661
        %v2006 = vunpack.c.l.b16 %v662
        %v2007 = vunpack.c.h.b16 %v662
        %v2008 = vunpack.c.l.b16 %v663
        %v2009 = vunpack.c.h.b16 %v663
        %v2010 = vunpack.c.l.b16 %v664
        %v2011 = vunpack.c.h.b16 %v664
        %v2012 = vunpack.c.l.b16 %v665
        %v2013 = vunpack.c.h.b16 %v665
        %v2014 = vunpack.c.l.b16 %v666
        %v2015 = vunpack.c.h.b16 %v666
        %v2016 = vunpack.c.l.b16 %v667
        %v2017 = vunpack.c.h.b16 %v667
        %v2018 = vunpack.c.l.b16 %v668
        %v2019 = vunpack.c.h.b16 %v668
        %v2020 = vunpack.c.l.b16 %v669
        %v2021 = vunpack.c.h.b16 %v669
        %v2022 = vunpack.c.l.b16 %v670
        %v2023 = vunpack.c.h.b16 %v670
        %v2024 = vunpack.c.l.b16 %v671
        %v2025 = vunpack.c.h.b16 %v671
        %v2026 = vunpack.c.l.b16 %v672
        %v2027 = vunpack.c.h.b16 %v672
        %v2028 = vunpack.c.l.b16 %v673
        %v2029 = vunpack.c.h.b16 %v673
        %v2030 = vunpack.c.l.b16 %v674
        %v2031 = vunpack.c.h.b16 %v674
        %v2032 = vunpack.c.l.b16 %v675
        %v2033 = vunpack.c.h.b16 %v675
        %v2034 = vunpack.c.l.b16 %v676
        %v2035 = vunpack.c.h.b16 %v676
        %v2036 = vunpack.c.l.b16 %v677
        %v2037 = vunpack.c.h.b16 %v677
        %v2038 = vunpack.c.l.b16 %v678
        %v2039 = vunpack.c.h.b16 %v678
        %v2040 = vunpack.c.l.b16 %v679
        %v2041 = vunpack.c.h.b16 %v679
        %v2042 = vunpack.c.l.b16 %v680
        %v2043 = vunpack.c.h.b16 %v680
        %v2044 = vunpack.c.l.b16 %v681
        %v2045 = vunpack.c.h.b16 %v681
        %v2046 = vunpack.c.l.b16 %v682
        %v2047 = vunpack.c.h.b16 %v682
        %v2048 = vunpack.c.l.b16 %v683
        %v2049 = vunpack.c.h.b16 %v683
        %v2050 = vunpack.c.l.b16 %v684
        %v2051 = vunpack.c.h.b16 %v684
        %v2052 = vunpack.c.l.b16 %v685
        %v2053 = vunpack.c.h.b16 %v685
        %v2054 = vunpack.c.l.b16 %v686
        %v2055 = vunpack.c.h.b16 %v686
        %v2056 = vunpack.c.l.b16 %v687
        %v2057 = vunpack.c.h.b16 %v687
        %v2058 = vunpack.c.l.b16 %v688
        %v2059 = vunpack.c.h.b16 %v688
        %v2060 = vunpack.c.l.b16 %v689
        %v2061 = vunpack.c.h.b16 %v689
        %v2062 = vunpack.c.l.b16 %v690
        %v2063 = vunpack.c.h.b16 %v690
        %v2064 = vunpack.c.l.b16 %v691
        %v2065 = vunpack.c.h.b16 %v691
        %v2066 = vunpack.c.l.b16 %v692
        %v2067 = vunpack.c.h.b16 %v692
        %v2068 = vunpack.c.l.b16 %v693
        %v2069 = vunpack.c.h.b16 %v693
        %v2070 = vunpack.c.l.b16 %v694
        %v2071 = vunpack.c.h.b16 %v694
        %v2072 = vunpack.c.l.b16 %v695
        %v2073 = vunpack.c.h.b16 %v695
        %v2074 = vunpack.c.l.b16 %v696
        %v2075 = vunpack.c.h.b16 %v696
        %v2076 = vunpack.c.l.b16 %v697
        %v2077 = vunpack.c.h.b16 %v697
        %v2078 = vunpack.c.l.b16 %v698
        %v2079 = vunpack.c.h.b16 %v698
        %v2080 = vunpack.c.l.b16 %v699
        %v2081 = vunpack.c.h.b16 %v699
        %v2082 = vunpack.c.l.b16 %v700
        %v2083 = vunpack.c.h.b16 %v700
        %v2084 = vunpack.c.l.b16 %v701
        %v2085 = vunpack.c.h.b16 %v701
        %v2086 = vunpack.c.l.b16 %v702
        %v2087 = vunpack.c.h.b16 %v702
        %v2088 = vunpack.c.l.b16 %v703
        %v2089 = vunpack.c.h.b16 %v703
        %v2090 = vunpack.c.l.b16 %v704
        %v2091 = vunpack.c.h.b16 %v704
        %v2092 = vunpack.c.l.b16 %v705
        %v2093 = vunpack.c.h.b16 %v705
        %v2094 = vunpack.c.l.b16 %v706
        %v2095 = vunpack.c.h.b16 %v706
        %v2096 = vunpack.c.l.b16 %v707
        %v2097 = vunpack.c.h.b16 %v707
        %v2098 = vunpack.c.l.b16 %v708
        %v2099 = vunpack.c.h.b16 %v708
        %v2100 = vunpack.c.l.b16 %v709
        %v2101 = vunpack.c.h.b16 %v709
        %v2102 = vunpack.c.l.b16 %v710
        %v2103 = vunpack.c.h.b16 %v710
        %v2104 = vunpack.c.l.b16 %v711
        %v2105 = vunpack.c.h.b16 %v711
        %v2106 = vunpack.c.l.b16 %v712
        %v2107 = vunpack.c.h.b16 %v712
        %v2108 = vunpack.c.l.b16 %v713
        %v2109 = vunpack.c.h.b16 %v713
        %v2110 = vunpack.c.l.b16 %v714
        %v2111 = vunpack.c.h.b16 %v714
        %v2112 = vunpack.c.l.b16 %v715
        %v2113 = vunpack.c.h.b16 %v715
        %v2114 = vunpack.c.l.b16 %v716
        %v2115 = vunpack.c.h.b16 %v716
        %v2116 = vunpack.c.l.b16 %v717
        %v2117 = vunpack.c.h.b16 %v717
        %v2118 = vunpack.c.l.b16 %v718
        %v2119 = vunpack.c.h.b16 %v718
        %v2120 = vunpack.c.l.b16 %v719
        %v2121 = vunpack.c.h.b16 %v719
        %v2122 = vunpack.c.l.b16 %v720
        %v2123 = vunpack.c.h.b16 %v720
        %v2124 = vunpack.c.l.b16 %v721
        %v2125 = vunpack.c.h.b16 %v721
        %v2126 = vunpack.c.l.b16 %v722
        %v2127 = vunpack.c.h.b16 %v722
        %v2128 = vunpack.c.l.b16 %v723
        %v2129 = vunpack.c.h.b16 %v723
        %v2130 = vunpack.c.l.b16 %v724
        %v2131 = vunpack.c.h.b16 %v724
        %v2132 = vunpack.c.l.b16 %v725
        %v2133 = vunpack.c.h.b16 %v725
        %v2134 = vunpack.c.l.b16 %v726
        %v2135 = vunpack.c.h.b16 %v726
        %v2136 = vunpack.c.l.b16 %v727
        %v2137 = vunpack.c.h.b16 %v727
        %v2138 = vunpack.c.l.b16 %v728
        %v2139 = vunpack.c.h.b16 %v728
        %v2140 = vunpack.c.l.b16 %v729
        %v2141 = vunpack.c.h.b16 %v729
        %v2142 = vunpack.c.l.b16 %v730
        %v2143 = vunpack.c.h.b16 %v730
        %v2144 = vunpack.c.l.b16 %v731
        %v2145 = vunpack.c.h.b16 %v731
        %v2146 = vunpack.c.l.b16 %v732
        %v2147 = vunpack.c.h.b16 %v732
        %v2148 = vunpack.c.l.b16 %v733
        %v2149 = vunpack.c.h.b16 %v733
        %v2150 = vunpack.c.l.b16 %v734
        %v2151 = vunpack.c.h.b16 %v734
        %v2152 = vunpack.c.l.b16 %v735
        %v2153 = vunpack.c.h.b16 %v735
        %v2154 = vunpack.c.l.b16 %v736
        %v2155 = vunpack.c.h.b16 %v736
        %v2156 = vunpack.c.l.b16 %v737
        %v2157 = vunpack.c.h.b16 %v737
        %v2158 = vunpack.c.l.b16 %v738
        %v2159 = vunpack.c.h.b16 %v738
        %v2160 = vunpack.c.l.b16 %v739
        %v2161 = vunpack.c.h.b16 %v739
        %v2162 = vunpack.c.l.b16 %v740
        %v2163 = vunpack.c.h.b16 %v740
        %v2164 = vunpack.c.l.b16 %v741
        %v2165 = vunpack.c.h.b16 %v741
        %v2166 = vunpack.c.l.b16 %v742
        %v2167 = vunpack.c.h.b16 %v742
        %v2168 = vunpack.c.l.b16 %v743
        %v2169 = vunpack.c.h.b16 %v743
        %v2170 = vunpack.c.l.b16 %v744
        %v2171 = vunpack.c.h.b16 %v744
        %v2172 = vunpack.c.l.b16 %v745
        %v2173 = vunpack.c.h.b16 %v745
        %v2174 = vunpack.c.l.b16 %v746
        %v2175 = vunpack.c.h.b16 %v746
        %v2176 = vunpack.c.l.b16 %v747
        %v2177 = vunpack.c.h.b16 %v747
        %v2178 = vunpack.c.l.b16 %v748
        %v2179 = vunpack.c.h.b16 %v748
        %v2180 = vunpack.c.l.b16 %v749
        %v2181 = vunpack.c.h.b16 %v749
        %v2182 = vunpack.c.l.b16 %v750
        %v2183 = vunpack.c.h.b16 %v750
        %v2184 = vunpack.c.l.b16 %v751
        %v2185 = vunpack.c.h.b16 %v751
        %v2186 = vunpack.c.l.b16 %v752
        %v2187 = vunpack.c.h.b16 %v752
        %v2188 = vunpack.c.l.b16 %v753
        %v2189 = vunpack.c.h.b16 %v753
        %v2190 = vunpack.c.l.b16 %v754
        %v2191 = vunpack.c.h.b16 %v754
        %v2192 = vunpack.c.l.b16 %v755
        %v2193 = vunpack.c.h.b16 %v755
        %v2194 = vunpack.c.l.b16 %v756
        %v2195 = vunpack.c.h.b16 %v756
        %v2196 = vunpack.c.l.b16 %v757
        %v2197 = vunpack.c.h.b16 %v757
        %v2198 = vunpack.c.l.b16 %v758
        %v2199 = vunpack.c.h.b16 %v758
        %v2200 = vunpack.c.l.b16 %v759
        %v2201 = vunpack.c.h.b16 %v759
        %v2202 = vunpack.c.l.b16 %v760
        %v2203 = vunpack.c.h.b16 %v760
        %v2204 = vunpack.c.l.b16 %v761
        %v2205 = vunpack.c.h.b16 %v761
        %v2206 = vunpack.c.l.b16 %v762
        %v2207 = vunpack.c.h.b16 %v762
        %v2208 = vunpack.c.l.b16 %v763
        %v2209 = vunpack.c.h.b16 %v763
        %v2210 = vunpack.c.l.b16 %v764
        %v2211 = vunpack.c.h.b16 %v764
        %v2212 = vunpack.c.l.b16 %v765
        %v2213 = vunpack.c.h.b16 %v765
        %v2214 = vunpack.c.l.b16 %v766
        %v2215 = vunpack.c.h.b16 %v766
        %v2216 = vunpack.c.l.b16 %v767
        %v2217 = vunpack.c.h.b16 %v767
        %v2218 = vunpack.c.l.b16 %v768
        %v2219 = vunpack.c.h.b16 %v768
        %v2220 = vunpack.c.l.b16 %v769
        %v2221 = vunpack.c.h.b16 %v769
        %v2222 = vunpack.c.l.b16 %v770
        %v2223 = vunpack.c.h.b16 %v770
        %v2224 = vunpack.c.l.b16 %v771
        %v2225 = vunpack.c.h.b16 %v771
        %v2226 = vunpack.c.l.b16 %v772
        %v2227 = vunpack.c.h.b16 %v772
        %v2228 = vunpack.c.l.b16 %v773
        %v2229 = vunpack.c.h.b16 %v773
        %v2230 = vunpack.c.l.b16 %v774
        %v2231 = vunpack.c.h.b16 %v774
        %v2232 = vunpack.c.l.b16 %v775
        %v2233 = vunpack.c.h.b16 %v775
        %v2234 = vunpack.c.l.b16 %v776
        %v2235 = vunpack.c.h.b16 %v776
        %v2236 = vunpack.c.l.b16 %v777
        %v2237 = vunpack.c.h.b16 %v777
        %v2238 = vunpack.c.l.b16 %v778
        %v2239 = vunpack.c.h.b16 %v778
        %v2240 = vunpack.c.l.b16 %v779
        %v2241 = vunpack.c.h.b16 %v779
        %v2242 = vunpack.c.l.b16 %v780
        %v2243 = vunpack.c.h.b16 %v780
        %v2244 = vunpack.c.l.b16 %v781
        %v2245 = vunpack.c.h.b16 %v781
        %v2246 = vunpack.c.l.b16 %v782
        %v2247 = vunpack.c.h.b16 %v782
        %v2248 = vunpack.c.l.b16 %v783
        %v2249 = vunpack.c.h.b16 %v783
        %v2250 = vunpack.c.l.b16 %v784
        %v2251 = vunpack.c.h.b16 %v784
        %v2252 = vunpack.c.l.b16 %v785
        %v2253 = vunpack.c.h.b16 %v785
        %v2254 = vunpack.c.l.b16 %v786
        %v2255 = vunpack.c.h.b16 %v786
        %v2256 = vunpack.c.l.b16 %v787
        %v2257 = vunpack.c.h.b16 %v787
        %v2258 = vunpack.c.l.b16 %v788
        %v2259 = vunpack.c.h.b16 %v788
        %v2260 = vunpack.c.l.b16 %v789
        %v2261 = vunpack.c.h.b16 %v789
        %v2262 = vunpack.c.l.b16 %v790
        %v2263 = vunpack.c.h.b16 %v790
        %v2264 = vunpack.c.l.b16 %v791
        %v2265 = vunpack.c.h.b16 %v791
        %v2266 = vunpack.c.l.b16 %v792
        %v2267 = vunpack.c.h.b16 %v792
        %v2268 = vunpack.c.l.b16 %v793
        %v2269 = vunpack.c.h.b16 %v793
        %v2270 = vunpack.c.l.b16 %v794
        %v2271 = vunpack.c.h.b16 %v794
        %v2272 = vunpack.c.l.b16 %v795
        %v2273 = vunpack.c.h.b16 %v795
        %v2274 = vunpack.c.l.b16 %v796
        %v2275 = vunpack.c.h.b16 %v796
        %v2276 = vunpack.c.l.b16 %v797
        %v2277 = vunpack.c.h.b16 %v797
        %v2278 = vunpack.c.l.b16 %v798
        %v2279 = vunpack.c.h.b16 %v798
        %v2280 = vunpack.c.l.b16 %v799
        %v2281 = vunpack.c.h.b16 %v799
        %v2282 = vunpack.c.l.b16 %v800
        %v2283 = vunpack.c.h.b16 %v800
        %v2284 = vunpack.c.l.b16 %v801
        %v2285 = vunpack.c.h.b16 %v801
        %v2286 = vunpack.c.l.b16 %v802
        %v2287 = vunpack.c.h.b16 %v802
        %v2288 = vunpack.c.l.b16 %v803
        %v2289 = vunpack.c.h.b16 %v803
        %v2290 = vunpack.c.l.b16 %v804
        %v2291 = vunpack.c.h.b16 %v804
        %v2292 = vunpack.c.l.b16 %v805
        %v2293 = vunpack.c.h.b16 %v805
        %v2294 = vunpack.c.l.b16 %v806
        %v2295 = vunpack.c.h.b16 %v806
        %v2296 = vunpack.c.l.b16 %v807
        %v2297 = vunpack.c.h.b16 %v807
        %v2298 = vunpack.c.l.b16 %v808
        %v2299 = vunpack.c.h.b16 %v808
        %v2300 = vunpack.c.l.b16 %v809
        %v2301 = vunpack.c.h.b16 %v809
        %v2302 = vunpack.c.l.b16 %v810
        %v2303 = vunpack.c.h.b16 %v810
        %v2304 = vunpack.c.l.b16 %v811
        %v2305 = vunpack.c.h.b16 %v811
        %v2306 = vunpack.c.l.b16 %v812
        %v2307 = vunpack.c.h.b16 %v812
        %v2308 = vunpack.c.l.b16 %v813
        %v2309 = vunpack.c.h.b16 %v813
        %v2310 = vunpack.c.l.b16 %v814
        %v2311 = vunpack.c.h.b16 %v814
        %v2312 = vunpack.c.l.b16 %v815
        %v2313 = vunpack.c.h.b16 %v815
        %v2314 = vunpack.c.l.b16 %v816
        %v2315 = vunpack.c.h.b16 %v816
        %v2316 = vunpack.c.l.b16 %v817
        %v2317 = vunpack.c.h.b16 %v817
        %v2318 = vunpack.c.l.b16 %v818
        %v2319 = vunpack.c.h.b16 %v818
        %v2320 = vunpack.c.l.b16 %v819
        %v2321 = vunpack.c.h.b16 %v819
        %v2322 = vunpack.c.l.b16 %v820
        %v2323 = vunpack.c.h.b16 %v820
        %v2324 = vunpack.c.l.b16 %v821
        %v2325 = vunpack.c.h.b16 %v821
        %v2326 = vunpack.c.l.b16 %v822
        %v2327 = vunpack.c.h.b16 %v822
        %v2328 = vunpack.c.l.b16 %v823
        %v2329 = vunpack.c.h.b16 %v823
        %v2330 = vunpack.c.l.b16 %v824
        %v2331 = vunpack.c.h.b16 %v824
        %v2332 = vunpack.c.l.b16 %v825
        %v2333 = vunpack.c.h.b16 %v825
        %v2334 = vunpack.c.l.b16 %v826
        %v2335 = vunpack.c.h.b16 %v826
        %v2336 = vunpack.c.l.b16 %v827
        %v2337 = vunpack.c.h.b16 %v827
        %v2338 = vunpack.c.l.b16 %v828
        %v2339 = vunpack.c.h.b16 %v828
        %v2340 = vunpack.c.l.b16 %v829
        %v2341 = vunpack.c.h.b16 %v829
        %v2342 = vunpack.c.l.b16 %v830
        %v2343 = vunpack.c.h.b16 %v830
        %v2344 = vunpack.c.l.b16 %v831
        %v2345 = vunpack.c.h.b16 %v831
        %v2346 = vunpack.c.l.b16 %v832
        %v2347 = vunpack.c.h.b16 %v832
        %v2348 = vunpack.c.l.b16 %v833
        %v2349 = vunpack.c.h.b16 %v833
        %v2350 = vunpack.c.l.b16 %v834
        %v2351 = vunpack.c.h.b16 %v834
        %v2352 = vunpack.c.l.b16 %v835
        %v2353 = vunpack.c.h.b16 %v835
        %v2354 = vunpack.c.l.b16 %v836
        %v2355 = vunpack.c.h.b16 %v836
        %v2356 = vunpack.c.l.b16 %v837
        %v2357 = vunpack.c.h.b16 %v837
        %v2358 = vunpack.c.l.b16 %v838
        %v2359 = vunpack.c.h.b16 %v838
        %v2360 = vunpack.c.l.b16 %v839
        %v2361 = vunpack.c.h.b16 %v839
        %v2362 = vunpack.c.l.b16 %v840
        %v2363 = vunpack.c.h.b16 %v840
        %v2364 = vunpack.c.l.b16 %v841
        %v2365 = vunpack.c.h.b16 %v841
        %v2366 = vunpack.c.l.b16 %v842
        %v2367 = vunpack.c.h.b16 %v842
        %v2368 = vunpack.c.l.b16 %v843
        %v2369 = vunpack.c.h.b16 %v843
        %v2370 = vunpack.c.l.b16 %v844
        %v2371 = vunpack.c.h.b16 %v844
        %v2372 = vunpack.c.l.b16 %v845
        %v2373 = vunpack.c.h.b16 %v845
        %v2374 = vunpack.c.l.b16 %v846
        %v2375 = vunpack.c.h.b16 %v846
        %v2376 = vunpack.c.l.b16 %v847
        %v2377 = vunpack.c.h.b16 %v847
        %v2378 = vunpack.c.l.b16 %v848
        %v2379 = vunpack.c.h.b16 %v848
        %v2380 = vunpack.c.l.b16 %v849
        %v2381 = vunpack.c.h.b16 %v849
        %v2382 = vunpack.c.l.b16 %v850
        %v2383 = vunpack.c.h.b16 %v850
        %v2384 = vunpack.c.l.b16 %v851
        %v2385 = vunpack.c.h.b16 %v851
        %v2386 = vunpack.c.l.b16 %v852
        %v2387 = vunpack.c.h.b16 %v852
        %v2388 = vunpack.c.l.b16 %v853
        %v2389 = vunpack.c.h.b16 %v853
        %v2390 = vpack.c.b16 %v1370, %v1366
        %v2391 = vpack.c.b16 %v1371, %v1367
        %v2392 = vpack.c.b16 %v1372, %v1368
        %v2393 = vpack.c.b16 %v1373, %v1369
        %v2394 = vpack.c.b16 %v1378, %v1374
        %v2395 = vpack.c.b16 %v1379, %v1375
        %v2396 = vpack.c.b16 %v1380, %v1376
        %v2397 = vpack.c.b16 %v1381, %v1377
        %v2398 = vpack.c.b16 %v1386, %v1382
        %v2399 = vpack.c.b16 %v1387, %v1383
        %v2400 = vpack.c.b16 %v1388, %v1384
        %v2401 = vpack.c.b16 %v1389, %v1385
        %v2402 = vpack.c.b16 %v1394, %v1390
        %v2403 = vpack.c.b16 %v1395, %v1391
        %v2404 = vpack.c.b16 %v1396, %v1392
        %v2405 = vpack.c.b16 %v1397, %v1393
        %v2406 = vpack.c.b16 %v1402, %v1398
        %v2407 = vpack.c.b16 %v1403, %v1399
        %v2408 = vpack.c.b16 %v1404, %v1400
        %v2409 = vpack.c.b16 %v1405, %v1401
        %v2410 = vpack.c.b16 %v1410, %v1406
        %v2411 = vpack.c.b16 %v1411, %v1407
        %v2412 = vpack.c.b16 %v1412, %v1408
        %v2413 = vpack.c.b16 %v1413, %v1409
        %v2414 = vpack.c.b16 %v1418, %v1414
        %v2415 = vpack.c.b16 %v1419, %v1415
        %v2416 = vpack.c.b16 %v1420, %v1416
        %v2417 = vpack.c.b16 %v1421, %v1417
        %v2418 = vpack.c.b16 %v1426, %v1422
        %v2419 = vpack.c.b16 %v1427, %v1423
        %v2420 = vpack.c.b16 %v1428, %v1424
        %v2421 = vpack.c.b16 %v1429, %v1425
        %v2422 = vpack.c.b16 %v1434, %v1430
        %v2423 = vpack.c.b16 %v1435, %v1431
        %v2424 = vpack.c.b16 %v1436, %v1432
        %v2425 = vpack.c.b16 %v1437, %v1433
        %v2426 = vpack.c.b16 %v1442, %v1438
        %v2427 = vpack.c.b16 %v1443, %v1439
        %v2428 = vpack.c.b16 %v1444, %v1440
        %v2429 = vpack.c.b16 %v1445, %v1441
        %v2430 = vpack.c.b16 %v1450, %v1446
        %v2431 = vpack.c.b16 %v1451, %v1447
        %v2432 = vpack.c.b16 %v1452, %v1448
        %v2433 = vpack.c.b16 %v1453, %v1449
        %v2434 = vpack.c.b16 %v1458, %v1454
        %v2435 = vpack.c.b16 %v1459, %v1455
        %v2436 = vpack.c.b16 %v1460, %v1456
        %v2437 = vpack.c.b16 %v1461, %v1457
        %v2438 = vpack.c.b16 %v1466, %v1462
        %v2439 = vpack.c.b16 %v1467, %v1463
        %v2440 = vpack.c.b16 %v1468, %v1464
        %v2441 = vpack.c.b16 %v1469, %v1465
        %v2442 = vpack.c.b16 %v1474, %v1470
        %v2443 = vpack.c.b16 %v1475, %v1471
        %v2444 = vpack.c.b16 %v1476, %v1472
        %v2445 = vpack.c.b16 %v1477, %v1473
        %v2446 = vpack.c.b16 %v1482, %v1478
        %v2447 = vpack.c.b16 %v1483, %v1479
        %v2448 = vpack.c.b16 %v1484, %v1480
        %v2449 = vpack.c.b16 %v1485, %v1481
        %v2450 = vpack.c.b16 %v1490, %v1486
        %v2451 = vpack.c.b16 %v1491, %v1487
        %v2452 = vpack.c.b16 %v1492, %v1488
        %v2453 = vpack.c.b16 %v1493, %v1489
        %v2454 = vpack.c.b16 %v1498, %v1494
        %v2455 = vpack.c.b16 %v1499, %v1495
        %v2456 = vpack.c.b16 %v1500, %v1496
        %v2457 = vpack.c.b16 %v1501, %v1497
        %v2458 = vpack.c.b16 %v1506, %v1502
        %v2459 = vpack.c.b16 %v1507, %v1503
        %v2460 = vpack.c.b16 %v1508, %v1504
        %v2461 = vpack.c.b16 %v1509, %v1505
        %v2462 = vpack.c.b16 %v1514, %v1510
        %v2463 = vpack.c.b16 %v1515, %v1511
        %v2464 = vpack.c.b16 %v1516, %v1512
        %v2465 = vpack.c.b16 %v1517, %v1513
        %v2466 = vpack.c.b16 %v1522, %v1518
        %v2467 = vpack.c.b16 %v1523, %v1519
        %v2468 = vpack.c.b16 %v1524, %v1520
        %v2469 = vpack.c.b16 %v1525, %v1521
        %v2470 = vpack.c.b16 %v1530, %v1526
        %v2471 = vpack.c.b16 %v1531, %v1527
        %v2472 = vpack.c.b16 %v1532, %v1528
        %v2473 = vpack.c.b16 %v1533, %v1529
        %v2474 = vpack.c.b16 %v1538, %v1534
        %v2475 = vpack.c.b16 %v1539, %v1535
        %v2476 = vpack.c.b16 %v1540, %v1536
        %v2477 = vpack.c.b16 %v1541, %v1537
        %v2478 = vpack.c.b16 %v1546, %v1542
        %v2479 = vpack.c.b16 %v1547, %v1543
        %v2480 = vpack.c.b16 %v1548, %v1544
        %v2481 = vpack.c.b16 %v1549, %v1545
        %v2482 = vpack.c.b16 %v1554, %v1550
        %v2483 = vpack.c.b16 %v1555, %v1551
        %v2484 = vpack.c.b16 %v1556, %v1552
        %v2485 = vpack.c.b16 %v1557, %v1553
        %v2486 = vpack.c.b16 %v1562, %v1558
        %v2487 = vpack.c.b16 %v1563, %v1559
        %v2488 = vpack.c.b16 %v1564, %v1560
        %v2489 = vpack.c.b16 %v1565, %v1561
        %v2490 = vpack.c.b16 %v1570, %v1566
        %v2491 = vpack.c.b16 %v1571, %v1567
        %v2492 = vpack.c.b16 %v1572, %v1568
        %v2493 = vpack.c.b16 %v1573, %v1569
        %v2494 = vpack.c.b16 %v1578, %v1574
        %v2495 = vpack.c.b16 %v1579, %v1575
        %v2496 = vpack.c.b16 %v1580, %v1576
        %v2497 = vpack.c.b16 %v1581, %v1577
        %v2498 = vpack.c.b16 %v1586, %v1582
        %v2499 = vpack.c.b16 %v1587, %v1583
        %v2500 = vpack.c.b16 %v1588, %v1584
        %v2501 = vpack.c.b16 %v1589, %v1585
        %v2502 = vpack.c.b16 %v1594, %v1590
        %v2503 = vpack.c.b16 %v1595, %v1591
        %v2504 = vpack.c.b16 %v1596, %v1592
        %v2505 = vpack.c.b16 %v1597, %v1593
        %v2506 = vpack.c.b16 %v1602, %v1598
        %v2507 = vpack.c.b16 %v1603, %v1599
        %v2508 = vpack.c.b16 %v1604, %v1600
        %v2509 = vpack.c.b16 %v1605, %v1601
        %v2510 = vpack.c.b16 %v1610, %v1606
        %v2511 = vpack.c.b16 %v1611, %v1607
        %v2512 = vpack.c.b16 %v1612, %v1608
        %v2513 = vpack.c.b16 %v1613, %v1609
        %v2514 = vpack.c.b16 %v1618, %v1614
        %v2515 = vpack.c.b16 %v1619, %v1615
        %v2516 = vpack.c.b16 %v1620, %v1616
        %v2517 = vpack.c.b16 %v1621, %v1617
        %v2518 = vpack.c.b16 %v1626, %v1622
        %v2519 = vpack.c.b16 %v1627, %v1623
        %v2520 = vpack.c.b16 %v1628, %v1624
        %v2521 = vpack.c.b16 %v1629, %v1625
        %v2522 = vpack.c.b16 %v1634, %v1630
        %v2523 = vpack.c.b16 %v1635, %v1631
        %v2524 = vpack.c.b16 %v1636, %v1632
        %v2525 = vpack.c.b16 %v1637, %v1633
        %v2526 = vpack.c.b16 %v1642, %v1638
        %v2527 = vpack.c.b16 %v1643, %v1639
        %v2528 = vpack.c.b16 %v1644, %v1640
        %v2529 = vpack.c.b16 %v1645, %v1641
        %v2530 = vpack.c.b16 %v1650, %v1646
        %v2531 = vpack.c.b16 %v1651, %v1647
        %v2532 = vpack.c.b16 %v1652, %v1648
        %v2533 = vpack.c.b16 %v1653, %v1649
        %v2534 = vpack.c.b16 %v1658, %v1654
        %v2535 = vpack.c.b16 %v1659, %v1655
        %v2536 = vpack.c.b16 %v1660, %v1656
        %v2537 = vpack.c.b16 %v1661, %v1657
        %v2538 = vpack.c.b16 %v1666, %v1662
        %v2539 = vpack.c.b16 %v1667, %v1663
        %v2540 = vpack.c.b16 %v1668, %v1664
        %v2541 = vpack.c.b16 %v1669, %v1665
        %v2542 = vpack.c.b16 %v1674, %v1670
        %v2543 = vpack.c.b16 %v1675, %v1671
        %v2544 = vpack.c.b16 %v1676, %v1672
        %v2545 = vpack.c.b16 %v1677, %v1673
        %v2546 = vpack.c.b16 %v1682, %v1678
        %v2547 = vpack.c.b16 %v1683, %v1679
        %v2548 = vpack.c.b16 %v1684, %v1680
        %v2549 = vpack.c.b16 %v1685, %v1681
        %v2550 = vpack.c.b16 %v1690, %v1686
        %v2551 = vpack.c.b16 %v1691, %v1687
        %v2552 = vpack.c.b16 %v1692, %v1688
        %v2553 = vpack.c.b16 %v1693, %v1689
        %v2554 = vpack.c.b16 %v1698, %v1694
        %v2555 = vpack.c.b16 %v1699, %v1695
        %v2556 = vpack.c.b16 %v1700, %v1696
        %v2557 = vpack.c.b16 %v1701, %v1697
        %v2558 = vpack.c.b16 %v1706, %v1702
        %v2559 = vpack.c.b16 %v1707, %v1703
        %v2560 = vpack.c.b16 %v1708, %v1704
        %v2561 = vpack.c.b16 %v1709, %v1705
        %v2562 = vpack.c.b16 %v1714, %v1710
        %v2563 = vpack.c.b16 %v1715, %v1711
        %v2564 = vpack.c.b16 %v1716, %v1712
        %v2565 = vpack.c.b16 %v1717, %v1713
        %v2566 = vpack.c.b16 %v1722, %v1718
        %v2567 = vpack.c.b16 %v1723, %v1719
        %v2568 = vpack.c.b16 %v1724, %v1720
        %v2569 = vpack.c.b16 %v1725, %v1721
        %v2570 = vpack.c.b16 %v1730, %v1726
        %v2571 = vpack.c.b16 %v1731, %v1727
        %v2572 = vpack.c.b16 %v1732, %v1728
        %v2573 = vpack.c.b16 %v1733, %v1729
        %v2574 = vpack.c.b16 %v1738, %v1734
        %v2575 = vpack.c.b16 %v1739, %v1735
        %v2576 = vpack.c.b16 %v1740, %v1736
        %v2577 = vpack.c.b16 %v1741, %v1737
        %v2578 = vpack.c.b16 %v1746, %v1742
        %v2579 = vpack.c.b16 %v1747, %v1743
        %v2580 = vpack.c.b16 %v1748, %v1744
        %v2581 = vpack.c.b16 %v1749, %v1745
        %v2582 = vpack.c.b16 %v1754, %v1750
        %v2583 = vpack.c.b16 %v1755, %v1751
        %v2584 = vpack.c.b16 %v1756, %v1752
        %v2585 = vpack.c.b16 %v1757, %v1753
        %v2586 = vpack.c.b16 %v1762, %v1758
        %v2587 = vpack.c.b16 %v1763, %v1759
        %v2588 = vpack.c.b16 %v1764, %v1760
        %v2589 = vpack.c.b16 %v1765, %v1761
        %v2590 = vpack.c.b16 %v1770, %v1766
        %v2591 = vpack.c.b16 %v1771, %v1767
        %v2592 = vpack.c.b16 %v1772, %v1768
        %v2593 = vpack.c.b16 %v1773, %v1769
        %v2594 = vpack.c.b16 %v1778, %v1774
        %v2595 = vpack.c.b16 %v1779, %v1775
        %v2596 = vpack.c.b16 %v1780, %v1776
        %v2597 = vpack.c.b16 %v1781, %v1777
        %v2598 = vpack.c.b16 %v1786, %v1782
        %v2599 = vpack.c.b16 %v1787, %v1783
        %v2600 = vpack.c.b16 %v1788, %v1784
        %v2601 = vpack.c.b16 %v1789, %v1785
        %v2602 = vpack.c.b16 %v1794, %v1790
        %v2603 = vpack.c.b16 %v1795, %v1791
        %v2604 = vpack.c.b16 %v1796, %v1792
        %v2605 = vpack.c.b16 %v1797, %v1793
        %v2606 = vpack.c.b16 %v1802, %v1798
        %v2607 = vpack.c.b16 %v1803, %v1799
        %v2608 = vpack.c.b16 %v1804, %v1800
        %v2609 = vpack.c.b16 %v1805, %v1801
        %v2610 = vpack.c.b16 %v1810, %v1806
        %v2611 = vpack.c.b16 %v1811, %v1807
        %v2612 = vpack.c.b16 %v1812, %v1808
        %v2613 = vpack.c.b16 %v1813, %v1809
        %v2614 = vpack.c.b16 %v1818, %v1814
        %v2615 = vpack.c.b16 %v1819, %v1815
        %v2616 = vpack.c.b16 %v1820, %v1816
        %v2617 = vpack.c.b16 %v1821, %v1817
        %v2618 = vpack.c.b16 %v1826, %v1822
        %v2619 = vpack.c.b16 %v1827, %v1823
        %v2620 = vpack.c.b16 %v1828, %v1824
        %v2621 = vpack.c.b16 %v1829, %v1825
        %v2622 = vpack.c.b16 %v1834, %v1830
        %v2623 = vpack.c.b16 %v1835, %v1831
        %v2624 = vpack.c.b16 %v1836, %v1832
        %v2625 = vpack.c.b16 %v1837, %v1833
        %v2626 = vpack.c.b16 %v1842, %v1838
        %v2627 = vpack.c.b16 %v1843, %v1839
        %v2628 = vpack.c.b16 %v1844, %v1840
        %v2629 = vpack.c.b16 %v1845, %v1841
        %v2630 = vpack.c.b16 %v1850, %v1846
        %v2631 = vpack.c.b16 %v1851, %v1847
        %v2632 = vpack.c.b16 %v1852, %v1848
        %v2633 = vpack.c.b16 %v1853, %v1849
        %v2634 = vpack.c.b16 %v1858, %v1854
        %v2635 = vpack.c.b16 %v1859, %v1855
        %v2636 = vpack.c.b16 %v1860, %v1856
        %v2637 = vpack.c.b16 %v1861, %v1857
        %v2638 = vpack.c.b16 %v1866, %v1862
        %v2639 = vpack.c.b16 %v1867, %v1863
        %v2640 = vpack.c.b16 %v1868, %v1864
        %v2641 = vpack.c.b16 %v1869, %v1865
        %v2642 = vpack.c.b16 %v1874, %v1870
        %v2643 = vpack.c.b16 %v1875, %v1871
        %v2644 = vpack.c.b16 %v1876, %v1872
        %v2645 = vpack.c.b16 %v1877, %v1873
        %v2646 = vpack.c.b16 %v1882, %v1878
        %v2647 = vpack.c.b16 %v1883, %v1879
        %v2648 = vpack.c.b16 %v1884, %v1880
        %v2649 = vpack.c.b16 %v1885, %v1881
        %v2650 = vpack.c.b16 %v1890, %v1886
        %v2651 = vpack.c.b16 %v1891, %v1887
        %v2652 = vpack.c.b16 %v1892, %v1888
        %v2653 = vpack.c.b16 %v1893, %v1889
        %v2654 = vpack.c.b16 %v1898, %v1894
        %v2655 = vpack.c.b16 %v1899, %v1895
        %v2656 = vpack.c.b16 %v1900, %v1896
        %v2657 = vpack.c.b16 %v1901, %v1897
        %v2658 = vpack.c.b16 %v1906, %v1902
        %v2659 = vpack.c.b16 %v1907, %v1903
        %v2660 = vpack.c.b16 %v1908, %v1904
        %v2661 = vpack.c.b16 %v1909, %v1905
        %v2662 = vpack.c.b16 %v1914, %v1910
        %v2663 = vpack.c.b16 %v1915, %v1911
        %v2664 = vpack.c.b16 %v1916, %v1912
        %v2665 = vpack.c.b16 %v1917, %v1913
        %v2666 = vpack.c.b16 %v1922, %v1918
        %v2667 = vpack.c.b16 %v1923, %v1919
        %v2668 = vpack.c.b16 %v1924, %v1920
        %v2669 = vpack.c.b16 %v1925, %v1921
        %v2670 = vpack.c.b16 %v1930, %v1926
        %v2671 = vpack.c.b16 %v1931, %v1927
        %v2672 = vpack.c.b16 %v1932, %v1928
        %v2673 = vpack.c.b16 %v1933, %v1929
        %v2674 = vpack.c.b16 %v1938, %v1934
        %v2675 = vpack.c.b16 %v1939, %v1935
        %v2676 = vpack.c.b16 %v1940, %v1936
        %v2677 = vpack.c.b16 %v1941, %v1937
        %v2678 = vpack.c.b16 %v1946, %v1942
        %v2679 = vpack.c.b16 %v1947, %v1943
        %v2680 = vpack.c.b16 %v1948, %v1944
        %v2681 = vpack.c.b16 %v1949, %v1945
        %v2682 = vpack.c.b16 %v1954, %v1950
        %v2683 = vpack.c.b16 %v1955, %v1951
        %v2684 = vpack.c.b16 %v1956, %v1952
        %v2685 = vpack.c.b16 %v1957, %v1953
        %v2686 = vpack.c.b16 %v1962, %v1958
        %v2687 = vpack.c.b16 %v1963, %v1959
        %v2688 = vpack.c.b16 %v1964, %v1960
        %v2689 = vpack.c.b16 %v1965, %v1961
        %v2690 = vpack.c.b16 %v1970, %v1966
        %v2691 = vpack.c.b16 %v1971, %v1967
        %v2692 = vpack.c.b16 %v1972, %v1968
        %v2693 = vpack.c.b16 %v1973, %v1969
        %v2694 = vpack.c.b16 %v1978, %v1974
        %v2695 = vpack.c.b16 %v1979, %v1975
        %v2696 = vpack.c.b16 %v1980, %v1976
        %v2697 = vpack.c.b16 %v1981, %v1977
        %v2698 = vpack.c.b16 %v1986, %v1982
        %v2699 = vpack.c.b16 %v1987, %v1983
        %v2700 = vpack.c.b16 %v1988, %v1984
        %v2701 = vpack.c.b16 %v1989, %v1985
        %v2702 = vpack.c.b16 %v1994, %v1990
        %v2703 = vpack.c.b16 %v1995, %v1991
        %v2704 = vpack.c.b16 %v1996, %v1992
        %v2705 = vpack.c.b16 %v1997, %v1993
        %v2706 = vpack.c.b16 %v2002, %v1998
        %v2707 = vpack.c.b16 %v2003, %v1999
        %v2708 = vpack.c.b16 %v2004, %v2000
        %v2709 = vpack.c.b16 %v2005, %v2001
        %v2710 = vpack.c.b16 %v2010, %v2006
        %v2711 = vpack.c.b16 %v2011, %v2007
        %v2712 = vpack.c.b16 %v2012, %v2008
        %v2713 = vpack.c.b16 %v2013, %v2009
        %v2714 = vpack.c.b16 %v2018, %v2014
        %v2715 = vpack.c.b16 %v2019, %v2015
        %v2716 = vpack.c.b16 %v2020, %v2016
        %v2717 = vpack.c.b16 %v2021, %v2017
        %v2718 = vpack.c.b16 %v2026, %v2022
        %v2719 = vpack.c.b16 %v2027, %v2023
        %v2720 = vpack.c.b16 %v2028, %v2024
        %v2721 = vpack.c.b16 %v2029, %v2025
        %v2722 = vpack.c.b16 %v2034, %v2030
        %v2723 = vpack.c.b16 %v2035, %v2031
        %v2724 = vpack.c.b16 %v2036, %v2032
        %v2725 = vpack.c.b16 %v2037, %v2033
        %v2726 = vpack.c.b16 %v2042, %v2038
        %v2727 = vpack.c.b16 %v2043, %v2039
        %v2728 = vpack.c.b16 %v2044, %v2040
        %v2729 = vpack.c.b16 %v2045, %v2041
        %v2730 = vpack.c.b16 %v2050, %v2046
        %v2731 = vpack.c.b16 %v2051, %v2047
        %v2732 = vpack.c.b16 %v2052, %v2048
        %v2733 = vpack.c.b16 %v2053, %v2049
        %v2734 = vpack.c.b16 %v2058, %v2054
        %v2735 = vpack.c.b16 %v2059, %v2055
        %v2736 = vpack.c.b16 %v2060, %v2056
        %v2737 = vpack.c.b16 %v2061, %v2057
        %v2738 = vpack.c.b16 %v2066, %v2062
        %v2739 = vpack.c.b16 %v2067, %v2063
        %v2740 = vpack.c.b16 %v2068, %v2064
        %v2741 = vpack.c.b16 %v2069, %v2065
        %v2742 = vpack.c.b16 %v2074, %v2070
        %v2743 = vpack.c.b16 %v2075, %v2071
        %v2744 = vpack.c.b16 %v2076, %v2072
        %v2745 = vpack.c.b16 %v2077, %v2073
        %v2746 = vpack.c.b16 %v2082, %v2078
        %v2747 = vpack.c.b16 %v2083, %v2079
        %v2748 = vpack.c.b16 %v2084, %v2080
        %v2749 = vpack.c.b16 %v2085, %v2081
        %v2750 = vpack.c.b16 %v2090, %v2086
        %v2751 = vpack.c.b16 %v2091, %v2087
        %v2752 = vpack.c.b16 %v2092, %v2088
        %v2753 = vpack.c.b16 %v2093, %v2089
        %v2754 = vpack.c.b16 %v2098, %v2094
        %v2755 = vpack.c.b16 %v2099, %v2095
        %v2756 = vpack.c.b16 %v2100, %v2096
        %v2757 = vpack.c.b16 %v2101, %v2097
        %v2758 = vpack.c.b16 %v2106, %v2102
        %v2759 = vpack.c.b16 %v2107, %v2103
        %v2760 = vpack.c.b16 %v2108, %v2104
        %v2761 = vpack.c.b16 %v2109, %v2105
        %v2762 = vpack.c.b16 %v2114, %v2110
        %v2763 = vpack.c.b16 %v2115, %v2111
        %v2764 = vpack.c.b16 %v2116, %v2112
        %v2765 = vpack.c.b16 %v2117, %v2113
        %v2766 = vpack.c.b16 %v2122, %v2118
        %v2767 = vpack.c.b16 %v2123, %v2119
        %v2768 = vpack.c.b16 %v2124, %v2120
        %v2769 = vpack.c.b16 %v2125, %v2121
        %v2770 = vpack.c.b16 %v2130, %v2126
        %v2771 = vpack.c.b16 %v2131, %v2127
        %v2772 = vpack.c.b16 %v2132, %v2128
        %v2773 = vpack.c.b16 %v2133, %v2129
        %v2774 = vpack.c.b16 %v2138, %v2134
        %v2775 = vpack.c.b16 %v2139, %v2135
        %v2776 = vpack.c.b16 %v2140, %v2136
        %v2777 = vpack.c.b16 %v2141, %v2137
        %v2778 = vpack.c.b16 %v2146, %v2142
        %v2779 = vpack.c.b16 %v2147, %v2143
        %v2780 = vpack.c.b16 %v2148, %v2144
        %v2781 = vpack.c.b16 %v2149, %v2145
        %v2782 = vpack.c.b16 %v2154, %v2150
        %v2783 = vpack.c.b16 %v2155, %v2151
        %v2784 = vpack.c.b16 %v2156, %v2152
        %v2785 = vpack.c.b16 %v2157, %v2153
        %v2786 = vpack.c.b16 %v2162, %v2158
        %v2787 = vpack.c.b16 %v2163, %v2159
        %v2788 = vpack.c.b16 %v2164, %v2160
        %v2789 = vpack.c.b16 %v2165, %v2161
        %v2790 = vpack.c.b16 %v2170, %v2166
        %v2791 = vpack.c.b16 %v2171, %v2167
        %v2792 = vpack.c.b16 %v2172, %v2168
        %v2793 = vpack.c.b16 %v2173, %v2169
        %v2794 = vpack.c.b16 %v2178, %v2174
        %v2795 = vpack.c.b16 %v2179, %v2175
        %v2796 = vpack.c.b16 %v2180, %v2176
        %v2797 = vpack.c.b16 %v2181, %v2177
        %v2798 = vpack.c.b16 %v2186, %v2182
        %v2799 = vpack.c.b16 %v2187, %v2183
        %v2800 = vpack.c.b16 %v2188, %v2184
        %v2801 = vpack.c.b16 %v2189, %v2185
        %v2802 = vpack.c.b16 %v2194, %v2190
        %v2803 = vpack.c.b16 %v2195, %v2191
        %v2804 = vpack.c.b16 %v2196, %v2192
        %v2805 = vpack.c.b16 %v2197, %v2193
        %v2806 = vpack.c.b16 %v2202, %v2198
        %v2807 = vpack.c.b16 %v2203, %v2199
        %v2808 = vpack.c.b16 %v2204, %v2200
        %v2809 = vpack.c.b16 %v2205, %v2201
        %v2810 = vpack.c.b16 %v2210, %v2206
        %v2811 = vpack.c.b16 %v2211, %v2207
        %v2812 = vpack.c.b16 %v2212, %v2208
        %v2813 = vpack.c.b16 %v2213, %v2209
        %v2814 = vpack.c.b16 %v2218, %v2214
        %v2815 = vpack.c.b16 %v2219, %v2215
        %v2816 = vpack.c.b16 %v2220, %v2216
        %v2817 = vpack.c.b16 %v2221, %v2217
        %v2818 = vpack.c.b16 %v2226, %v2222
        %v2819 = vpack.c.b16 %v2227, %v2223
        %v2820 = vpack.c.b16 %v2228, %v2224
        %v2821 = vpack.c.b16 %v2229, %v2225
        %v2822 = vpack.c.b16 %v2234, %v2230
        %v2823 = vpack.c.b16 %v2235, %v2231
        %v2824 = vpack.c.b16 %v2236, %v2232
        %v2825 = vpack.c.b16 %v2237, %v2233
        %v2826 = vpack.c.b16 %v2242, %v2238
        %v2827 = vpack.c.b16 %v2243, %v2239
        %v2828 = vpack.c.b16 %v2244, %v2240
        %v2829 = vpack.c.b16 %v2245, %v2241
        %v2830 = vpack.c.b16 %v2250, %v2246
        %v2831 = vpack.c.b16 %v2251, %v2247
        %v2832 = vpack.c.b16 %v2252, %v2248
        %v2833 = vpack.c.b16 %v2253, %v2249
        %v2834 = vpack.c.b16 %v2258, %v2254
        %v2835 = vpack.c.b16 %v2259, %v2255
        %v2836 = vpack.c.b16 %v2260, %v2256
        %v2837 = vpack.c.b16 %v2261, %v2257
        %v2838 = vpack.c.b16 %v2266, %v2262
        %v2839 = vpack.c.b16 %v2267, %v2263
        %v2840 = vpack.c.b16 %v2268, %v2264
        %v2841 = vpack.c.b16 %v2269, %v2265
        %v2842 = vpack.c.b16 %v2274, %v2270
        %v2843 = vpack.c.b16 %v2275, %v2271
        %v2844 = vpack.c.b16 %v2276, %v2272
        %v2845 = vpack.c.b16 %v2277, %v2273
        %v2846 = vpack.c.b16 %v2282, %v2278
        %v2847 = vpack.c.b16 %v2283, %v2279
        %v2848 = vpack.c.b16 %v2284, %v2280
        %v2849 = vpack.c.b16 %v2285, %v2281
        %v2850 = vpack.c.b16 %v2290, %v2286
        %v2851 = vpack.c.b16 %v2291, %v2287
        %v2852 = vpack.c.b16 %v2292, %v2288
        %v2853 = vpack.c.b16 %v2293, %v2289
        %v2854 = vpack.c.b16 %v2298, %v2294
        %v2855 = vpack.c.b16 %v2299, %v2295
        %v2856 = vpack.c.b16 %v2300, %v2296
        %v2857 = vpack.c.b16 %v2301, %v2297
        %v2858 = vpack.c.b16 %v2306, %v2302
        %v2859 = vpack.c.b16 %v2307, %v2303
        %v2860 = vpack.c.b16 %v2308, %v2304
        %v2861 = vpack.c.b16 %v2309, %v2305
        %v2862 = vpack.c.b16 %v2314, %v2310
        %v2863 = vpack.c.b16 %v2315, %v2311
        %v2864 = vpack.c.b16 %v2316, %v2312
        %v2865 = vpack.c.b16 %v2317, %v2313
        %v2866 = vpack.c.b16 %v2322, %v2318
        %v2867 = vpack.c.b16 %v2323, %v2319
        %v2868 = vpack.c.b16 %v2324, %v2320
        %v2869 = vpack.c.b16 %v2325, %v2321
        %v2870 = vpack.c.b16 %v2330, %v2326
        %v2871 = vpack.c.b16 %v2331, %v2327
        %v2872 = vpack.c.b16 %v2332, %v2328
        %v2873 = vpack.c.b16 %v2333, %v2329
        %v2874 = vpack.c.b16 %v2338, %v2334
        %v2875 = vpack.c.b16 %v2339, %v2335
        %v2876 = vpack.c.b16 %v2340, %v2336
        %v2877 = vpack.c.b16 %v2341, %v2337
        %v2878 = vpack.c.b16 %v2346, %v2342
        %v2879 = vpack.c.b16 %v2347, %v2343
        %v2880 = vpack.c.b16 %v2348, %v2344
        %v2881 = vpack.c.b16 %v2349, %v2345
        %v2882 = vpack.c.b16 %v2354, %v2350
        %v2883 = vpack.c.b16 %v2355, %v2351
        %v2884 = vpack.c.b16 %v2356, %v2352
        %v2885 = vpack.c.b16 %v2357, %v2353
        %v2886 = vpack.c.b16 %v2362, %v2358
        %v2887 = vpack.c.b16 %v2363, %v2359
        %v2888 = vpack.c.b16 %v2364, %v2360
        %v2889 = vpack.c.b16 %v2365, %v2361
        %v2890 = vpack.c.b16 %v2370, %v2366
        %v2891 = vpack.c.b16 %v2371, %v2367
        %v2892 = vpack.c.b16 %v2372, %v2368
        %v2893 = vpack.c.b16 %v2373, %v2369
        %v2894 = vpack.c.b16 %v2378, %v2374
        %v2895 = vpack.c.b16 %v2379, %v2375
        %v2896 = vpack.c.b16 %v2380, %v2376
        %v2897 = vpack.c.b16 %v2381, %v2377
        %v2898 = vpack.c.b16 %v2386, %v2382
        %v2899 = vpack.c.b16 %v2387, %v2383
        %v2900 = vpack.c.b16 %v2388, %v2384
        %v2901 = vpack.c.b16 %v2389, %v2385
        %3414 = vmatprep.subr.bf16.mxu0 %v2391
        %3415 = vmatpush1.bf16.msra.mxu0 %v2390
        %3416 = vmatprep.subr.bf16.mxu0 %v2395
        %3417 = vmatpush1.bf16.msra.mxu0 %v2394
        %3418 = vmatprep.subr.bf16.mxu0 %v2399
        %3419 = vmatpush1.bf16.msra.mxu0 %v2398
        %3420 = vmatprep.subr.bf16.mxu0 %v2403
        %3421 = vmatpush1.bf16.msra.mxu0 %v2402
        %3422 = vmatprep.subr.bf16.mxu0 %v2407
        %3423 = vmatpush1.bf16.msra.mxu0 %v2406
        %3424 = vmatprep.subr.bf16.mxu0 %v2411
        %3425 = vmatpush1.bf16.msra.mxu0 %v2410
        %3426 = vmatprep.subr.bf16.mxu0 %v2415
        %3427 = vmatpush1.bf16.msra.mxu0 %v2414
        %3428 = vmatprep.subr.bf16.mxu0 %v2419
        %3429 = vmatpush1.bf16.msra.mxu0 %v2418
        %3430 = vmatprep.subr.bf16.mxu0 %v2423
        %3431 = vmatpush1.bf16.msra.mxu0 %v2422
        %3432 = vmatprep.subr.bf16.mxu0 %v2427
        %3433 = vmatpush1.bf16.msra.mxu0 %v2426
        %3434 = vmatprep.subr.bf16.mxu0 %v2431
        %3435 = vmatpush1.bf16.msra.mxu0 %v2430
        %3436 = vmatprep.subr.bf16.mxu0 %v2435
        %3437 = vmatpush1.bf16.msra.mxu0 %v2434
        %3438 = vmatprep.subr.bf16.mxu0 %v2439
        %3439 = vmatpush1.bf16.msra.mxu0 %v2438
        %3440 = vmatprep.subr.bf16.mxu0 %v2443
        %3441 = vmatpush1.bf16.msra.mxu0 %v2442
        %3442 = vmatprep.subr.bf16.mxu0 %v2447
        %3443 = vmatpush1.bf16.msra.mxu0 %v2446
        %3444 = vmatprep.subr.bf16.mxu0 %v2451
        %3445 = vmatpush1.bf16.msra.mxu0 %v2450
        %3446 = vmatprep.mubr.bf16.mxu0 %v323
        %3447 = vmatmul.mubr.bf16.gmra.mrb[0].mxu0 %v322
        %v3448 = vpop.f32.mrb[0].mxu0
        %v3449 = vadd.f32 0.0, %v3448
        %v3450 = vpop.f32.mrb[0].mxu0
        %v3451 = vadd.f32 0.0, %v3450
        %v3452 = vpop.f32.mrb[0].mxu0
        %v3453 = vpop.f32.mrb[0].mxu0
        %3454 = vdwg.mxu0
        %3455 = vmatprep.subr.bf16.mxu0 %v2455
        %3456 = vmatpush1.bf16.msra.mxu0 %v2454
        %3457 = vmatprep.subr.bf16.mxu0 %v2459
        %3458 = vmatpush1.bf16.msra.mxu0 %v2458
        %3459 = vmatprep.subr.bf16.mxu0 %v2463
        %3460 = vmatpush1.bf16.msra.mxu0 %v2462
        %3461 = vmatprep.subr.bf16.mxu0 %v2467
        %3462 = vmatpush1.bf16.msra.mxu0 %v2466
        %3463 = vmatprep.subr.bf16.mxu0 %v2471
        %3464 = vmatpush1.bf16.msra.mxu0 %v2470
        %3465 = vmatprep.subr.bf16.mxu0 %v2475
        %3466 = vmatpush1.bf16.msra.mxu0 %v2474
        %3467 = vmatprep.subr.bf16.mxu0 %v2479
        %3468 = vmatpush1.bf16.msra.mxu0 %v2478
        %3469 = vmatprep.subr.bf16.mxu0 %v2483
        %3470 = vmatpush1.bf16.msra.mxu0 %v2482
        %3471 = vmatprep.subr.bf16.mxu0 %v2487
        %3472 = vmatpush1.bf16.msra.mxu0 %v2486
        %3473 = vmatprep.subr.bf16.mxu0 %v2491
        %3474 = vmatpush1.bf16.msra.mxu0 %v2490
        %3475 = vmatprep.subr.bf16.mxu0 %v2495
        %3476 = vmatpush1.bf16.msra.mxu0 %v2494
        %3477 = vmatprep.subr.bf16.mxu0 %v2499
        %3478 = vmatpush1.bf16.msra.mxu0 %v2498
        %3479 = vmatprep.subr.bf16.mxu0 %v2503
        %3480 = vmatpush1.bf16.msra.mxu0 %v2502
        %3481 = vmatprep.subr.bf16.mxu0 %v2507
        %3482 = vmatpush1.bf16.msra.mxu0 %v2506
        %3483 = vmatprep.subr.bf16.mxu0 %v2511
        %3484 = vmatpush1.bf16.msra.mxu0 %v2510
        %3485 = vmatprep.subr.bf16.mxu0 %v2515
        %3486 = vmatpush1.bf16.msra.mxu0 %v2514
        %3487 = vmatprep.mubr.bf16.mxu0 %v325
        %3488 = vmatmul.mubr.bf16.gmra.mrb[0].mxu0 %v324
        %v3489 = vpop.f32.mrb[0].mxu0
        %v3490 = vadd.f32 %v3449, %v3489
        %v3491 = vpop.f32.mrb[0].mxu0
        %v3492 = vadd.f32 %v3451, %v3491
        %v3493 = vpop.f32.mrb[0].mxu0
        %v3494 = vpop.f32.mrb[0].mxu0
        %3495 = vdwg.mxu0
        %3496 = vmatprep.subr.bf16.mxu0 %v2519
        %3497 = vmatpush1.bf16.msra.mxu0 %v2518
        %3498 = vmatprep.subr.bf16.mxu0 %v2523
        %3499 = vmatpush1.bf16.msra.mxu0 %v2522
        %3500 = vmatprep.subr.bf16.mxu0 %v2527
        %3501 = vmatpush1.bf16.msra.mxu0 %v2526
        %3502 = vmatprep.subr.bf16.mxu0 %v2531
        %3503 = vmatpush1.bf16.msra.mxu0 %v2530
        %3504 = vmatprep.subr.bf16.mxu0 %v2535
        %3505 = vmatpush1.bf16.msra.mxu0 %v2534
        %3506 = vmatprep.subr.bf16.mxu0 %v2539
        %3507 = vmatpush1.bf16.msra.mxu0 %v2538
        %3508 = vmatprep.subr.bf16.mxu0 %v2543
        %3509 = vmatpush1.bf16.msra.mxu0 %v2542
        %3510 = vmatprep.subr.bf16.mxu0 %v2547
        %3511 = vmatpush1.bf16.msra.mxu0 %v2546
        %3512 = vmatprep.subr.bf16.mxu0 %v2551
        %3513 = vmatpush1.bf16.msra.mxu0 %v2550
        %3514 = vmatprep.subr.bf16.mxu0 %v2555
        %3515 = vmatpush1.bf16.msra.mxu0 %v2554
        %3516 = vmatprep.subr.bf16.mxu0 %v2559
        %3517 = vmatpush1.bf16.msra.mxu0 %v2558
        %3518 = vmatprep.subr.bf16.mxu0 %v2563
        %3519 = vmatpush1.bf16.msra.mxu0 %v2562
        %3520 = vmatprep.subr.bf16.mxu0 %v2567
        %3521 = vmatpush1.bf16.msra.mxu0 %v2566
        %3522 = vmatprep.subr.bf16.mxu0 %v2571
        %3523 = vmatpush1.bf16.msra.mxu0 %v2570
        %3524 = vmatprep.subr.bf16.mxu0 %v2575
        %3525 = vmatpush1.bf16.msra.mxu0 %v2574
        %3526 = vmatprep.subr.bf16.mxu0 %v2579
        %3527 = vmatpush1.bf16.msra.mxu0 %v2578
        %3528 = vmatprep.mubr.bf16.mxu0 %v327
        %3529 = vmatmul.mubr.bf16.gmra.mrb[0].mxu0 %v326
        %v3530 = vpop.f32.mrb[0].mxu0
        %v3531 = vadd.f32 %v3490, %v3530
        %v3532 = vpop.f32.mrb[0].mxu0
        %v3533 = vadd.f32 %v3492, %v3532
        %v3534 = vpop.f32.mrb[0].mxu0
        %v3535 = vpop.f32.mrb[0].mxu0
        %3536 = vdwg.mxu0
        %3537 = vmatprep.subr.bf16.mxu0 %v2583
        %3538 = vmatpush1.bf16.msra.mxu0 %v2582
        %3539 = vmatprep.subr.bf16.mxu0 %v2587
        %3540 = vmatpush1.bf16.msra.mxu0 %v2586
        %3541 = vmatprep.subr.bf16.mxu0 %v2591
        %3542 = vmatpush1.bf16.msra.mxu0 %v2590
        %3543 = vmatprep.subr.bf16.mxu0 %v2595
        %3544 = vmatpush1.bf16.msra.mxu0 %v2594
        %3545 = vmatprep.subr.bf16.mxu0 %v2599
        %3546 = vmatpush1.bf16.msra.mxu0 %v2598
        %3547 = vmatprep.subr.bf16.mxu0 %v2603
        %3548 = vmatpush1.bf16.msra.mxu0 %v2602
        %3549 = vmatprep.subr.bf16.mxu0 %v2607
        %3550 = vmatpush1.bf16.msra.mxu0 %v2606
        %3551 = vmatprep.subr.bf16.mxu0 %v2611
        %3552 = vmatpush1.bf16.msra.mxu0 %v2610
        %3553 = vmatprep.subr.bf16.mxu0 %v2615
        %3554 = vmatpush1.bf16.msra.mxu0 %v2614
        %3555 = vmatprep.subr.bf16.mxu0 %v2619
        %3556 = vmatpush1.bf16.msra.mxu0 %v2618
        %3557 = vmatprep.subr.bf16.mxu0 %v2623
        %3558 = vmatpush1.bf16.msra.mxu0 %v2622
        %3559 = vmatprep.subr.bf16.mxu0 %v2627
        %3560 = vmatpush1.bf16.msra.mxu0 %v2626
        %3561 = vmatprep.subr.bf16.mxu0 %v2631
        %3562 = vmatpush1.bf16.msra.mxu0 %v2630
        %3563 = vmatprep.subr.bf16.mxu0 %v2635
        %3564 = vmatpush1.bf16.msra.mxu0 %v2634
        %3565 = vmatprep.subr.bf16.mxu0 %v2639
        %3566 = vmatpush1.bf16.msra.mxu0 %v2638
        %3567 = vmatprep.subr.bf16.mxu0 %v2643
        %3568 = vmatpush1.bf16.msra.mxu0 %v2642
        %3569 = vmatprep.mubr.bf16.mxu0 %v329
        %3570 = vmatmul.mubr.bf16.gmra.mrb[0].mxu0 %v328
        %v3571 = vpop.f32.mrb[0].mxu0
        %v3572 = vadd.f32 %v3531, %v3571
        %v3573 = vpop.f32.mrb[0].mxu0
        %v3574 = vadd.f32 %v3533, %v3573
        %v3575 = vpop.f32.mrb[0].mxu0
        %v3576 = vpop.f32.mrb[0].mxu0
        %3577 = vdwg.mxu0
        %3578 = vmatprep.subr.bf16.mxu0 %v2647
        %3579 = vmatpush1.bf16.msra.mxu0 %v2646
        %3580 = vmatprep.subr.bf16.mxu0 %v2651
        %3581 = vmatpush1.bf16.msra.mxu0 %v2650
        %3582 = vmatprep.subr.bf16.mxu0 %v2655
        %3583 = vmatpush1.bf16.msra.mxu0 %v2654
        %3584 = vmatprep.subr.bf16.mxu0 %v2659
        %3585 = vmatpush1.bf16.msra.mxu0 %v2658
        %3586 = vmatprep.subr.bf16.mxu0 %v2663
        %3587 = vmatpush1.bf16.msra.mxu0 %v2662
        %3588 = vmatprep.subr.bf16.mxu0 %v2667
        %3589 = vmatpush1.bf16.msra.mxu0 %v2666
        %3590 = vmatprep.subr.bf16.mxu0 %v2671
        %3591 = vmatpush1.bf16.msra.mxu0 %v2670
        %3592 = vmatprep.subr.bf16.mxu0 %v2675
        %3593 = vmatpush1.bf16.msra.mxu0 %v2674
        %3594 = vmatprep.subr.bf16.mxu0 %v2679
        %3595 = vmatpush1.bf16.msra.mxu0 %v2678
        %3596 = vmatprep.subr.bf16.mxu0 %v2683
        %3597 = vmatpush1.bf16.msra.mxu0 %v2682
        %3598 = vmatprep.subr.bf16.mxu0 %v2687
        %3599 = vmatpush1.bf16.msra.mxu0 %v2686
        %3600 = vmatprep.subr.bf16.mxu0 %v2691
        %3601 = vmatpush1.bf16.msra.mxu0 %v2690
        %3602 = vmatprep.subr.bf16.mxu0 %v2695
        %3603 = vmatpush1.bf16.msra.mxu0 %v2694
        %3604 = vmatprep.subr.bf16.mxu0 %v2699
        %3605 = vmatpush1.bf16.msra.mxu0 %v2698
        %3606 = vmatprep.subr.bf16.mxu0 %v2703
        %3607 = vmatpush1.bf16.msra.mxu0 %v2702
        %3608 = vmatprep.subr.bf16.mxu0 %v2707
        %3609 = vmatpush1.bf16.msra.mxu0 %v2706
        %3610 = vmatprep.mubr.bf16.mxu0 %v331
        %3611 = vmatmul.mubr.bf16.gmra.mrb[0].mxu0 %v330
        %v3612 = vpop.f32.mrb[0].mxu0
        %v3613 = vadd.f32 %v3572, %v3612
        %v3614 = vpop.f32.mrb[0].mxu0
        %v3615 = vadd.f32 %v3574, %v3614
        %v3616 = vpop.f32.mrb[0].mxu0
        %v3617 = vpop.f32.mrb[0].mxu0
        %3618 = vdwg.mxu0
        %3619 = vmatprep.subr.bf16.mxu0 %v2711
        %3620 = vmatpush1.bf16.msra.mxu0 %v2710
        %3621 = vmatprep.subr.bf16.mxu0 %v2715
        %3622 = vmatpush1.bf16.msra.mxu0 %v2714
        %3623 = vmatprep.subr.bf16.mxu0 %v2719
        %3624 = vmatpush1.bf16.msra.mxu0 %v2718
        %3625 = vmatprep.subr.bf16.mxu0 %v2723
        %3626 = vmatpush1.bf16.msra.mxu0 %v2722
        %3627 = vmatprep.subr.bf16.mxu0 %v2727
        %3628 = vmatpush1.bf16.msra.mxu0 %v2726
        %3629 = vmatprep.subr.bf16.mxu0 %v2731
        %3630 = vmatpush1.bf16.msra.mxu0 %v2730
        %3631 = vmatprep.subr.bf16.mxu0 %v2735
        %3632 = vmatpush1.bf16.msra.mxu0 %v2734
        %3633 = vmatprep.subr.bf16.mxu0 %v2739
        %3634 = vmatpush1.bf16.msra.mxu0 %v2738
        %3635 = vmatprep.subr.bf16.mxu0 %v2743
        %3636 = vmatpush1.bf16.msra.mxu0 %v2742
        %3637 = vmatprep.subr.bf16.mxu0 %v2747
        %3638 = vmatpush1.bf16.msra.mxu0 %v2746
        %3639 = vmatprep.subr.bf16.mxu0 %v2751
        %3640 = vmatpush1.bf16.msra.mxu0 %v2750
        %3641 = vmatprep.subr.bf16.mxu0 %v2755
        %3642 = vmatpush1.bf16.msra.mxu0 %v2754
        %3643 = vmatprep.subr.bf16.mxu0 %v2759
        %3644 = vmatpush1.bf16.msra.mxu0 %v2758
        %3645 = vmatprep.subr.bf16.mxu0 %v2763
        %3646 = vmatpush1.bf16.msra.mxu0 %v2762
        %3647 = vmatprep.subr.bf16.mxu0 %v2767
        %3648 = vmatpush1.bf16.msra.mxu0 %v2766
        %3649 = vmatprep.subr.bf16.mxu0 %v2771
        %3650 = vmatpush1.bf16.msra.mxu0 %v2770
        %3651 = vmatprep.mubr.bf16.mxu0 %v333
        %3652 = vmatmul.mubr.bf16.gmra.mrb[0].mxu0 %v332
        %v3653 = vpop.f32.mrb[0].mxu0
        %v3654 = vadd.f32 %v3613, %v3653
        %v3655 = vpop.f32.mrb[0].mxu0
        %v3656 = vadd.f32 %v3615, %v3655
        %v3657 = vpop.f32.mrb[0].mxu0
        %v3658 = vpop.f32.mrb[0].mxu0
        %3659 = vdwg.mxu0
        %3660 = vmatprep.subr.bf16.mxu0 %v2775
        %3661 = vmatpush1.bf16.msra.mxu0 %v2774
        %3662 = vmatprep.subr.bf16.mxu0 %v2779
        %3663 = vmatpush1.bf16.msra.mxu0 %v2778
        %3664 = vmatprep.subr.bf16.mxu0 %v2783
        %3665 = vmatpush1.bf16.msra.mxu0 %v2782
        %3666 = vmatprep.subr.bf16.mxu0 %v2787
        %3667 = vmatpush1.bf16.msra.mxu0 %v2786
        %3668 = vmatprep.subr.bf16.mxu0 %v2791
        %3669 = vmatpush1.bf16.msra.mxu0 %v2790
        %3670 = vmatprep.subr.bf16.mxu0 %v2795
        %3671 = vmatpush1.bf16.msra.mxu0 %v2794
        %3672 = vmatprep.subr.bf16.mxu0 %v2799
        %3673 = vmatpush1.bf16.msra.mxu0 %v2798
        %3674 = vmatprep.subr.bf16.mxu0 %v2803
        %3675 = vmatpush1.bf16.msra.mxu0 %v2802
        %3676 = vmatprep.subr.bf16.mxu0 %v2807
        %3677 = vmatpush1.bf16.msra.mxu0 %v2806
        %3678 = vmatprep.subr.bf16.mxu0 %v2811
        %3679 = vmatpush1.bf16.msra.mxu0 %v2810
        %3680 = vmatprep.subr.bf16.mxu0 %v2815
        %3681 = vmatpush1.bf16.msra.mxu0 %v2814
        %3682 = vmatprep.subr.bf16.mxu0 %v2819
        %3683 = vmatpush1.bf16.msra.mxu0 %v2818
        %3684 = vmatprep.subr.bf16.mxu0 %v2823
        %3685 = vmatpush1.bf16.msra.mxu0 %v2822
        %3686 = vmatprep.subr.bf16.mxu0 %v2827
        %3687 = vmatpush1.bf16.msra.mxu0 %v2826
        %3688 = vmatprep.subr.bf16.mxu0 %v2831
        %3689 = vmatpush1.bf16.msra.mxu0 %v2830
        %3690 = vmatprep.subr.bf16.mxu0 %v2835
        %3691 = vmatpush1.bf16.msra.mxu0 %v2834
        %3692 = vmatprep.mubr.bf16.mxu0 %v335
        %3693 = vmatmul.mubr.bf16.gmra.mrb[0].mxu0 %v334
        %v3694 = vpop.f32.mrb[0].mxu0
        %v3695 = vadd.f32 %v3654, %v3694
        %v3696 = vpop.f32.mrb[0].mxu0
        %v3697 = vadd.f32 %v3656, %v3696
        %v3698 = vpop.f32.mrb[0].mxu0
        %v3699 = vpop.f32.mrb[0].mxu0
        %3700 = vdwg.mxu0
        %3701 = vmatprep.subr.bf16.mxu0 %v2839
        %3702 = vmatpush1.bf16.msra.mxu0 %v2838
        %3703 = vmatprep.subr.bf16.mxu0 %v2843
        %3704 = vmatpush1.bf16.msra.mxu0 %v2842
        %3705 = vmatprep.subr.bf16.mxu0 %v2847
        %3706 = vmatpush1.bf16.msra.mxu0 %v2846
        %3707 = vmatprep.subr.bf16.mxu0 %v2851
        %3708 = vmatpush1.bf16.msra.mxu0 %v2850
        %3709 = vmatprep.subr.bf16.mxu0 %v2855
        %3710 = vmatpush1.bf16.msra.mxu0 %v2854
        %3711 = vmatprep.subr.bf16.mxu0 %v2859
        %3712 = vmatpush1.bf16.msra.mxu0 %v2858
        %3713 = vmatprep.subr.bf16.mxu0 %v2863
        %3714 = vmatpush1.bf16.msra.mxu0 %v2862
        %3715 = vmatprep.subr.bf16.mxu0 %v2867
        %3716 = vmatpush1.bf16.msra.mxu0 %v2866
        %3717 = vmatprep.subr.bf16.mxu0 %v2871
        %3718 = vmatpush1.bf16.msra.mxu0 %v2870
        %3719 = vmatprep.subr.bf16.mxu0 %v2875
        %3720 = vmatpush1.bf16.msra.mxu0 %v2874
        %3721 = vmatprep.subr.bf16.mxu0 %v2879
        %3722 = vmatpush1.bf16.msra.mxu0 %v2878
        %3723 = vmatprep.subr.bf16.mxu0 %v2883
        %3724 = vmatpush1.bf16.msra.mxu0 %v2882
        %3725 = vmatprep.subr.bf16.mxu0 %v2887
        %3726 = vmatpush1.bf16.msra.mxu0 %v2886
        %3727 = vmatprep.subr.bf16.mxu0 %v2891
        %3728 = vmatpush1.bf16.msra.mxu0 %v2890
        %3729 = vmatprep.subr.bf16.mxu0 %v2895
        %3730 = vmatpush1.bf16.msra.mxu0 %v2894
        %3731 = vmatprep.subr.bf16.mxu0 %v2899
        %3732 = vmatpush1.bf16.msra.mxu0 %v2898
        %3733 = vmatprep.mubr.bf16.mxu0 %v337
        %3734 = vmatmul.mubr.bf16.gmra.mrb[0].mxu0 %v336
        %v3735 = vpop.f32.mrb[0].mxu0
        %v3736 = vadd.f32 %v3695, %v3735
        %v3737 = vpop.f32.mrb[0].mxu0
        %v3738 = vadd.f32 %v3697, %v3737
        %v3739 = vpop.f32.mrb[0].mxu0
        %v3740 = vpop.f32.mrb[0].mxu0
        %3741 = vdwg.mxu0
        %3742 = vmatprep.subr.bf16.mxu0 %v2393
        %3743 = vmatpush1.bf16.msra.mxu0 %v2392
        %3744 = vmatprep.subr.bf16.mxu0 %v2397
        %3745 = vmatpush1.bf16.msra.mxu0 %v2396
        %3746 = vmatprep.subr.bf16.mxu0 %v2401
        %3747 = vmatpush1.bf16.msra.mxu0 %v2400
        %3748 = vmatprep.subr.bf16.mxu0 %v2405
        %3749 = vmatpush1.bf16.msra.mxu0 %v2404
        %3750 = vmatprep.subr.bf16.mxu0 %v2409
        %3751 = vmatpush1.bf16.msra.mxu0 %v2408
        %3752 = vmatprep.subr.bf16.mxu0 %v2413
        %3753 = vmatpush1.bf16.msra.mxu0 %v2412
        %3754 = vmatprep.subr.bf16.mxu0 %v2417
        %3755 = vmatpush1.bf16.msra.mxu0 %v2416
        %3756 = vmatprep.subr.bf16.mxu0 %v2421
        %3757 = vmatpush1.bf16.msra.mxu0 %v2420
        %3758 = vmatprep.subr.bf16.mxu0 %v2425
        %3759 = vmatpush1.bf16.msra.mxu0 %v2424
        %3760 = vmatprep.subr.bf16.mxu0 %v2429
        %3761 = vmatpush1.bf16.msra.mxu0 %v2428
        %3762 = vmatprep.subr.bf16.mxu0 %v2433
        %3763 = vmatpush1.bf16.msra.mxu0 %v2432
        %3764 = vmatprep.subr.bf16.mxu0 %v2437
        %3765 = vmatpush1.bf16.msra.mxu0 %v2436
        %3766 = vmatprep.subr.bf16.mxu0 %v2441
        %3767 = vmatpush1.bf16.msra.mxu0 %v2440
        %3768 = vmatprep.subr.bf16.mxu0 %v2445
        %3769 = vmatpush1.bf16.msra.mxu0 %v2444
        %3770 = vmatprep.subr.bf16.mxu0 %v2449
        %3771 = vmatpush1.bf16.msra.mxu0 %v2448
        %3772 = vmatprep.subr.bf16.mxu0 %v2453
        %3773 = vmatpush1.bf16.msra.mxu0 %v2452
        %3774 = vmatprep.mubr.bf16.mxu0 %v323
        %3775 = vmatmul.mubr.bf16.gmra.mrb[0].mxu0 %v322
        %v3776 = vpop.f32.mrb[0].mxu0
        %v3777 = vadd.f32 0.0, %v3776
        %v3778 = vpop.f32.mrb[0].mxu0
        %v3779 = vadd.f32 0.0, %v3778
        %v3780 = vpop.f32.mrb[0].mxu0
        %v3781 = vpop.f32.mrb[0].mxu0
        %3782 = vdwg.mxu0
        %3783 = vmatprep.subr.bf16.mxu0 %v2457
        %3784 = vmatpush1.bf16.msra.mxu0 %v2456
        %3785 = vmatprep.subr.bf16.mxu0 %v2461
        %3786 = vmatpush1.bf16.msra.mxu0 %v2460
        %3787 = vmatprep.subr.bf16.mxu0 %v2465
        %3788 = vmatpush1.bf16.msra.mxu0 %v2464
        %3789 = vmatprep.subr.bf16.mxu0 %v2469
        %3790 = vmatpush1.bf16.msra.mxu0 %v2468
        %3791 = vmatprep.subr.bf16.mxu0 %v2473
        %3792 = vmatpush1.bf16.msra.mxu0 %v2472
        %3793 = vmatprep.subr.bf16.mxu0 %v2477
        %3794 = vmatpush1.bf16.msra.mxu0 %v2476
        %3795 = vmatprep.subr.bf16.mxu0 %v2481
        %3796 = vmatpush1.bf16.msra.mxu0 %v2480
        %3797 = vmatprep.subr.bf16.mxu0 %v2485
        %3798 = vmatpush1.bf16.msra.mxu0 %v2484
        %3799 = vmatprep.subr.bf16.mxu0 %v2489
        %3800 = vmatpush1.bf16.msra.mxu0 %v2488
        %3801 = vmatprep.subr.bf16.mxu0 %v2493
        %3802 = vmatpush1.bf16.msra.mxu0 %v2492
        %3803 = vmatprep.subr.bf16.mxu0 %v2497
        %3804 = vmatpush1.bf16.msra.mxu0 %v2496
        %3805 = vmatprep.subr.bf16.mxu0 %v2501
        %3806 = vmatpush1.bf16.msra.mxu0 %v2500
        %3807 = vmatprep.subr.bf16.mxu0 %v2505
        %3808 = vmatpush1.bf16.msra.mxu0 %v2504
        %3809 = vmatprep.subr.bf16.mxu0 %v2509
        %3810 = vmatpush1.bf16.msra.mxu0 %v2508
        %3811 = vmatprep.subr.bf16.mxu0 %v2513
        %3812 = vmatpush1.bf16.msra.mxu0 %v2512
        %3813 = vmatprep.subr.bf16.mxu0 %v2517
        %3814 = vmatpush1.bf16.msra.mxu0 %v2516
        %3815 = vmatprep.mubr.bf16.mxu0 %v325
        %3816 = vmatmul.mubr.bf16.gmra.mrb[0].mxu0 %v324
        %v3817 = vpop.f32.mrb[0].mxu0
        %v3818 = vadd.f32 %v3777, %v3817
        %v3819 = vpop.f32.mrb[0].mxu0
        %v3820 = vadd.f32 %v3779, %v3819
        %v3821 = vpop.f32.mrb[0].mxu0
        %v3822 = vpop.f32.mrb[0].mxu0
        %3823 = vdwg.mxu0
        %3824 = vmatprep.subr.bf16.mxu0 %v2521
        %3825 = vmatpush1.bf16.msra.mxu0 %v2520
        %3826 = vmatprep.subr.bf16.mxu0 %v2525
        %3827 = vmatpush1.bf16.msra.mxu0 %v2524
        %3828 = vmatprep.subr.bf16.mxu0 %v2529
        %3829 = vmatpush1.bf16.msra.mxu0 %v2528
        %3830 = vmatprep.subr.bf16.mxu0 %v2533
        %3831 = vmatpush1.bf16.msra.mxu0 %v2532
        %3832 = vmatprep.subr.bf16.mxu0 %v2537
        %3833 = vmatpush1.bf16.msra.mxu0 %v2536
        %3834 = vmatprep.subr.bf16.mxu0 %v2541
        %3835 = vmatpush1.bf16.msra.mxu0 %v2540
        %3836 = vmatprep.subr.bf16.mxu0 %v2545
        %3837 = vmatpush1.bf16.msra.mxu0 %v2544
        %3838 = vmatprep.subr.bf16.mxu0 %v2549
        %3839 = vmatpush1.bf16.msra.mxu0 %v2548
        %3840 = vmatprep.subr.bf16.mxu0 %v2553
        %3841 = vmatpush1.bf16.msra.mxu0 %v2552
        %3842 = vmatprep.subr.bf16.mxu0 %v2557
        %3843 = vmatpush1.bf16.msra.mxu0 %v2556
        %3844 = vmatprep.subr.bf16.mxu0 %v2561
        %3845 = vmatpush1.bf16.msra.mxu0 %v2560
        %3846 = vmatprep.subr.bf16.mxu0 %v2565
        %3847 = vmatpush1.bf16.msra.mxu0 %v2564
        %3848 = vmatprep.subr.bf16.mxu0 %v2569
        %3849 = vmatpush1.bf16.msra.mxu0 %v2568
        %3850 = vmatprep.subr.bf16.mxu0 %v2573
        %3851 = vmatpush1.bf16.msra.mxu0 %v2572
        %3852 = vmatprep.subr.bf16.mxu0 %v2577
        %3853 = vmatpush1.bf16.msra.mxu0 %v2576
        %3854 = vmatprep.subr.bf16.mxu0 %v2581
        %3855 = vmatpush1.bf16.msra.mxu0 %v2580
        %3856 = vmatprep.mubr.bf16.mxu0 %v327
        %3857 = vmatmul.mubr.bf16.gmra.mrb[0].mxu0 %v326
        %v3858 = vpop.f32.mrb[0].mxu0
        %v3859 = vadd.f32 %v3818, %v3858
        %v3860 = vpop.f32.mrb[0].mxu0
        %v3861 = vadd.f32 %v3820, %v3860
        %v3862 = vpop.f32.mrb[0].mxu0
        %v3863 = vpop.f32.mrb[0].mxu0
        %3864 = vdwg.mxu0
        %3865 = vmatprep.subr.bf16.mxu0 %v2585
        %3866 = vmatpush1.bf16.msra.mxu0 %v2584
        %3867 = vmatprep.subr.bf16.mxu0 %v2589
        %3868 = vmatpush1.bf16.msra.mxu0 %v2588
        %3869 = vmatprep.subr.bf16.mxu0 %v2593
        %3870 = vmatpush1.bf16.msra.mxu0 %v2592
        %3871 = vmatprep.subr.bf16.mxu0 %v2597
        %3872 = vmatpush1.bf16.msra.mxu0 %v2596
        %3873 = vmatprep.subr.bf16.mxu0 %v2601
        %3874 = vmatpush1.bf16.msra.mxu0 %v2600
        %3875 = vmatprep.subr.bf16.mxu0 %v2605
        %3876 = vmatpush1.bf16.msra.mxu0 %v2604
        %3877 = vmatprep.subr.bf16.mxu0 %v2609
        %3878 = vmatpush1.bf16.msra.mxu0 %v2608
        %3879 = vmatprep.subr.bf16.mxu0 %v2613
        %3880 = vmatpush1.bf16.msra.mxu0 %v2612
        %3881 = vmatprep.subr.bf16.mxu0 %v2617
        %3882 = vmatpush1.bf16.msra.mxu0 %v2616
        %3883 = vmatprep.subr.bf16.mxu0 %v2621
        %3884 = vmatpush1.bf16.msra.mxu0 %v2620
        %3885 = vmatprep.subr.bf16.mxu0 %v2625
        %3886 = vmatpush1.bf16.msra.mxu0 %v2624
        %3887 = vmatprep.subr.bf16.mxu0 %v2629
        %3888 = vmatpush1.bf16.msra.mxu0 %v2628
        %3889 = vmatprep.subr.bf16.mxu0 %v2633
        %3890 = vmatpush1.bf16.msra.mxu0 %v2632
        %3891 = vmatprep.subr.bf16.mxu0 %v2637
        %3892 = vmatpush1.bf16.msra.mxu0 %v2636
        %3893 = vmatprep.subr.bf16.mxu0 %v2641
        %3894 = vmatpush1.bf16.msra.mxu0 %v2640
        %3895 = vmatprep.subr.bf16.mxu0 %v2645
        %3896 = vmatpush1.bf16.msra.mxu0 %v2644
        %3897 = vmatprep.mubr.bf16.mxu0 %v329
        %3898 = vmatmul.mubr.bf16.gmra.mrb[0].mxu0 %v328
        %v3899 = vpop.f32.mrb[0].mxu0
        %v3900 = vadd.f32 %v3859, %v3899
        %v3901 = vpop.f32.mrb[0].mxu0
        %v3902 = vadd.f32 %v3861, %v3901
        %v3903 = vpop.f32.mrb[0].mxu0
        %v3904 = vpop.f32.mrb[0].mxu0
        %3905 = vdwg.mxu0
        %3906 = vmatprep.subr.bf16.mxu0 %v2649
        %3907 = vmatpush1.bf16.msra.mxu0 %v2648
        %3908 = vmatprep.subr.bf16.mxu0 %v2653
        %3909 = vmatpush1.bf16.msra.mxu0 %v2652
        %3910 = vmatprep.subr.bf16.mxu0 %v2657
        %3911 = vmatpush1.bf16.msra.mxu0 %v2656
        %3912 = vmatprep.subr.bf16.mxu0 %v2661
        %3913 = vmatpush1.bf16.msra.mxu0 %v2660
        %3914 = vmatprep.subr.bf16.mxu0 %v2665
        %3915 = vmatpush1.bf16.msra.mxu0 %v2664
        %3916 = vmatprep.subr.bf16.mxu0 %v2669
        %3917 = vmatpush1.bf16.msra.mxu0 %v2668
        %3918 = vmatprep.subr.bf16.mxu0 %v2673
        %3919 = vmatpush1.bf16.msra.mxu0 %v2672
        %3920 = vmatprep.subr.bf16.mxu0 %v2677
        %3921 = vmatpush1.bf16.msra.mxu0 %v2676
        %3922 = vmatprep.subr.bf16.mxu0 %v2681
        %3923 = vmatpush1.bf16.msra.mxu0 %v2680
        %3924 = vmatprep.subr.bf16.mxu0 %v2685
        %3925 = vmatpush1.bf16.msra.mxu0 %v2684
        %3926 = vmatprep.subr.bf16.mxu0 %v2689
        %3927 = vmatpush1.bf16.msra.mxu0 %v2688
        %3928 = vmatprep.subr.bf16.mxu0 %v2693
        %3929 = vmatpush1.bf16.msra.mxu0 %v2692
        %3930 = vmatprep.subr.bf16.mxu0 %v2697
        %3931 = vmatpush1.bf16.msra.mxu0 %v2696
        %3932 = vmatprep.subr.bf16.mxu0 %v2701
        %3933 = vmatpush1.bf16.msra.mxu0 %v2700
        %3934 = vmatprep.subr.bf16.mxu0 %v2705
        %3935 = vmatpush1.bf16.msra.mxu0 %v2704
        %3936 = vmatprep.subr.bf16.mxu0 %v2709
        %3937 = vmatpush1.bf16.msra.mxu0 %v2708
        %3938 = vmatprep.mubr.bf16.mxu0 %v331
        %3939 = vmatmul.mubr.bf16.gmra.mrb[0].mxu0 %v330
        %v3940 = vpop.f32.mrb[0].mxu0
        %v3941 = vadd.f32 %v3900, %v3940
        %v3942 = vpop.f32.mrb[0].mxu0
        %v3943 = vadd.f32 %v3902, %v3942
        %v3944 = vpop.f32.mrb[0].mxu0
        %v3945 = vpop.f32.mrb[0].mxu0
        %3946 = vdwg.mxu0
        %3947 = vmatprep.subr.bf16.mxu0 %v2713
        %3948 = vmatpush1.bf16.msra.mxu0 %v2712
        %3949 = vmatprep.subr.bf16.mxu0 %v2717
        %3950 = vmatpush1.bf16.msra.mxu0 %v2716
        %3951 = vmatprep.subr.bf16.mxu0 %v2721
        %3952 = vmatpush1.bf16.msra.mxu0 %v2720
        %3953 = vmatprep.subr.bf16.mxu0 %v2725
        %3954 = vmatpush1.bf16.msra.mxu0 %v2724
        %3955 = vmatprep.subr.bf16.mxu0 %v2729
        %3956 = vmatpush1.bf16.msra.mxu0 %v2728
        %3957 = vmatprep.subr.bf16.mxu0 %v2733
        %3958 = vmatpush1.bf16.msra.mxu0 %v2732
        %3959 = vmatprep.subr.bf16.mxu0 %v2737
        %3960 = vmatpush1.bf16.msra.mxu0 %v2736
        %3961 = vmatprep.subr.bf16.mxu0 %v2741
        %3962 = vmatpush1.bf16.msra.mxu0 %v2740
        %3963 = vmatprep.subr.bf16.mxu0 %v2745
        %3964 = vmatpush1.bf16.msra.mxu0 %v2744
        %3965 = vmatprep.subr.bf16.mxu0 %v2749
        %3966 = vmatpush1.bf16.msra.mxu0 %v2748
        %3967 = vmatprep.subr.bf16.mxu0 %v2753
        %3968 = vmatpush1.bf16.msra.mxu0 %v2752
        %3969 = vmatprep.subr.bf16.mxu0 %v2757
        %3970 = vmatpush1.bf16.msra.mxu0 %v2756
        %3971 = vmatprep.subr.bf16.mxu0 %v2761
        %3972 = vmatpush1.bf16.msra.mxu0 %v2760
        %3973 = vmatprep.subr.bf16.mxu0 %v2765
        %3974 = vmatpush1.bf16.msra.mxu0 %v2764
        %3975 = vmatprep.subr.bf16.mxu0 %v2769
        %3976 = vmatpush1.bf16.msra.mxu0 %v2768
        %3977 = vmatprep.subr.bf16.mxu0 %v2773
        %3978 = vmatpush1.bf16.msra.mxu0 %v2772
        %3979 = vmatprep.mubr.bf16.mxu0 %v333
        %3980 = vmatmul.mubr.bf16.gmra.mrb[0].mxu0 %v332
        %v3981 = vpop.f32.mrb[0].mxu0
        %v3982 = vadd.f32 %v3941, %v3981
        %v3983 = vpop.f32.mrb[0].mxu0
        %v3984 = vadd.f32 %v3943, %v3983
        %v3985 = vpop.f32.mrb[0].mxu0
        %v3986 = vpop.f32.mrb[0].mxu0
        %3987 = vdwg.mxu0
        %3988 = vmatprep.subr.bf16.mxu0 %v2777
        %3989 = vmatpush1.bf16.msra.mxu0 %v2776
        %3990 = vmatprep.subr.bf16.mxu0 %v2781
        %3991 = vmatpush1.bf16.msra.mxu0 %v2780
        %3992 = vmatprep.subr.bf16.mxu0 %v2785
        %3993 = vmatpush1.bf16.msra.mxu0 %v2784
        %3994 = vmatprep.subr.bf16.mxu0 %v2789
        %3995 = vmatpush1.bf16.msra.mxu0 %v2788
        %3996 = vmatprep.subr.bf16.mxu0 %v2793
        %3997 = vmatpush1.bf16.msra.mxu0 %v2792
        %3998 = vmatprep.subr.bf16.mxu0 %v2797
        %3999 = vmatpush1.bf16.msra.mxu0 %v2796
        %4000 = vmatprep.subr.bf16.mxu0 %v2801
        %4001 = vmatpush1.bf16.msra.mxu0 %v2800
        %4002 = vmatprep.subr.bf16.mxu0 %v2805
        %4003 = vmatpush1.bf16.msra.mxu0 %v2804
        %4004 = vmatprep.subr.bf16.mxu0 %v2809
        %4005 = vmatpush1.bf16.msra.mxu0 %v2808
        %4006 = vmatprep.subr.bf16.mxu0 %v2813
        %4007 = vmatpush1.bf16.msra.mxu0 %v2812
        %4008 = vmatprep.subr.bf16.mxu0 %v2817
        %4009 = vmatpush1.bf16.msra.mxu0 %v2816
        %4010 = vmatprep.subr.bf16.mxu0 %v2821
        %4011 = vmatpush1.bf16.msra.mxu0 %v2820
        %4012 = vmatprep.subr.bf16.mxu0 %v2825
        %4013 = vmatpush1.bf16.msra.mxu0 %v2824
        %4014 = vmatprep.subr.bf16.mxu0 %v2829
        %4015 = vmatpush1.bf16.msra.mxu0 %v2828
        %4016 = vmatprep.subr.bf16.mxu0 %v2833
        %4017 = vmatpush1.bf16.msra.mxu0 %v2832
        %4018 = vmatprep.subr.bf16.mxu0 %v2837
        %4019 = vmatpush1.bf16.msra.mxu0 %v2836
        %4020 = vmatprep.mubr.bf16.mxu0 %v335
        %4021 = vmatmul.mubr.bf16.gmra.mrb[0].mxu0 %v334
        %v4022 = vpop.f32.mrb[0].mxu0
        %v4023 = vadd.f32 %v3982, %v4022
        %v4024 = vpop.f32.mrb[0].mxu0
        %v4025 = vadd.f32 %v3984, %v4024
        %v4026 = vpop.f32.mrb[0].mxu0
        %v4027 = vpop.f32.mrb[0].mxu0
        %4028 = vdwg.mxu0
        %4029 = vmatprep.subr.bf16.mxu0 %v2841
        %4030 = vmatpush1.bf16.msra.mxu0 %v2840
        %4031 = vmatprep.subr.bf16.mxu0 %v2845
        %4032 = vmatpush1.bf16.msra.mxu0 %v2844
        %4033 = vmatprep.subr.bf16.mxu0 %v2849
        %4034 = vmatpush1.bf16.msra.mxu0 %v2848
        %4035 = vmatprep.subr.bf16.mxu0 %v2853
        %4036 = vmatpush1.bf16.msra.mxu0 %v2852
        %4037 = vmatprep.subr.bf16.mxu0 %v2857
        %4038 = vmatpush1.bf16.msra.mxu0 %v2856
        %4039 = vmatprep.subr.bf16.mxu0 %v2861
        %4040 = vmatpush1.bf16.msra.mxu0 %v2860
        %4041 = vmatprep.subr.bf16.mxu0 %v2865
        %4042 = vmatpush1.bf16.msra.mxu0 %v2864
        %4043 = vmatprep.subr.bf16.mxu0 %v2869
        %4044 = vmatpush1.bf16.msra.mxu0 %v2868
        %4045 = vmatprep.subr.bf16.mxu0 %v2873
        %4046 = vmatpush1.bf16.msra.mxu0 %v2872
        %4047 = vmatprep.subr.bf16.mxu0 %v2877
        %4048 = vmatpush1.bf16.msra.mxu0 %v2876
        %4049 = vmatprep.subr.bf16.mxu0 %v2881
        %4050 = vmatpush1.bf16.msra.mxu0 %v2880
        %4051 = vmatprep.subr.bf16.mxu0 %v2885
        %4052 = vmatpush1.bf16.msra.mxu0 %v2884
        %4053 = vmatprep.subr.bf16.mxu0 %v2889
        %4054 = vmatpush1.bf16.msra.mxu0 %v2888
        %4055 = vmatprep.subr.bf16.mxu0 %v2893
        %4056 = vmatpush1.bf16.msra.mxu0 %v2892
        %4057 = vmatprep.subr.bf16.mxu0 %v2897
        %4058 = vmatpush1.bf16.msra.mxu0 %v2896
        %4059 = vmatprep.subr.bf16.mxu0 %v2901
        %4060 = vmatpush1.bf16.msra.mxu0 %v2900
        %4061 = vmatprep.mubr.bf16.mxu0 %v337
        %4062 = vmatmul.mubr.bf16.gmra.mrb[0].mxu0 %v336
        %v4063 = vpop.f32.mrb[0].mxu0
        %v4064 = vadd.f32 %v4023, %v4063
        %v4065 = vpop.f32.mrb[0].mxu0
        %v4066 = vadd.f32 %v4025, %v4065
        %v4067 = vpop.f32.mrb[0].mxu0
        %v4068 = vpop.f32.mrb[0].mxu0
        %4069 = vdwg.mxu0
        %v4070 = vadd.f32 %v338, %v3736
        %v4071 = vadd.f32 %v339, %v3738
        %v4072 = vadd.f32 %v340, %v4064
        %v4073 = vadd.f32 %v341, %v4066
        %4074 = vst [vmem:[#allocation2] sm:$0xff] %v4070
        %4075 = vst [vmem:[#allocation2 + $0x8] sm:$0xff] %v4071
        %4076 = vst [vmem:[#allocation2 + $0x10] sm:$0xff] %v4072
        %4077 = vst [vmem:[#allocation2 + $0x18] sm:$0xff] %v4073
        %p4078 = scmp.eq.s32.totalorder %s24, 1
        // Predicated region
        $region61: #{tpu_custom_call.1} parent=39 // pred_check
          %p4079 = pneg %p4078
        $region62: #{tpu_custom_call.1} parent=39 // pred_check_branch
          %4081 = sbr.rel (%p4079) target = $region64
        $region63: #{tpu_custom_call.1} parent=39 // pred_region
          %v4082 = vld [vmem:[#allocation2] sm:$0xff]
          %v4083 = vld [vmem:[#allocation2 + $0x8] sm:$0xff]
          %v4084 = vld [vmem:[#allocation2 + $0x10] sm:$0xff]
          %v4085 = vld [vmem:[#allocation2 + $0x18] sm:$0xff]
          %v4086 = vld [vmem:[#allocation8] sm:$0xf]
          %v4088 = vlaneseq
          %v4089 = vshrl.u32 %v4088, 7
          %v4090 = vsub.s32 0, %v4089
          %v4091 = vrot.slane %v4086, %v4090
          %v4092 = vlaneseq
          %v4093 = vshrl.u32 %v4092, 7
          %v4094 = vsub.s32 1, %v4093
          %v4095 = vrot.slane %v4086, %v4094
          %v4096 = vlaneseq
          %v4097 = vshrl.u32 %v4096, 7
          %v4098 = vsub.s32 2, %v4097
          %v4099 = vrot.slane %v4086, %v4098
          %v4100 = vlaneseq
          %v4101 = vshrl.u32 %v4100, 7
          %v4102 = vsub.s32 3, %v4101
          %v4103 = vrot.slane %v4086, %v4102
          %v4108 = vadd.f32 %v4082, %v4091
          %v4109 = vadd.f32 %v4083, %v4095
          %v4110 = vadd.f32 %v4084, %v4099
          %v4111 = vadd.f32 %v4085, %v4103
          %v4112 = vxor.u32 %v4108, 2147483648
          %v4113 = vxor.u32 %v4109, 2147483648
          %v4114 = vxor.u32 %v4110, 2147483648
          %v4115 = vxor.u32 %v4111, 2147483648
          %v4116 = vmul.f32 %v4112, 1.442695
          %v4117 = vpow.pop %v4116
          %v4118 = vmul.f32 %v4113, 1.442695
          %v4119 = vpow.pop %v4118
          %v4120 = vmul.f32 %v4114, 1.442695
          %v4121 = vpow.pop %v4120
          %v4122 = vmul.f32 %v4115, 1.442695
          %v4123 = vpow.pop %v4122
          %v4124 = vadd.f32 %v4117, 1.0
          %v4125 = vadd.f32 %v4119, 1.0
          %v4126 = vadd.f32 %v4121, 1.0
          %v4127 = vadd.f32 %v4123, 1.0
          %v4128 = vrcp.pop %v4124
          %v4129 = vmul.f32 1.0, %v4128
          %v4130 = vrcp.pop %v4125
          %v4131 = vmul.f32 1.0, %v4130
          %v4132 = vrcp.pop %v4126
          %v4133 = vmul.f32 1.0, %v4132
          %v4134 = vrcp.pop %v4127
          %v4135 = vmul.f32 1.0, %v4134
          %v4136 = vpack.c.bf16 %v4129, %v4129
          %v4137 = vpack.c.bf16 %v4131, %v4131
          %v4138 = vpack.c.bf16 %v4133, %v4133
          %v4139 = vpack.c.bf16 %v4135, %v4135
          %v4140 = vld [vmem:[%s3] sm:$0xf]
          %v4141 = vld [vmem:[%s3 + $0x4] sm:$0xf]
          %v4142 = vld [vmem:[%s3 + $0x8] sm:$0xf]
          %v4143 = vld [vmem:[%s3 + $0xc] sm:$0xf]
          %v4144 = vld [vmem:[%s3 + $0x10] sm:$0xf]
          %v4145 = vld [vmem:[%s3 + $0x14] sm:$0xf]
          %v4146 = vld [vmem:[%s3 + $0x18] sm:$0xf]
          %v4147 = vld [vmem:[%s3 + $0x1c] sm:$0xf]
          %v4148 = vld [vmem:[%s3 + $0x20] sm:$0xf]
          %v4149 = vld [vmem:[%s3 + $0x24] sm:$0xf]
          %v4150 = vld [vmem:[%s3 + $0x28] sm:$0xf]
          %v4151 = vld [vmem:[%s3 + $0x2c] sm:$0xf]
          %v4152 = vld [vmem:[%s3 + $0x30] sm:$0xf]
          %v4153 = vld [vmem:[%s3 + $0x34] sm:$0xf]
          %v4154 = vld [vmem:[%s3 + $0x38] sm:$0xf]
          %v4155 = vld [vmem:[%s3 + $0x3c] sm:$0xf]
          %v4156 = vld [vmem:[%s3 + $0x40] sm:$0xf]
          %v4157 = vld [vmem:[%s3 + $0x44] sm:$0xf]
          %v4158 = vld [vmem:[%s3 + $0x48] sm:$0xf]
          %v4159 = vld [vmem:[%s3 + $0x4c] sm:$0xf]
          %v4160 = vld [vmem:[%s3 + $0x50] sm:$0xf]
          %v4161 = vld [vmem:[%s3 + $0x54] sm:$0xf]
          %v4162 = vld [vmem:[%s3 + $0x58] sm:$0xf]
          %v4163 = vld [vmem:[%s3 + $0x5c] sm:$0xf]
          %v4164 = vld [vmem:[%s3 + $0x60] sm:$0xf]
          %v4165 = vld [vmem:[%s3 + $0x64] sm:$0xf]
          %v4166 = vld [vmem:[%s3 + $0x68] sm:$0xf]
          %v4167 = vld [vmem:[%s3 + $0x6c] sm:$0xf]
          %v4168 = vld [vmem:[%s3 + $0x70] sm:$0xf]
          %v4169 = vld [vmem:[%s3 + $0x74] sm:$0xf]
          %v4170 = vld [vmem:[%s3 + $0x78] sm:$0xf]
          %v4171 = vld [vmem:[%s3 + $0x7c] sm:$0xf]
          %v4172 = vld [vmem:[%s3 + $0x80] sm:$0xf]
          %v4173 = vld [vmem:[%s3 + $0x84] sm:$0xf]
          %v4174 = vld [vmem:[%s3 + $0x88] sm:$0xf]
          %v4175 = vld [vmem:[%s3 + $0x8c] sm:$0xf]
          %v4176 = vld [vmem:[%s3 + $0x90] sm:$0xf]
          %v4177 = vld [vmem:[%s3 + $0x94] sm:$0xf]
          %v4178 = vld [vmem:[%s3 + $0x98] sm:$0xf]
          %v4179 = vld [vmem:[%s3 + $0x9c] sm:$0xf]
          %v4180 = vld [vmem:[%s3 + $0xa0] sm:$0xf]
          %v4181 = vld [vmem:[%s3 + $0xa4] sm:$0xf]
          %v4182 = vld [vmem:[%s3 + $0xa8] sm:$0xf]
          %v4183 = vld [vmem:[%s3 + $0xac] sm:$0xf]
          %v4184 = vld [vmem:[%s3 + $0xb0] sm:$0xf]
          %v4185 = vld [vmem:[%s3 + $0xb4] sm:$0xf]
          %v4186 = vld [vmem:[%s3 + $0xb8] sm:$0xf]
          %v4187 = vld [vmem:[%s3 + $0xbc] sm:$0xf]
          %v4188 = vld [vmem:[%s3 + $0xc0] sm:$0xf]
          %v4189 = vld [vmem:[%s3 + $0xc4] sm:$0xf]
          %v4190 = vld [vmem:[%s3 + $0xc8] sm:$0xf]
          %v4191 = vld [vmem:[%s3 + $0xcc] sm:$0xf]
          %v4192 = vld [vmem:[%s3 + $0xd0] sm:$0xf]
          %v4193 = vld [vmem:[%s3 + $0xd4] sm:$0xf]
          %v4194 = vld [vmem:[%s3 + $0xd8] sm:$0xf]
          %v4195 = vld [vmem:[%s3 + $0xdc] sm:$0xf]
          %v4196 = vld [vmem:[%s3 + $0xe0] sm:$0xf]
          %v4197 = vld [vmem:[%s3 + $0xe4] sm:$0xf]
          %v4198 = vld [vmem:[%s3 + $0xe8] sm:$0xf]
          %v4199 = vld [vmem:[%s3 + $0xec] sm:$0xf]
          %v4200 = vld [vmem:[%s3 + $0xf0] sm:$0xf]
          %v4201 = vld [vmem:[%s3 + $0xf4] sm:$0xf]
          %v4202 = vld [vmem:[%s3 + $0xf8] sm:$0xf]
          %v4203 = vld [vmem:[%s3 + $0xfc] sm:$0xf]
          %v4204 = vld [vmem:[#allocation9] sm:$0x1]
          %v4206 = vlaneseq
          %v4207 = vshrl.u32 %v4206, 7
          %v4208 = vsub.s32 0, %v4207
          %v4209 = vrot.slane %v4204, %v4208
          %v4275 = vunpack.c.l.b16 %v4140
          %v4276 = vunpack.c.l.b16 %v4141
          %v4277 = vunpack.c.l.b16 %v4142
          %v4278 = vunpack.c.l.b16 %v4143
          %v4279 = vunpack.c.l.b16 %v4144
          %v4280 = vunpack.c.l.b16 %v4145
          %v4281 = vunpack.c.l.b16 %v4146
          %v4282 = vunpack.c.l.b16 %v4147
          %v4283 = vunpack.c.l.b16 %v4148
          %v4284 = vunpack.c.l.b16 %v4149
          %v4285 = vunpack.c.l.b16 %v4150
          %v4286 = vunpack.c.l.b16 %v4151
          %v4287 = vunpack.c.l.b16 %v4152
          %v4288 = vunpack.c.l.b16 %v4153
          %v4289 = vunpack.c.l.b16 %v4154
          %v4290 = vunpack.c.l.b16 %v4155
          %v4291 = vunpack.c.l.b16 %v4156
          %v4292 = vunpack.c.l.b16 %v4157
          %v4293 = vunpack.c.l.b16 %v4158
          %v4294 = vunpack.c.l.b16 %v4159
          %v4295 = vunpack.c.l.b16 %v4160
          %v4296 = vunpack.c.l.b16 %v4161
          %v4297 = vunpack.c.l.b16 %v4162
          %v4298 = vunpack.c.l.b16 %v4163
          %v4299 = vunpack.c.l.b16 %v4164
          %v4300 = vunpack.c.l.b16 %v4165
          %v4301 = vunpack.c.l.b16 %v4166
          %v4302 = vunpack.c.l.b16 %v4167
          %v4303 = vunpack.c.l.b16 %v4168
          %v4304 = vunpack.c.l.b16 %v4169
          %v4305 = vunpack.c.l.b16 %v4170
          %v4306 = vunpack.c.l.b16 %v4171
          %v4307 = vunpack.c.l.b16 %v4172
          %v4308 = vunpack.c.l.b16 %v4173
          %v4309 = vunpack.c.l.b16 %v4174
          %v4310 = vunpack.c.l.b16 %v4175
          %v4311 = vunpack.c.l.b16 %v4176
          %v4312 = vunpack.c.l.b16 %v4177
          %v4313 = vunpack.c.l.b16 %v4178
          %v4314 = vunpack.c.l.b16 %v4179
          %v4315 = vunpack.c.l.b16 %v4180
          %v4316 = vunpack.c.l.b16 %v4181
          %v4317 = vunpack.c.l.b16 %v4182
          %v4318 = vunpack.c.l.b16 %v4183
          %v4319 = vunpack.c.l.b16 %v4184
          %v4320 = vunpack.c.l.b16 %v4185
          %v4321 = vunpack.c.l.b16 %v4186
          %v4322 = vunpack.c.l.b16 %v4187
          %v4323 = vunpack.c.l.b16 %v4188
          %v4324 = vunpack.c.l.b16 %v4189
          %v4325 = vunpack.c.l.b16 %v4190
          %v4326 = vunpack.c.l.b16 %v4191
          %v4327 = vunpack.c.l.b16 %v4192
          %v4328 = vunpack.c.l.b16 %v4193
          %v4329 = vunpack.c.l.b16 %v4194
          %v4330 = vunpack.c.l.b16 %v4195
          %v4331 = vunpack.c.l.b16 %v4196
          %v4332 = vunpack.c.l.b16 %v4197
          %v4333 = vunpack.c.l.b16 %v4198
          %v4334 = vunpack.c.l.b16 %v4199
          %v4335 = vunpack.c.l.b16 %v4200
          %v4336 = vunpack.c.l.b16 %v4201
          %v4337 = vunpack.c.l.b16 %v4202
          %v4338 = vunpack.c.l.b16 %v4203
          %v4339 = vpack.c.b16 %v4276, %v4275
          %v4340 = vpack.c.b16 %v4278, %v4277
          %v4341 = vpack.c.b16 %v4280, %v4279
          %v4342 = vpack.c.b16 %v4282, %v4281
          %v4343 = vpack.c.b16 %v4284, %v4283
          %v4344 = vpack.c.b16 %v4286, %v4285
          %v4345 = vpack.c.b16 %v4288, %v4287
          %v4346 = vpack.c.b16 %v4290, %v4289
          %v4347 = vpack.c.b16 %v4292, %v4291
          %v4348 = vpack.c.b16 %v4294, %v4293
          %v4349 = vpack.c.b16 %v4296, %v4295
          %v4350 = vpack.c.b16 %v4298, %v4297
          %v4351 = vpack.c.b16 %v4300, %v4299
          %v4352 = vpack.c.b16 %v4302, %v4301
          %v4353 = vpack.c.b16 %v4304, %v4303
          %v4354 = vpack.c.b16 %v4306, %v4305
          %v4355 = vpack.c.b16 %v4308, %v4307
          %v4356 = vpack.c.b16 %v4310, %v4309
          %v4357 = vpack.c.b16 %v4312, %v4311
          %v4358 = vpack.c.b16 %v4314, %v4313
          %v4359 = vpack.c.b16 %v4316, %v4315
          %v4360 = vpack.c.b16 %v4318, %v4317
          %v4361 = vpack.c.b16 %v4320, %v4319
          %v4362 = vpack.c.b16 %v4322, %v4321
          %v4363 = vpack.c.b16 %v4324, %v4323
          %v4364 = vpack.c.b16 %v4326, %v4325
          %v4365 = vpack.c.b16 %v4328, %v4327
          %v4366 = vpack.c.b16 %v4330, %v4329
          %v4367 = vpack.c.b16 %v4332, %v4331
          %v4368 = vpack.c.b16 %v4334, %v4333
          %v4369 = vpack.c.b16 %v4336, %v4335
          %v4370 = vpack.c.b16 %v4338, %v4337
          %4403 = vmatprep.subr.bf16.mxu0 0
          %4404 = vmatpush1.bf16.msra.mxu0 %v4339
          %4405 = vmatprep.subr.bf16.mxu0 0
          %4406 = vmatpush1.bf16.msra.mxu0 %v4340
          %4407 = vmatprep.subr.bf16.mxu0 0
          %4408 = vmatpush1.bf16.msra.mxu0 %v4341
          %4409 = vmatprep.subr.bf16.mxu0 0
          %4410 = vmatpush1.bf16.msra.mxu0 %v4342
          %4411 = vmatprep.subr.bf16.mxu0 0
          %4412 = vmatpush1.bf16.msra.mxu0 %v4343
          %4413 = vmatprep.subr.bf16.mxu0 0
          %4414 = vmatpush1.bf16.msra.mxu0 %v4344
          %4415 = vmatprep.subr.bf16.mxu0 0
          %4416 = vmatpush1.bf16.msra.mxu0 %v4345
          %4417 = vmatprep.subr.bf16.mxu0 0
          %4418 = vmatpush1.bf16.msra.mxu0 %v4346
          %4419 = vmatprep.subr.bf16.mxu0 0
          %4420 = vmatpush1.bf16.msra.mxu0 %v4347
          %4421 = vmatprep.subr.bf16.mxu0 0
          %4422 = vmatpush1.bf16.msra.mxu0 %v4348
          %4423 = vmatprep.subr.bf16.mxu0 0
          %4424 = vmatpush1.bf16.msra.mxu0 %v4349
          %4425 = vmatprep.subr.bf16.mxu0 0
          %4426 = vmatpush1.bf16.msra.mxu0 %v4350
          %4427 = vmatprep.subr.bf16.mxu0 0
          %4428 = vmatpush1.bf16.msra.mxu0 %v4351
          %4429 = vmatprep.subr.bf16.mxu0 0
          %4430 = vmatpush1.bf16.msra.mxu0 %v4352
          %4431 = vmatprep.subr.bf16.mxu0 0
          %4432 = vmatpush1.bf16.msra.mxu0 %v4353
          %4433 = vmatprep.subr.bf16.mxu0 0
          %4434 = vmatpush1.bf16.msra.mxu0 %v4354
          %4435 = vmatprep.mubr.bf16.mxu0 %v4137
          %4436 = vmatmul.mubr.bf16.gmra.mrb[0].mxu0 %v4136
          %v4437 = vpop.f32.mrb[0].mxu0
          %v4438 = vadd.f32 %v4209, %v4437
          %v4439 = vpop.f32.mrb[0].mxu0
          %v4440 = vpop.f32.mrb[0].mxu0
          %v4441 = vpop.f32.mrb[0].mxu0
          %4442 = vdwg.mxu0
          %4443 = vmatprep.subr.bf16.mxu0 0
          %4444 = vmatpush1.bf16.msra.mxu0 %v4355
          %4445 = vmatprep.subr.bf16.mxu0 0
          %4446 = vmatpush1.bf16.msra.mxu0 %v4356
          %4447 = vmatprep.subr.bf16.mxu0 0
          %4448 = vmatpush1.bf16.msra.mxu0 %v4357
          %4449 = vmatprep.subr.bf16.mxu0 0
          %4450 = vmatpush1.bf16.msra.mxu0 %v4358
          %4451 = vmatprep.subr.bf16.mxu0 0
          %4452 = vmatpush1.bf16.msra.mxu0 %v4359
          %4453 = vmatprep.subr.bf16.mxu0 0
          %4454 = vmatpush1.bf16.msra.mxu0 %v4360
          %4455 = vmatprep.subr.bf16.mxu0 0
          %4456 = vmatpush1.bf16.msra.mxu0 %v4361
          %4457 = vmatprep.subr.bf16.mxu0 0
          %4458 = vmatpush1.bf16.msra.mxu0 %v4362
          %4459 = vmatprep.subr.bf16.mxu0 0
          %4460 = vmatpush1.bf16.msra.mxu0 %v4363
          %4461 = vmatprep.subr.bf16.mxu0 0
          %4462 = vmatpush1.bf16.msra.mxu0 %v4364
          %4463 = vmatprep.subr.bf16.mxu0 0
          %4464 = vmatpush1.bf16.msra.mxu0 %v4365
          %4465 = vmatprep.subr.bf16.mxu0 0
          %4466 = vmatpush1.bf16.msra.mxu0 %v4366
          %4467 = vmatprep.subr.bf16.mxu0 0
          %4468 = vmatpush1.bf16.msra.mxu0 %v4367
          %4469 = vmatprep.subr.bf16.mxu0 0
          %4470 = vmatpush1.bf16.msra.mxu0 %v4368
          %4471 = vmatprep.subr.bf16.mxu0 0
          %4472 = vmatpush1.bf16.msra.mxu0 %v4369
          %4473 = vmatprep.subr.bf16.mxu0 0
          %4474 = vmatpush1.bf16.msra.mxu0 %v4370
          %4475 = vmatprep.mubr.bf16.mxu0 %v4139
          %4476 = vmatmul.mubr.bf16.gmra.mrb[0].mxu0 %v4138
          %v4477 = vpop.f32.mrb[0].mxu0
          %v4478 = vadd.f32 %v4438, %v4477
          %v4479 = vpop.f32.mrb[0].mxu0
          %v4480 = vpop.f32.mrb[0].mxu0
          %v4481 = vpop.f32.mrb[0].mxu0
          %4482 = vdwg.mxu0
          %vm4483 = vcmask 654336
          %4484 = vst.msk [vmem:[#allocation11] sm:$0xff] %vm4483, %v4478
        $region64: #{tpu_custom_call.1} parent=39 // pred_fallthru
          _
        // Predicated region
        $region65: #{tpu_custom_call.1} parent=39 // pred_check
          %p4485 = pneg %p152
        $region66: #{tpu_custom_call.1} parent=39 // pred_check_branch
          %4487 = sbr.rel (%p4485) target = $region68
        $region67: #{tpu_custom_call.1} parent=39 // pred_region
          %s4489 = ssub.s32 128, 128
          %4490 = vsyncadd [#allocation5], %s4489
          %s4492 = sshll.u32 [#allocation11], 4
          %s4493 = int_to_ptr.vmem [resolvable:$true] %s4492
          %4495 = dma.vmem_to_hbm [thread:$0]  %s4493, 128, %s5, [#allocation5]
        $region68: #{tpu_custom_call.1} parent=39 // pred_fallthru
          _
        // Predicated region
        $region69: #{tpu_custom_call.1} parent=39 // pred_check
          %p4496 = pneg %p152
        $region70: #{tpu_custom_call.1} parent=39 // pred_check_branch
          %4498 = sbr.rel (%p4496) target = $region72
        $region71: #{tpu_custom_call.1} parent=39 // pred_region
          %4499 = dma.done [#allocation5], 128
        $region72: #{tpu_custom_call.1} parent=39 // pred_fallthru
          _
      $region40: #{tpu_custom_call.1} parent=5 // pred_fallthru
        _
      %p4500 = scmp.le.s32.totalorder 2, %s19
      // Predicated region
      $region73: #{tpu_custom_call.1} parent=5 // pred_check
        %p4501 = pneg %p4500
      $region74: #{tpu_custom_call.1} parent=5 // pred_check_branch
        %4503 = sbr.rel (%p4501) target = $region76
      $region75: #{tpu_custom_call.1} parent=5 // pred_region
        %s4504 = ssub.s32 %s19, 2
      $region76: #{tpu_custom_call.1} parent=5 // pred_fallthru
        _
    $region6: #{tpu_custom_call.1} parent=1 // loop_footer
      %s23 = sadd.s32 1, %s19
    $region7: #{tpu_custom_call.1} parent=1 // loop_footer_branch
      %18 = sbr.rel target = $region3
    $region8: #{tpu_custom_call.1} parent=1 // loop_exit
      _
    %4505 = vsyncpa [#allocation4], 1
    %s4506 = scalar_lea.sflag [#allocation4], 1
    %4507 = vsyncpa %s4506, 1
    %4508 = vsyncpa [#allocation7], 1
    %s4509 = scalar_lea.sflag [#allocation7], 1
    %4510 = vsyncpa %s4509, 1
    %4511 = vsyncpa [#allocation10], 1
    %4512 = vsyncpa [#allocation5], 1
    %s4513 = scalar_lea.sflag [#allocation5], 1
    %4514 = vsyncpa %s4513, 1

</llo_original>
